<compile_context>
chip_gen: v7x
topology: tpu7x:2x2x1
jax: 0.10.0
libtpu: 0.0.40
codegen_flags: <defaults>
</compile_context>

<pallas_src>
import functools

import jax
import jax.numpy as jnp
import numpy as np
from jax import lax
from jax.experimental import pallas as pl
from jax.experimental.pallas import tpu as pltpu


def _round_up(x, m):
    return (x + m - 1) // m * m


def _channel_pad(c):
    # Pad channels to a multiple of 8 sublanes, always reserving one extra
    # ("ones") row used to fold the conv bias into the MXU contraction.
    return _round_up(c + 1, 8)


# ------------------------------- Pallas kernel ------------------------------ #

def _tcnet_kernel(*refs, level_meta, ksize, lpad, mxu_dtype, act_dtype,
                  fuse_taps_width):
    """refs = (x_ref, <per-level weight refs...>, o_ref).

    x_ref : (Cin0_pad, batch_tile*Lpad) activation slab for this batch tile.
    per level: w1 (Cout_p, K*Cin_p), w2 (Cout_p, K*Cout_p) [, wd (Cout_p, Cin_p)]
    (biases are folded into the weights via the reserved ones row).
    """
    x_ref, o_ref, wrefs = refs[0], refs[-1], refs[1:-1]

    nl = x_ref.shape[-1]
    nb = nl // lpad
    # Per-element time index within its own batch segment (lane = b*lpad + t),
    # built by tiling a single-segment iota (no vector int modulo).
    seg = lax.broadcasted_iota(jnp.int32, (1, lpad), 1)
    t_local = seg if nb == 1 else jnp.concatenate([seg] * nb, axis=1)

    # Hoist the causal masks: one compare per unique shift for the whole net.
    all_shifts = sorted({(ksize - 1 - j) * d
                         for d, _ in level_meta for j in range(ksize)})
    masks = {s: t_local >= s for s in all_shifts if 0 < s < lpad}

    def causal_shift(v, shift):
        # out[:, t] = v[:, t - shift], zero where t_local < shift (causal pad).
        if shift == 0:
            return v
        if shift >= lpad:            # tap only ever reads causal zero-padding
            return jnp.zeros_like(v)
        return jnp.where(masks[shift], pltpu.roll(v, shift, 1), 0.0)

    def to_mxu(v):
        if mxu_dtype is None or v.dtype == mxu_dtype:
            return v
        return v.astype(mxu_dtype)

    def conv(vm, w_ref, dilation):
        # Causal dilated conv: shifted views -> MXU matmul(s), f32 accumulation.
        cin_p = vm.shape[0]
        taps = [causal_shift(vm, (ksize - 1 - j) * dilation)
                for j in range(ksize)]
        if ksize == 1:
            return jnp.dot(w_ref[...], taps[0],
                           preferred_element_type=jnp.float32)
        if ksize * cin_p < fuse_taps_width:
            # Small contraction: fuse all taps into a single MXU matmul.
            return jnp.dot(w_ref[...], jnp.concatenate(taps, axis=0),
                           preferred_element_type=jnp.float32)
        # Contraction already >= MXU width: K accumulating dots, skipping the
        # (K*Cin_p, nl) concatenated temp (pure VMEM/vreg traffic).
        acc = None
        for j, tap in enumerate(taps):
            part = jnp.dot(w_ref[:, j * cin_p:(j + 1) * cin_p], tap,
                           preferred_element_type=jnp.float32)
            acc = part if acc is None else acc + part
        return acc

    h = x_ref[...]
    idx = 0
    for dilation, has_down in level_meta:
        w1_ref, w2_ref = wrefs[idx], wrefs[idx + 1]
        idx += 2
        hm = to_mxu(h)
        # conv1 -> chomp -> relu   (dropout = identity in eval mode)
        y = jnp.maximum(conv(hm, w1_ref, dilation), 0.0)
        # conv2 -> chomp -> relu
        y = jnp.maximum(conv(to_mxu(y), w2_ref, dilation), 0.0)
        if has_down:
            wd_ref = wrefs[idx]
            idx += 1
            res = jnp.dot(wd_ref[...], hm, preferred_element_type=jnp.float32)
        else:
            res = h
        h = jnp.maximum(y + res, 0.0).astype(act_dtype)

    o_ref[...] = h.astype(o_ref.dtype)


# ------------------------------ parameter packing --------------------------- #

def _pack_conv_w(w, b, cin_p, cout_p, ones_in, ones_out, dtype):
    """PyTorch (Cout, Cin, K) conv weight -> (Cout_p, K*Cin_p) with the K taps
    fused along the contraction axis.  The bias is folded into the zero-shift
    tap's "ones" column (so it is added exactly once); if ones_out is not None
    the ones row is propagated so the next conv can fold its bias too."""
    cout, cin, k = w.shape
    wp = jnp.zeros((cout_p, k, cin_p), jnp.float32)
    wp = wp.at[:cout, :, :cin].set(jnp.transpose(w, (0, 2, 1)).astype(jnp.float32))
    wp = wp.at[:cout, k - 1, ones_in].set(b.astype(jnp.float32))
    if ones_out is not None:
        wp = wp.at[ones_out, k - 1, ones_in].set(1.0)
    return wp.reshape(cout_p, k * cin_p).astype(dtype)


def _pack_down_w(wd, bd, cin_p, cout_p, ones_in, ones_out, dtype):
    cout, cin = wd.shape
    wp = jnp.zeros((cout_p, cin_p), jnp.float32)
    wp = wp.at[:cout, :cin].set(wd.astype(jnp.float32))
    wp = wp.at[:cout, ones_in].set(bd.astype(jnp.float32))   # bias via ones column
    wp = wp.at[ones_out, ones_in].set(1.0)                   # ones row -> residual
    return wp.astype(dtype)


def _pack_params(params, num_inputs, dtype):
    """Pack all levels.  Ones-row invariant: every activation slab carries a
    row of exactly 1.0 at index <channels> of its group.  conv1 propagates it
    (so conv2 can fold its bias); conv2 does not; the residual path carries it
    back, so relu(y2 + res) keeps the row at 1 for the next level."""
    packed, meta = [], []
    cin, cin_p = num_inputs, _channel_pad(num_inputs)
    for i, blk in enumerate(params):
        cout = blk["w1"].shape[0]
        cout_p = _channel_pad(cout)
        lvl = [
            _pack_conv_w(blk["w1"], blk["b1"], cin_p, cout_p,
                         ones_in=cin, ones_out=cout, dtype=dtype),
            _pack_conv_w(blk["w2"], blk["b2"], cout_p, cout_p,
                         ones_in=cout, ones_out=None, dtype=dtype),
        ]
        has_down = "wd" in blk
        if has_down:
            lvl.append(_pack_down_w(blk["wd"], blk["bd"], cin_p, cout_p,
                                    ones_in=cin, ones_out=cout, dtype=dtype))
        packed.append(lvl)
        meta.append((2 ** i, has_down))
        cin, cin_p = cout, cout_p
    return packed, tuple(meta), cin_p


# --------------------------------- wrapper ---------------------------------- #

def tcnet_forward(x, params, kernel_size, *, batch_tile=None,
                  mxu_dtype=jnp.bfloat16, act_dtype=jnp.float32,
                  target_lanes=512, fuse_taps_width=256):
    """x: (N, Cin, L) f32 -> (N, Cout_last, L) f32 (eval-mode TCNet forward).

    mxu_dtype: dtype of MXU operands (and HBM weight storage).  bf16 is the
      fast path on v5e/v6e/v7x; None keeps everything f32 (exact).
    act_dtype: dtype of inter-level activations / HBM activation slabs.  f32 is
      safe everywhere; bf16 also halves activation traffic on v6e/v7x (avoid on
      v5e: no bf16 VPU).
    """
    N, Cin, L = x.shape
    lpad = _round_up(L, 128)                   # lane-dense time axis
    cin0_p = _channel_pad(Cin)
    cout_last = params[-1]["w1"].shape[0]

    w_dtype = jnp.float32 if mxu_dtype is None else mxu_dtype
    packed, meta, cout_last_p = _pack_params(params, Cin, w_dtype)
    w_args = [arr for lvl in packed for arr in lvl]

    # Batch tiling: ~target_lanes lanes per grid step; keep the grid even and
    # >= 2 when possible (so "parallel" can shard across v7x's 2 TensorCores)
    # and pad the batch instead of shrinking the tile for awkward N.
    if batch_tile is None:
        batch_tile = max(1, min(N, target_lanes // lpad))
    n_steps = pl.cdiv(N, batch_tile)
    if n_steps == 1 and N > 1:
        batch_tile = pl.cdiv(N, 2)
        n_steps = pl.cdiv(N, batch_tile)
    if n_steps > 1 and n_steps % 2:
        n_steps += 1
    n_pad = n_steps * batch_tile
    nl_block = batch_tile * lpad

    # Fold (N, Cin, L) -> (Cin_pad, Npad*Lpad) slab; row `Cin` is the ones row
    # carrying the folded biases.  Zero time/batch padding never feeds valid
    # outputs (the conv is causal) and is sliced off at the end.
    xs = jnp.zeros((cin0_p, n_pad, lpad), act_dtype)
    xs = xs.at[:Cin, :N, :L].set(jnp.transpose(x, (1, 0, 2)).astype(act_dtype))
    xs = xs.at[Cin].set(jnp.ones((n_pad, lpad), act_dtype))
    x_slab = xs.reshape(cin0_p, n_pad * lpad)

    # VMEM budget: resident weights + double-buffered in/out blocks + a live-
    # activation estimate, kept comfortably under the physical cap.
    itemsize = jnp.dtype(act_dtype).itemsize
    w_bytes = sum(int(np.prod(a.shape)) * a.dtype.itemsize for a in w_args)
    io_bytes = 2 * nl_block * (cin0_p + cout_last_p) * itemsize
    max_cp = max([cin0_p] + [_channel_pad(b["w1"].shape[0]) for b in params])
    live_bytes = (kernel_size + 4) * max_cp * nl_block * 4
    need = 2 * w_bytes + io_bytes + 2 * live_bytes + (4 << 20)
    try:
        phys_vmem = int(getattr(pltpu.get_tpu_info(), "vmem_capacity_bytes",
                                64 << 20))
    except Exception:
        phys_vmem = 64 << 20                    # v7x-safe default
    cap = max(phys_vmem - (8 << 20), 32 << 20)
    vmem_limit = int(min(max(need, 32 << 20), cap))
    # TODO(synk): for very large nets (>~40 MiB of packed weights) stream the
    # per-level weights (pltpu.emit_pipeline / split pallas_calls) instead of
    # whole-net VMEM residency -- matters on v7x's 64 MiB VMEM.

    kern = functools.partial(_tcnet_kernel, level_meta=meta, ksize=kernel_size,
                             lpad=lpad, mxu_dtype=mxu_dtype, act_dtype=act_dtype,
                             fuse_taps_width=fuse_taps_width)

    def build_and_run(single_buffer_weights):
        wkw = dict(pipeline_mode=pl.Buffered(1)) if single_buffer_weights else {}
        in_specs = [pl.BlockSpec((cin0_p, nl_block), lambda b: (0, b))]
        in_specs += [pl.BlockSpec(a.shape, lambda b: (0, 0), **wkw)
                     for a in w_args]
        return pl.pallas_call(
            kern,
            out_shape=jax.ShapeDtypeStruct((cout_last_p, n_pad * lpad),
                                           act_dtype),
            grid=(n_steps,),
            in_specs=in_specs,
            out_specs=pl.BlockSpec((cout_last_p, nl_block), lambda b: (0, b)),
            compiler_params=pltpu.CompilerParams(
                dimension_semantics=("parallel",),
                vmem_limit_bytes=vmem_limit),
        )(x_slab, *w_args)

    try:
        # Grid-constant weights need only a single VMEM buffer (halves their
        # resident footprint vs. default double-buffering).
        out_slab = build_and_run(True)
    except Exception:  # pl.Buffered(1) unsupported here -> default buffering
        out_slab = build_and_run(False)

    out = out_slab.reshape(cout_last_p, n_pad, lpad)[:cout_last, :N, :L]
    return jnp.transpose(out, (1, 0, 2)).astype(jnp.float32)


# ---------------------------- parameter creation ----------------------------- #

def _weight_norm(v, g):
    # PyTorch weight_norm (dim=0): w = g * v / ||v||, norm over (Cin, K) rows.
    norm = jnp.sqrt(jnp.sum(v * v, axis=(1, 2), keepdims=True))
    return g[:, None, None] * v / norm


def init_tcnet_params(key, num_inputs, num_channels, kernel_size):
    params = []
    for i, cout in enumerate(num_channels):
        cin = num_inputs if i == 0 else num_channels[i - 1]
        key, *ks = jax.random.split(key, 9)
        v1 = 0.01 * jax.random.normal(ks[0], (cout, cin, kernel_size), jnp.float32)
        g1 = 1.0 + 0.1 * jax.random.normal(ks[1], (cout,), jnp.float32)
        b1 = 0.05 * jax.random.normal(ks[2], (cout,), jnp.float32)
        v2 = 0.01 * jax.random.normal(ks[3], (cout, cout, kernel_size), jnp.float32)
        g2 = 1.0 + 0.1 * jax.random.normal(ks[4], (cout,), jnp.float32)
        b2 = 0.05 * jax.random.normal(ks[5], (cout,), jnp.float32)
        blk = {"w1": _weight_norm(v1, g1), "b1": b1,
               "w2": _weight_norm(v2, g2), "b2": b2}
        if cin != cout:  # downsample = plain Conv1d(cin, cout, 1)
            blk["wd"] = 0.01 * jax.random.normal(ks[6], (cout, cin), jnp.float32)
            blk["bd"] = 0.05 * jax.random.normal(ks[7], (cout,), jnp.float32)
        params.append(blk)
    return params


# ------------------------ exact host (float64) reference --------------------- #

def _ref_causal_conv(x, w, b, dilation):
    N, Cin, L = x.shape
    K = w.shape[-1]
    y = np.zeros((N, w.shape[0], L), np.float64)
    for k in range(K):
        shift = (K - 1 - k) * dilation
        xs = x if shift == 0 else np.pad(x, ((0, 0), (0, 0), (shift, 0)))[:, :, :L]
        y += np.einsum("oc,ncl->nol", w[:, :, k], xs)
    return y + b[None, :, None]


def _ref_tcnet(x, params):
    h = np.asarray(x, np.float64)
    for i, blk in enumerate(params):
        d = 2 ** i
        w1 = np.asarray(blk["w1"], np.float64)
        b1 = np.asarray(blk["b1"], np.float64)
        w2 = np.asarray(blk["w2"], np.float64)
        b2 = np.asarray(blk["b2"], np.float64)
        y = np.maximum(_ref_causal_conv(h, w1, b1, d), 0.0)
        y = np.maximum(_ref_causal_conv(y, w2, b2, d), 0.0)
        if "wd" in blk:
            res = (np.einsum("oc,ncl->nol", np.asarray(blk["wd"], np.float64), h)
                   + np.asarray(blk["bd"], np.float64)[None, :, None])
        else:
            res = h
        h = np.maximum(y + res, 0.0)
    return h


# ------------------------------------ main ----------------------------------- #

if __name__ == "__main__":
    num_inputs, num_channels, kernel_size = 3, [6, 6, 10], 3
    N, L = 3, 40   # 3 levels: dilations 1/2/4, downsample on levels 0 and 2

    key = jax.random.PRNGKey(0)
    kx, kp = jax.random.split(key)
    x = jax.random.normal(kx, (N, num_inputs, L), jnp.float32)
    params = init_tcnet_params(kp, num_inputs, num_channels, kernel_size)

    ref = _ref_tcnet(x, params)   # exact float64 host reference

    # Exact path (f32 weights / MXU operands): tight numerical check.
    out_f32 = jax.block_until_ready(
        tcnet_forward(x, params, kernel_size, mxu_dtype=None))
    np.testing.assert_allclose(np.asarray(out_f32), ref, rtol=5e-3, atol=1e-3)

    # Fast path (bf16 weights + MXU operands, f32 elementwise / accumulation).
    out_bf16 = jax.block_until_ready(
        tcnet_forward(x, params, kernel_size, mxu_dtype=jnp.bfloat16))
    np.testing.assert_allclose(np.asarray(out_bf16), ref, rtol=1e-1, atol=5e-2)

    print("KERNEL_OK")
</pallas_src>

<mosaic_0001>
module attributes {stable_mosaic.version = 11 : i64} {
  func.func @_tcnet_kernel(%arg0: i32, %arg1: memref<8x256xf32, #tpu.memory_space<vmem>>, %arg2: memref<8x24xf32, #tpu.memory_space<vmem>>, %arg3: memref<8x24xf32, #tpu.memory_space<vmem>>, %arg4: memref<8x8xf32, #tpu.memory_space<vmem>>, %arg5: memref<8x24xf32, #tpu.memory_space<vmem>>, %arg6: memref<8x24xf32, #tpu.memory_space<vmem>>, %arg7: memref<16x24xf32, #tpu.memory_space<vmem>>, %arg8: memref<16x48xf32, #tpu.memory_space<vmem>>, %arg9: memref<16x8xf32, #tpu.memory_space<vmem>>, %arg10: memref<16x256xf32, #tpu.memory_space<vmem>>) attributes {dimension_semantics = [#tpu.dimension_semantics<parallel>], iteration_bounds = array<i64: 2>, scalar_prefetch = 0 : i64, scratch_operands = 0 : i64, tpu.core_type = #tpu.core_type<tc>, window_params = [{transform_indices = @transform_0, window_bounds = array<i64: 8, 256>}, {pipeline_mode = #tpu.pipeline_mode<synchronous>, transform_indices = @transform_1, window_bounds = array<i64: 8, 24>}, {pipeline_mode = #tpu.pipeline_mode<synchronous>, transform_indices = @transform_2, window_bounds = array<i64: 8, 24>}, {pipeline_mode = #tpu.pipeline_mode<synchronous>, transform_indices = @transform_3, window_bounds = array<i64: 8, 8>}, {pipeline_mode = #tpu.pipeline_mode<synchronous>, transform_indices = @transform_4, window_bounds = array<i64: 8, 24>}, {pipeline_mode = #tpu.pipeline_mode<synchronous>, transform_indices = @transform_5, window_bounds = array<i64: 8, 24>}, {pipeline_mode = #tpu.pipeline_mode<synchronous>, transform_indices = @transform_6, window_bounds = array<i64: 16, 24>}, {pipeline_mode = #tpu.pipeline_mode<synchronous>, transform_indices = @transform_7, window_bounds = array<i64: 16, 48>}, {pipeline_mode = #tpu.pipeline_mode<synchronous>, transform_indices = @transform_8, window_bounds = array<i64: 16, 8>}, {transform_indices = @transform_9, window_bounds = array<i64: 16, 256>}]} {
    %0 = tpu.iota {dimensions = array<i32: 1>} : vector<1x128xi32>
    %1 = tpu.concatenate %0, %0 in 1 : vector<1x128xi32>, vector<1x128xi32> -> vector<1x256xi32>
    %c1_i32 = arith.constant 1 : i32
    %2 = vector.broadcast %c1_i32 : i32 to vector<1x256xi32>
    %3 = arith.cmpi sge, %1, %2 : vector<1x256xi32>
    %c2_i32 = arith.constant 2 : i32
    %4 = vector.broadcast %c2_i32 : i32 to vector<1x256xi32>
    %5 = arith.cmpi sge, %1, %4 : vector<1x256xi32>
    %c4_i32 = arith.constant 4 : i32
    %6 = vector.broadcast %c4_i32 : i32 to vector<1x256xi32>
    %7 = arith.cmpi sge, %1, %6 : vector<1x256xi32>
    %c8_i32 = arith.constant 8 : i32
    %8 = vector.broadcast %c8_i32 : i32 to vector<1x256xi32>
    %9 = arith.cmpi sge, %1, %8 : vector<1x256xi32>
    %c0 = arith.constant 0 : index
    %c0_0 = arith.constant 0 : index
    %10 = vector.load %arg1[%c0, %c0_0] : memref<8x256xf32, #tpu.memory_space<vmem>>, vector<8x256xf32>
    %c2_i32_1 = arith.constant 2 : i32
    %11 = tpu.dynamic_rotate %10 by %c2_i32_1 dim 1 : vector<8x256xf32>, i32 -> vector<8x256xf32>
    %cst = arith.constant 0.000000e+00 : f32
    %12 = vector.shape_cast %5 : vector<1x256xi1> to vector<1x256xi1>
    %13 = vector.broadcast %12 : vector<1x256xi1> to vector<8x256xi1>
    %14 = vector.broadcast %cst : f32 to vector<8x256xf32>
    %15 = arith.select %13, %11, %14 : vector<8x256xi1>, vector<8x256xf32>
    %c1_i32_2 = arith.constant 1 : i32
    %16 = tpu.dynamic_rotate %10 by %c1_i32_2 dim 1 : vector<8x256xf32>, i32 -> vector<8x256xf32>
    %cst_3 = arith.constant 0.000000e+00 : f32
    %17 = vector.shape_cast %3 : vector<1x256xi1> to vector<1x256xi1>
    %18 = vector.broadcast %17 : vector<1x256xi1> to vector<8x256xi1>
    %19 = vector.broadcast %cst_3 : f32 to vector<8x256xf32>
    %20 = arith.select %18, %16, %19 : vector<8x256xi1>, vector<8x256xf32>
    %c0_4 = arith.constant 0 : index
    %c0_5 = arith.constant 0 : index
    %21 = vector.load %arg2[%c0_4, %c0_5] : memref<8x24xf32, #tpu.memory_space<vmem>>, vector<8x24xf32>
    %22 = tpu.concatenate %15, %20, %10 in 0 : vector<8x256xf32>, vector<8x256xf32>, vector<8x256xf32> -> vector<24x256xf32>
    %cst_6 = arith.constant dense<0.000000e+00> : vector<8x256xf32>
    %23 = tpu.matmul %21, %22, %cst_6 {dimension_numbers = #tpu.dot_dimension_numbers<[1], [0], [0], [1], [0, 0, 1, 1], [], []>} : vector<8x24xf32>, vector<24x256xf32>, vector<8x256xf32> -> vector<8x256xf32>
    %cst_7 = arith.constant 0.000000e+00 : f32
    %24 = vector.broadcast %cst_7 : f32 to vector<8x256xf32>
    %25 = arith.maximumf %23, %24 : vector<8x256xf32>
    %c2_i32_8 = arith.constant 2 : i32
    %26 = tpu.dynamic_rotate %25 by %c2_i32_8 dim 1 : vector<8x256xf32>, i32 -> vector<8x256xf32>
    %cst_9 = arith.constant 0.000000e+00 : f32
    %27 = vector.shape_cast %5 : vector<1x256xi1> to vector<1x256xi1>
    %28 = vector.broadcast %27 : vector<1x256xi1> to vector<8x256xi1>
    %29 = vector.broadcast %cst_9 : f32 to vector<8x256xf32>
    %30 = arith.select %28, %26, %29 : vector<8x256xi1>, vector<8x256xf32>
    %c1_i32_10 = arith.constant 1 : i32
    %31 = tpu.dynamic_rotate %25 by %c1_i32_10 dim 1 : vector<8x256xf32>, i32 -> vector<8x256xf32>
    %cst_11 = arith.constant 0.000000e+00 : f32
    %32 = vector.shape_cast %3 : vector<1x256xi1> to vector<1x256xi1>
    %33 = vector.broadcast %32 : vector<1x256xi1> to vector<8x256xi1>
    %34 = vector.broadcast %cst_11 : f32 to vector<8x256xf32>
    %35 = arith.select %33, %31, %34 : vector<8x256xi1>, vector<8x256xf32>
    %c0_12 = arith.constant 0 : index
    %c0_13 = arith.constant 0 : index
    %36 = vector.load %arg3[%c0_12, %c0_13] : memref<8x24xf32, #tpu.memory_space<vmem>>, vector<8x24xf32>
    %37 = tpu.concatenate %30, %35, %25 in 0 : vector<8x256xf32>, vector<8x256xf32>, vector<8x256xf32> -> vector<24x256xf32>
    %cst_14 = arith.constant dense<0.000000e+00> : vector<8x256xf32>
    %38 = tpu.matmul %36, %37, %cst_14 {dimension_numbers = #tpu.dot_dimension_numbers<[1], [0], [0], [1], [0, 0, 1, 1], [], []>} : vector<8x24xf32>, vector<24x256xf32>, vector<8x256xf32> -> vector<8x256xf32>
    %cst_15 = arith.constant 0.000000e+00 : f32
    %39 = vector.broadcast %cst_15 : f32 to vector<8x256xf32>
    %40 = arith.maximumf %38, %39 : vector<8x256xf32>
    %c0_16 = arith.constant 0 : index
    %c0_17 = arith.constant 0 : index
    %41 = vector.load %arg4[%c0_16, %c0_17] : memref<8x8xf32, #tpu.memory_space<vmem>>, vector<8x8xf32>
    %cst_18 = arith.constant dense<0.000000e+00> : vector<8x256xf32>
    %42 = tpu.matmul %41, %10, %cst_18 {dimension_numbers = #tpu.dot_dimension_numbers<[1], [0], [0], [1], [0, 0, 1, 1], [], []>} : vector<8x8xf32>, vector<8x256xf32>, vector<8x256xf32> -> vector<8x256xf32>
    %43 = arith.addf %40, %42 : vector<8x256xf32>
    %cst_19 = arith.constant 0.000000e+00 : f32
    %44 = vector.broadcast %cst_19 : f32 to vector<8x256xf32>
    %45 = arith.maximumf %43, %44 : vector<8x256xf32>
    %c4_i32_20 = arith.constant 4 : i32
    %46 = tpu.dynamic_rotate %45 by %c4_i32_20 dim 1 : vector<8x256xf32>, i32 -> vector<8x256xf32>
    %cst_21 = arith.constant 0.000000e+00 : f32
    %47 = vector.shape_cast %7 : vector<1x256xi1> to vector<1x256xi1>
    %48 = vector.broadcast %47 : vector<1x256xi1> to vector<8x256xi1>
    %49 = vector.broadcast %cst_21 : f32 to vector<8x256xf32>
    %50 = arith.select %48, %46, %49 : vector<8x256xi1>, vector<8x256xf32>
    %c2_i32_22 = arith.constant 2 : i32
    %51 = tpu.dynamic_rotate %45 by %c2_i32_22 dim 1 : vector<8x256xf32>, i32 -> vector<8x256xf32>
    %cst_23 = arith.constant 0.000000e+00 : f32
    %52 = vector.shape_cast %5 : vector<1x256xi1> to vector<1x256xi1>
    %53 = vector.broadcast %52 : vector<1x256xi1> to vector<8x256xi1>
    %54 = vector.broadcast %cst_23 : f32 to vector<8x256xf32>
    %55 = arith.select %53, %51, %54 : vector<8x256xi1>, vector<8x256xf32>
    %c0_24 = arith.constant 0 : index
    %c0_25 = arith.constant 0 : index
    %56 = vector.load %arg5[%c0_24, %c0_25] : memref<8x24xf32, #tpu.memory_space<vmem>>, vector<8x24xf32>
    %57 = tpu.concatenate %50, %55, %45 in 0 : vector<8x256xf32>, vector<8x256xf32>, vector<8x256xf32> -> vector<24x256xf32>
    %cst_26 = arith.constant dense<0.000000e+00> : vector<8x256xf32>
    %58 = tpu.matmul %56, %57, %cst_26 {dimension_numbers = #tpu.dot_dimension_numbers<[1], [0], [0], [1], [0, 0, 1, 1], [], []>} : vector<8x24xf32>, vector<24x256xf32>, vector<8x256xf32> -> vector<8x256xf32>
    %cst_27 = arith.constant 0.000000e+00 : f32
    %59 = vector.broadcast %cst_27 : f32 to vector<8x256xf32>
    %60 = arith.maximumf %58, %59 : vector<8x256xf32>
    %c4_i32_28 = arith.constant 4 : i32
    %61 = tpu.dynamic_rotate %60 by %c4_i32_28 dim 1 : vector<8x256xf32>, i32 -> vector<8x256xf32>
    %cst_29 = arith.constant 0.000000e+00 : f32
    %62 = vector.shape_cast %7 : vector<1x256xi1> to vector<1x256xi1>
    %63 = vector.broadcast %62 : vector<1x256xi1> to vector<8x256xi1>
    %64 = vector.broadcast %cst_29 : f32 to vector<8x256xf32>
    %65 = arith.select %63, %61, %64 : vector<8x256xi1>, vector<8x256xf32>
    %c2_i32_30 = arith.constant 2 : i32
    %66 = tpu.dynamic_rotate %60 by %c2_i32_30 dim 1 : vector<8x256xf32>, i32 -> vector<8x256xf32>
    %cst_31 = arith.constant 0.000000e+00 : f32
    %67 = vector.shape_cast %5 : vector<1x256xi1> to vector<1x256xi1>
    %68 = vector.broadcast %67 : vector<1x256xi1> to vector<8x256xi1>
    %69 = vector.broadcast %cst_31 : f32 to vector<8x256xf32>
    %70 = arith.select %68, %66, %69 : vector<8x256xi1>, vector<8x256xf32>
    %c0_32 = arith.constant 0 : index
    %c0_33 = arith.constant 0 : index
    %71 = vector.load %arg6[%c0_32, %c0_33] : memref<8x24xf32, #tpu.memory_space<vmem>>, vector<8x24xf32>
    %72 = tpu.concatenate %65, %70, %60 in 0 : vector<8x256xf32>, vector<8x256xf32>, vector<8x256xf32> -> vector<24x256xf32>
    %cst_34 = arith.constant dense<0.000000e+00> : vector<8x256xf32>
    %73 = tpu.matmul %71, %72, %cst_34 {dimension_numbers = #tpu.dot_dimension_numbers<[1], [0], [0], [1], [0, 0, 1, 1], [], []>} : vector<8x24xf32>, vector<24x256xf32>, vector<8x256xf32> -> vector<8x256xf32>
    %cst_35 = arith.constant 0.000000e+00 : f32
    %74 = vector.broadcast %cst_35 : f32 to vector<8x256xf32>
    %75 = arith.maximumf %73, %74 : vector<8x256xf32>
    %76 = arith.addf %75, %45 : vector<8x256xf32>
    %cst_36 = arith.constant 0.000000e+00 : f32
    %77 = vector.broadcast %cst_36 : f32 to vector<8x256xf32>
    %78 = arith.maximumf %76, %77 : vector<8x256xf32>
    %c8_i32_37 = arith.constant 8 : i32
    %79 = tpu.dynamic_rotate %78 by %c8_i32_37 dim 1 : vector<8x256xf32>, i32 -> vector<8x256xf32>
    %cst_38 = arith.constant 0.000000e+00 : f32
    %80 = vector.shape_cast %9 : vector<1x256xi1> to vector<1x256xi1>
    %81 = vector.broadcast %80 : vector<1x256xi1> to vector<8x256xi1>
    %82 = vector.broadcast %cst_38 : f32 to vector<8x256xf32>
    %83 = arith.select %81, %79, %82 : vector<8x256xi1>, vector<8x256xf32>
    %c4_i32_39 = arith.constant 4 : i32
    %84 = tpu.dynamic_rotate %78 by %c4_i32_39 dim 1 : vector<8x256xf32>, i32 -> vector<8x256xf32>
    %cst_40 = arith.constant 0.000000e+00 : f32
    %85 = vector.shape_cast %7 : vector<1x256xi1> to vector<1x256xi1>
    %86 = vector.broadcast %85 : vector<1x256xi1> to vector<8x256xi1>
    %87 = vector.broadcast %cst_40 : f32 to vector<8x256xf32>
    %88 = arith.select %86, %84, %87 : vector<8x256xi1>, vector<8x256xf32>
    %c0_41 = arith.constant 0 : index
    %c0_42 = arith.constant 0 : index
    %89 = vector.load %arg7[%c0_41, %c0_42] : memref<16x24xf32, #tpu.memory_space<vmem>>, vector<16x24xf32>
    %90 = tpu.concatenate %83, %88, %78 in 0 : vector<8x256xf32>, vector<8x256xf32>, vector<8x256xf32> -> vector<24x256xf32>
    %cst_43 = arith.constant dense<0.000000e+00> : vector<16x256xf32>
    %91 = tpu.matmul %89, %90, %cst_43 {dimension_numbers = #tpu.dot_dimension_numbers<[1], [0], [0], [1], [0, 0, 1, 1], [], []>} : vector<16x24xf32>, vector<24x256xf32>, vector<16x256xf32> -> vector<16x256xf32>
    %cst_44 = arith.constant 0.000000e+00 : f32
    %92 = vector.broadcast %cst_44 : f32 to vector<16x256xf32>
    %93 = arith.maximumf %91, %92 : vector<16x256xf32>
    %c8_i32_45 = arith.constant 8 : i32
    %94 = tpu.dynamic_rotate %93 by %c8_i32_45 dim 1 : vector<16x256xf32>, i32 -> vector<16x256xf32>
    %cst_46 = arith.constant 0.000000e+00 : f32
    %95 = vector.shape_cast %9 : vector<1x256xi1> to vector<1x256xi1>
    %96 = vector.broadcast %95 : vector<1x256xi1> to vector<16x256xi1>
    %97 = vector.broadcast %cst_46 : f32 to vector<16x256xf32>
    %98 = arith.select %96, %94, %97 : vector<16x256xi1>, vector<16x256xf32>
    %c4_i32_47 = arith.constant 4 : i32
    %99 = tpu.dynamic_rotate %93 by %c4_i32_47 dim 1 : vector<16x256xf32>, i32 -> vector<16x256xf32>
    %cst_48 = arith.constant 0.000000e+00 : f32
    %100 = vector.shape_cast %7 : vector<1x256xi1> to vector<1x256xi1>
    %101 = vector.broadcast %100 : vector<1x256xi1> to vector<16x256xi1>
    %102 = vector.broadcast %cst_48 : f32 to vector<16x256xf32>
    %103 = arith.select %101, %99, %102 : vector<16x256xi1>, vector<16x256xf32>
    %c0_49 = arith.constant 0 : index
    %c0_50 = arith.constant 0 : index
    %104 = vector.load %arg8[%c0_49, %c0_50] : memref<16x48xf32, #tpu.memory_space<vmem>>, vector<16x48xf32>
    %105 = tpu.concatenate %98, %103, %93 in 0 : vector<16x256xf32>, vector<16x256xf32>, vector<16x256xf32> -> vector<48x256xf32>
    %cst_51 = arith.constant dense<0.000000e+00> : vector<16x256xf32>
    %106 = tpu.matmul %104, %105, %cst_51 {dimension_numbers = #tpu.dot_dimension_numbers<[1], [0], [0], [1], [0, 0, 1, 1], [], []>} : vector<16x48xf32>, vector<48x256xf32>, vector<16x256xf32> -> vector<16x256xf32>
    %cst_52 = arith.constant 0.000000e+00 : f32
    %107 = vector.broadcast %cst_52 : f32 to vector<16x256xf32>
    %108 = arith.maximumf %106, %107 : vector<16x256xf32>
    %c0_53 = arith.constant 0 : index
    %c0_54 = arith.constant 0 : index
    %109 = vector.load %arg9[%c0_53, %c0_54] : memref<16x8xf32, #tpu.memory_space<vmem>>, vector<16x8xf32>
    %cst_55 = arith.constant dense<0.000000e+00> : vector<16x256xf32>
    %110 = tpu.matmul %109, %78, %cst_55 {dimension_numbers = #tpu.dot_dimension_numbers<[1], [0], [0], [1], [0, 0, 1, 1], [], []>} : vector<16x8xf32>, vector<8x256xf32>, vector<16x256xf32> -> vector<16x256xf32>
    %111 = arith.addf %108, %110 : vector<16x256xf32>
    %cst_56 = arith.constant 0.000000e+00 : f32
    %112 = vector.broadcast %cst_56 : f32 to vector<16x256xf32>
    %113 = arith.maximumf %111, %112 : vector<16x256xf32>
    %c0_57 = arith.constant 0 : index
    %c0_58 = arith.constant 0 : index
    %114 = vector.load %arg10[%c0_57, %c0_58] : memref<16x256xf32, #tpu.memory_space<vmem>>, vector<16x256xf32>
    tpu.vector_store %arg10[%c0_57, %c0_58], %113 {strides = array<i32>} : memref<16x256xf32, #tpu.memory_space<vmem>>, vector<16x256xf32>,
    return
  }
  func.func @transform_0(%arg0: i32) -> (i32, i32) {
    %c0_i32 = arith.constant 0 : i32
    %c0_i32_0 = arith.constant 0 : i32
    return %c0_i32, %arg0 : i32, i32
  }
  func.func @transform_1(%arg0: i32) -> (i32, i32) {
    %c0_i32 = arith.constant 0 : i32
    %c0_i32_0 = arith.constant 0 : i32
    %c0_i32_1 = arith.constant 0 : i32
    return %c0_i32, %c0_i32_0 : i32, i32
  }
  func.func @transform_2(%arg0: i32) -> (i32, i32) {
    %c0_i32 = arith.constant 0 : i32
    %c0_i32_0 = arith.constant 0 : i32
    %c0_i32_1 = arith.constant 0 : i32
    return %c0_i32, %c0_i32_0 : i32, i32
  }
  func.func @transform_3(%arg0: i32) -> (i32, i32) {
    %c0_i32 = arith.constant 0 : i32
    %c0_i32_0 = arith.constant 0 : i32
    %c0_i32_1 = arith.constant 0 : i32
    return %c0_i32, %c0_i32_0 : i32, i32
  }
  func.func @transform_4(%arg0: i32) -> (i32, i32) {
    %c0_i32 = arith.constant 0 : i32
    %c0_i32_0 = arith.constant 0 : i32
    %c0_i32_1 = arith.constant 0 : i32
    return %c0_i32, %c0_i32_0 : i32, i32
  }
  func.func @transform_5(%arg0: i32) -> (i32, i32) {
    %c0_i32 = arith.constant 0 : i32
    %c0_i32_0 = arith.constant 0 : i32
    %c0_i32_1 = arith.constant 0 : i32
    return %c0_i32, %c0_i32_0 : i32, i32
  }
  func.func @transform_6(%arg0: i32) -> (i32, i32) {
    %c0_i32 = arith.constant 0 : i32
    %c0_i32_0 = arith.constant 0 : i32
    %c0_i32_1 = arith.constant 0 : i32
    return %c0_i32, %c0_i32_0 : i32, i32
  }
  func.func @transform_7(%arg0: i32) -> (i32, i32) {
    %c0_i32 = arith.constant 0 : i32
    %c0_i32_0 = arith.constant 0 : i32
    %c0_i32_1 = arith.constant 0 : i32
    return %c0_i32, %c0_i32_0 : i32, i32
  }
  func.func @transform_8(%arg0: i32) -> (i32, i32) {
    %c0_i32 = arith.constant 0 : i32
    %c0_i32_0 = arith.constant 0 : i32
    %c0_i32_1 = arith.constant 0 : i32
    return %c0_i32, %c0_i32_0 : i32, i32
  }
  func.func @transform_9(%arg0: i32) -> (i32, i32) {
    %c0_i32 = arith.constant 0 : i32
    %c0_i32_0 = arith.constant 0 : i32
    return %c0_i32, %arg0 : i32, i32
  }
}

module attributes {stable_mosaic.version = 11 : i64} {
  func.func @_tcnet_kernel(%arg0: i32, %arg1: memref<8x256xf32, #tpu.memory_space<vmem>>, %arg2: memref<8x24xf32, #tpu.memory_space<vmem>>, %arg3: memref<8x24xf32, #tpu.memory_space<vmem>>, %arg4: memref<8x8xf32, #tpu.memory_space<vmem>>, %arg5: memref<8x24xf32, #tpu.memory_space<vmem>>, %arg6: memref<8x24xf32, #tpu.memory_space<vmem>>, %arg7: memref<16x24xf32, #tpu.memory_space<vmem>>, %arg8: memref<16x48xf32, #tpu.memory_space<vmem>>, %arg9: memref<16x8xf32, #tpu.memory_space<vmem>>, %arg10: memref<16x256xf32, #tpu.memory_space<vmem>>) attributes {dimension_semantics = [#tpu.dimension_semantics<parallel>], iteration_bounds = array<i64: 2>, scalar_prefetch = 0 : i64, scratch_operands = 0 : i64, tpu.core_type = #tpu.core_type<tc>, window_params = [{transform_indices = @transform_0, window_bounds = array<i64: 8, 256>}, {pipeline_mode = #tpu.pipeline_mode<synchronous>, transform_indices = @transform_1, window_bounds = array<i64: 8, 24>}, {pipeline_mode = #tpu.pipeline_mode<synchronous>, transform_indices = @transform_2, window_bounds = array<i64: 8, 24>}, {pipeline_mode = #tpu.pipeline_mode<synchronous>, transform_indices = @transform_3, window_bounds = array<i64: 8, 8>}, {pipeline_mode = #tpu.pipeline_mode<synchronous>, transform_indices = @transform_4, window_bounds = array<i64: 8, 24>}, {pipeline_mode = #tpu.pipeline_mode<synchronous>, transform_indices = @transform_5, window_bounds = array<i64: 8, 24>}, {pipeline_mode = #tpu.pipeline_mode<synchronous>, transform_indices = @transform_6, window_bounds = array<i64: 16, 24>}, {pipeline_mode = #tpu.pipeline_mode<synchronous>, transform_indices = @transform_7, window_bounds = array<i64: 16, 48>}, {pipeline_mode = #tpu.pipeline_mode<synchronous>, transform_indices = @transform_8, window_bounds = array<i64: 16, 8>}, {transform_indices = @transform_9, window_bounds = array<i64: 16, 256>}]} {
    %0 = tpu.iota {dimensions = array<i32: 1>} : vector<1x128xi32>
    %1 = tpu.concatenate %0, %0 in 1 : vector<1x128xi32>, vector<1x128xi32> -> vector<1x256xi32>
    %c1_i32 = arith.constant 1 : i32
    %2 = vector.broadcast %c1_i32 : i32 to vector<1x256xi32>
    %3 = arith.cmpi sge, %1, %2 : vector<1x256xi32>
    %c2_i32 = arith.constant 2 : i32
    %4 = vector.broadcast %c2_i32 : i32 to vector<1x256xi32>
    %5 = arith.cmpi sge, %1, %4 : vector<1x256xi32>
    %c4_i32 = arith.constant 4 : i32
    %6 = vector.broadcast %c4_i32 : i32 to vector<1x256xi32>
    %7 = arith.cmpi sge, %1, %6 : vector<1x256xi32>
    %c8_i32 = arith.constant 8 : i32
    %8 = vector.broadcast %c8_i32 : i32 to vector<1x256xi32>
    %9 = arith.cmpi sge, %1, %8 : vector<1x256xi32>
    %c0 = arith.constant 0 : index
    %c0_0 = arith.constant 0 : index
    %10 = vector.load %arg1[%c0, %c0_0] : memref<8x256xf32, #tpu.memory_space<vmem>>, vector<8x256xf32>
    %c2_i32_1 = arith.constant 2 : i32
    %11 = tpu.dynamic_rotate %10 by %c2_i32_1 dim 1 : vector<8x256xf32>, i32 -> vector<8x256xf32>
    %cst = arith.constant 0.000000e+00 : f32
    %12 = vector.shape_cast %5 : vector<1x256xi1> to vector<1x256xi1>
    %13 = vector.broadcast %12 : vector<1x256xi1> to vector<8x256xi1>
    %14 = vector.broadcast %cst : f32 to vector<8x256xf32>
    %15 = arith.select %13, %11, %14 : vector<8x256xi1>, vector<8x256xf32>
    %c1_i32_2 = arith.constant 1 : i32
    %16 = tpu.dynamic_rotate %10 by %c1_i32_2 dim 1 : vector<8x256xf32>, i32 -> vector<8x256xf32>
    %cst_3 = arith.constant 0.000000e+00 : f32
    %17 = vector.shape_cast %3 : vector<1x256xi1> to vector<1x256xi1>
    %18 = vector.broadcast %17 : vector<1x256xi1> to vector<8x256xi1>
    %19 = vector.broadcast %cst_3 : f32 to vector<8x256xf32>
    %20 = arith.select %18, %16, %19 : vector<8x256xi1>, vector<8x256xf32>
    %c0_4 = arith.constant 0 : index
    %c0_5 = arith.constant 0 : index
    %21 = vector.load %arg2[%c0_4, %c0_5] : memref<8x24xf32, #tpu.memory_space<vmem>>, vector<8x24xf32>
    %22 = tpu.concatenate %15, %20, %10 in 0 : vector<8x256xf32>, vector<8x256xf32>, vector<8x256xf32> -> vector<24x256xf32>
    %cst_6 = arith.constant dense<0.000000e+00> : vector<8x256xf32>
    %23 = tpu.matmul %21, %22, %cst_6 {dimension_numbers = #tpu.dot_dimension_numbers<[1], [0], [0], [1], [0, 0, 1, 1], [], []>} : vector<8x24xf32>, vector<24x256xf32>, vector<8x256xf32> -> vector<8x256xf32>
    %cst_7 = arith.constant 0.000000e+00 : f32
    %24 = vector.broadcast %cst_7 : f32 to vector<8x256xf32>
    %25 = arith.maximumf %23, %24 : vector<8x256xf32>
    %c2_i32_8 = arith.constant 2 : i32
    %26 = tpu.dynamic_rotate %25 by %c2_i32_8 dim 1 : vector<8x256xf32>, i32 -> vector<8x256xf32>
    %cst_9 = arith.constant 0.000000e+00 : f32
    %27 = vector.shape_cast %5 : vector<1x256xi1> to vector<1x256xi1>
    %28 = vector.broadcast %27 : vector<1x256xi1> to vector<8x256xi1>
    %29 = vector.broadcast %cst_9 : f32 to vector<8x256xf32>
    %30 = arith.select %28, %26, %29 : vector<8x256xi1>, vector<8x256xf32>
    %c1_i32_10 = arith.constant 1 : i32
    %31 = tpu.dynamic_rotate %25 by %c1_i32_10 dim 1 : vector<8x256xf32>, i32 -> vector<8x256xf32>
    %cst_11 = arith.constant 0.000000e+00 : f32
    %32 = vector.shape_cast %3 : vector<1x256xi1> to vector<1x256xi1>
    %33 = vector.broadcast %32 : vector<1x256xi1> to vector<8x256xi1>
    %34 = vector.broadcast %cst_11 : f32 to vector<8x256xf32>
    %35 = arith.select %33, %31, %34 : vector<8x256xi1>, vector<8x256xf32>
    %c0_12 = arith.constant 0 : index
    %c0_13 = arith.constant 0 : index
    %36 = vector.load %arg3[%c0_12, %c0_13] : memref<8x24xf32, #tpu.memory_space<vmem>>, vector<8x24xf32>
    %37 = tpu.concatenate %30, %35, %25 in 0 : vector<8x256xf32>, vector<8x256xf32>, vector<8x256xf32> -> vector<24x256xf32>
    %cst_14 = arith.constant dense<0.000000e+00> : vector<8x256xf32>
    %38 = tpu.matmul %36, %37, %cst_14 {dimension_numbers = #tpu.dot_dimension_numbers<[1], [0], [0], [1], [0, 0, 1, 1], [], []>} : vector<8x24xf32>, vector<24x256xf32>, vector<8x256xf32> -> vector<8x256xf32>
    %cst_15 = arith.constant 0.000000e+00 : f32
    %39 = vector.broadcast %cst_15 : f32 to vector<8x256xf32>
    %40 = arith.maximumf %38, %39 : vector<8x256xf32>
    %c0_16 = arith.constant 0 : index
    %c0_17 = arith.constant 0 : index
    %41 = vector.load %arg4[%c0_16, %c0_17] : memref<8x8xf32, #tpu.memory_space<vmem>>, vector<8x8xf32>
    %cst_18 = arith.constant dense<0.000000e+00> : vector<8x256xf32>
    %42 = tpu.matmul %41, %10, %cst_18 {dimension_numbers = #tpu.dot_dimension_numbers<[1], [0], [0], [1], [0, 0, 1, 1], [], []>} : vector<8x8xf32>, vector<8x256xf32>, vector<8x256xf32> -> vector<8x256xf32>
    %43 = arith.addf %40, %42 : vector<8x256xf32>
    %cst_19 = arith.constant 0.000000e+00 : f32
    %44 = vector.broadcast %cst_19 : f32 to vector<8x256xf32>
    %45 = arith.maximumf %43, %44 : vector<8x256xf32>
    %c4_i32_20 = arith.constant 4 : i32
    %46 = tpu.dynamic_rotate %45 by %c4_i32_20 dim 1 : vector<8x256xf32>, i32 -> vector<8x256xf32>
    %cst_21 = arith.constant 0.000000e+00 : f32
    %47 = vector.shape_cast %7 : vector<1x256xi1> to vector<1x256xi1>
    %48 = vector.broadcast %47 : vector<1x256xi1> to vector<8x256xi1>
    %49 = vector.broadcast %cst_21 : f32 to vector<8x256xf32>
    %50 = arith.select %48, %46, %49 : vector<8x256xi1>, vector<8x256xf32>
    %c2_i32_22 = arith.constant 2 : i32
    %51 = tpu.dynamic_rotate %45 by %c2_i32_22 dim 1 : vector<8x256xf32>, i32 -> vector<8x256xf32>
    %cst_23 = arith.constant 0.000000e+00 : f32
    %52 = vector.shape_cast %5 : vector<1x256xi1> to vector<1x256xi1>
    %53 = vector.broadcast %52 : vector<1x256xi1> to vector<8x256xi1>
    %54 = vector.broadcast %cst_23 : f32 to vector<8x256xf32>
    %55 = arith.select %53, %51, %54 : vector<8x256xi1>, vector<8x256xf32>
    %c0_24 = arith.constant 0 : index
    %c0_25 = arith.constant 0 : index
    %56 = vector.load %arg5[%c0_24, %c0_25] : memref<8x24xf32, #tpu.memory_space<vmem>>, vector<8x24xf32>
    %57 = tpu.concatenate %50, %55, %45 in 0 : vector<8x256xf32>, vector<8x256xf32>, vector<8x256xf32> -> vector<24x256xf32>
    %cst_26 = arith.constant dense<0.000000e+00> : vector<8x256xf32>
    %58 = tpu.matmul %56, %57, %cst_26 {dimension_numbers = #tpu.dot_dimension_numbers<[1], [0], [0], [1], [0, 0, 1, 1], [], []>} : vector<8x24xf32>, vector<24x256xf32>, vector<8x256xf32> -> vector<8x256xf32>
    %cst_27 = arith.constant 0.000000e+00 : f32
    %59 = vector.broadcast %cst_27 : f32 to vector<8x256xf32>
    %60 = arith.maximumf %58, %59 : vector<8x256xf32>
    %c4_i32_28 = arith.constant 4 : i32
    %61 = tpu.dynamic_rotate %60 by %c4_i32_28 dim 1 : vector<8x256xf32>, i32 -> vector<8x256xf32>
    %cst_29 = arith.constant 0.000000e+00 : f32
    %62 = vector.shape_cast %7 : vector<1x256xi1> to vector<1x256xi1>
    %63 = vector.broadcast %62 : vector<1x256xi1> to vector<8x256xi1>
    %64 = vector.broadcast %cst_29 : f32 to vector<8x256xf32>
    %65 = arith.select %63, %61, %64 : vector<8x256xi1>, vector<8x256xf32>
    %c2_i32_30 = arith.constant 2 : i32
    %66 = tpu.dynamic_rotate %60 by %c2_i32_30 dim 1 : vector<8x256xf32>, i32 -> vector<8x256xf32>
    %cst_31 = arith.constant 0.000000e+00 : f32
    %67 = vector.shape_cast %5 : vector<1x256xi1> to vector<1x256xi1>
    %68 = vector.broadcast %67 : vector<1x256xi1> to vector<8x256xi1>
    %69 = vector.broadcast %cst_31 : f32 to vector<8x256xf32>
    %70 = arith.select %68, %66, %69 : vector<8x256xi1>, vector<8x256xf32>
    %c0_32 = arith.constant 0 : index
    %c0_33 = arith.constant 0 : index
    %71 = vector.load %arg6[%c0_32, %c0_33] : memref<8x24xf32, #tpu.memory_space<vmem>>, vector<8x24xf32>
    %72 = tpu.concatenate %65, %70, %60 in 0 : vector<8x256xf32>, vector<8x256xf32>, vector<8x256xf32> -> vector<24x256xf32>
    %cst_34 = arith.constant dense<0.000000e+00> : vector<8x256xf32>
    %73 = tpu.matmul %71, %72, %cst_34 {dimension_numbers = #tpu.dot_dimension_numbers<[1], [0], [0], [1], [0, 0, 1, 1], [], []>} : vector<8x24xf32>, vector<24x256xf32>, vector<8x256xf32> -> vector<8x256xf32>
    %cst_35 = arith.constant 0.000000e+00 : f32
    %74 = vector.broadcast %cst_35 : f32 to vector<8x256xf32>
    %75 = arith.maximumf %73, %74 : vector<8x256xf32>
    %76 = arith.addf %75, %45 : vector<8x256xf32>
    %cst_36 = arith.constant 0.000000e+00 : f32
    %77 = vector.broadcast %cst_36 : f32 to vector<8x256xf32>
    %78 = arith.maximumf %76, %77 : vector<8x256xf32>
    %c8_i32_37 = arith.constant 8 : i32
    %79 = tpu.dynamic_rotate %78 by %c8_i32_37 dim 1 : vector<8x256xf32>, i32 -> vector<8x256xf32>
    %cst_38 = arith.constant 0.000000e+00 : f32
    %80 = vector.shape_cast %9 : vector<1x256xi1> to vector<1x256xi1>
    %81 = vector.broadcast %80 : vector<1x256xi1> to vector<8x256xi1>
    %82 = vector.broadcast %cst_38 : f32 to vector<8x256xf32>
    %83 = arith.select %81, %79, %82 : vector<8x256xi1>, vector<8x256xf32>
    %c4_i32_39 = arith.constant 4 : i32
    %84 = tpu.dynamic_rotate %78 by %c4_i32_39 dim 1 : vector<8x256xf32>, i32 -> vector<8x256xf32>
    %cst_40 = arith.constant 0.000000e+00 : f32
    %85 = vector.shape_cast %7 : vector<1x256xi1> to vector<1x256xi1>
    %86 = vector.broadcast %85 : vector<1x256xi1> to vector<8x256xi1>
    %87 = vector.broadcast %cst_40 : f32 to vector<8x256xf32>
    %88 = arith.select %86, %84, %87 : vector<8x256xi1>, vector<8x256xf32>
    %c0_41 = arith.constant 0 : index
    %c0_42 = arith.constant 0 : index
    %89 = vector.load %arg7[%c0_41, %c0_42] : memref<16x24xf32, #tpu.memory_space<vmem>>, vector<16x24xf32>
    %90 = tpu.concatenate %83, %88, %78 in 0 : vector<8x256xf32>, vector<8x256xf32>, vector<8x256xf32> -> vector<24x256xf32>
    %cst_43 = arith.constant dense<0.000000e+00> : vector<16x256xf32>
    %91 = tpu.matmul %89, %90, %cst_43 {dimension_numbers = #tpu.dot_dimension_numbers<[1], [0], [0], [1], [0, 0, 1, 1], [], []>} : vector<16x24xf32>, vector<24x256xf32>, vector<16x256xf32> -> vector<16x256xf32>
    %cst_44 = arith.constant 0.000000e+00 : f32
    %92 = vector.broadcast %cst_44 : f32 to vector<16x256xf32>
    %93 = arith.maximumf %91, %92 : vector<16x256xf32>
    %c8_i32_45 = arith.constant 8 : i32
    %94 = tpu.dynamic_rotate %93 by %c8_i32_45 dim 1 : vector<16x256xf32>, i32 -> vector<16x256xf32>
    %cst_46 = arith.constant 0.000000e+00 : f32
    %95 = vector.shape_cast %9 : vector<1x256xi1> to vector<1x256xi1>
    %96 = vector.broadcast %95 : vector<1x256xi1> to vector<16x256xi1>
    %97 = vector.broadcast %cst_46 : f32 to vector<16x256xf32>
    %98 = arith.select %96, %94, %97 : vector<16x256xi1>, vector<16x256xf32>
    %c4_i32_47 = arith.constant 4 : i32
    %99 = tpu.dynamic_rotate %93 by %c4_i32_47 dim 1 : vector<16x256xf32>, i32 -> vector<16x256xf32>
    %cst_48 = arith.constant 0.000000e+00 : f32
    %100 = vector.shape_cast %7 : vector<1x256xi1> to vector<1x256xi1>
    %101 = vector.broadcast %100 : vector<1x256xi1> to vector<16x256xi1>
    %102 = vector.broadcast %cst_48 : f32 to vector<16x256xf32>
    %103 = arith.select %101, %99, %102 : vector<16x256xi1>, vector<16x256xf32>
    %c0_49 = arith.constant 0 : index
    %c0_50 = arith.constant 0 : index
    %104 = vector.load %arg8[%c0_49, %c0_50] : memref<16x48xf32, #tpu.memory_space<vmem>>, vector<16x48xf32>
    %105 = tpu.concatenate %98, %103, %93 in 0 : vector<16x256xf32>, vector<16x256xf32>, vector<16x256xf32> -> vector<48x256xf32>
    %cst_51 = arith.constant dense<0.000000e+00> : vector<16x256xf32>
    %106 = tpu.matmul %104, %105, %cst_51 {dimension_numbers = #tpu.dot_dimension_numbers<[1], [0], [0], [1], [0, 0, 1, 1], [], []>} : vector<16x48xf32>, vector<48x256xf32>, vector<16x256xf32> -> vector<16x256xf32>
    %cst_52 = arith.constant 0.000000e+00 : f32
    %107 = vector.broadcast %cst_52 : f32 to vector<16x256xf32>
    %108 = arith.maximumf %106, %107 : vector<16x256xf32>
    %c0_53 = arith.constant 0 : index
    %c0_54 = arith.constant 0 : index
    %109 = vector.load %arg9[%c0_53, %c0_54] : memref<16x8xf32, #tpu.memory_space<vmem>>, vector<16x8xf32>
    %cst_55 = arith.constant dense<0.000000e+00> : vector<16x256xf32>
    %110 = tpu.matmul %109, %78, %cst_55 {dimension_numbers = #tpu.dot_dimension_numbers<[1], [0], [0], [1], [0, 0, 1, 1], [], []>} : vector<16x8xf32>, vector<8x256xf32>, vector<16x256xf32> -> vector<16x256xf32>
    %111 = arith.addf %108, %110 : vector<16x256xf32>
    %cst_56 = arith.constant 0.000000e+00 : f32
    %112 = vector.broadcast %cst_56 : f32 to vector<16x256xf32>
    %113 = arith.maximumf %111, %112 : vector<16x256xf32>
    %c0_57 = arith.constant 0 : index
    %c0_58 = arith.constant 0 : index
    %114 = vector.load %arg10[%c0_57, %c0_58] : memref<16x256xf32, #tpu.memory_space<vmem>>, vector<16x256xf32>
    tpu.vector_store %arg10[%c0_57, %c0_58], %113 {strides = array<i32>} : memref<16x256xf32, #tpu.memory_space<vmem>>, vector<16x256xf32>,
    return
  }
  func.func @transform_0(%arg0: i32) -> (i32, i32) {
    %c0_i32 = arith.constant 0 : i32
    %c0_i32_0 = arith.constant 0 : i32
    return %c0_i32, %arg0 : i32, i32
  }
  func.func @transform_1(%arg0: i32) -> (i32, i32) {
    %c0_i32 = arith.constant 0 : i32
    %c0_i32_0 = arith.constant 0 : i32
    %c0_i32_1 = arith.constant 0 : i32
    return %c0_i32, %c0_i32_0 : i32, i32
  }
  func.func @transform_2(%arg0: i32) -> (i32, i32) {
    %c0_i32 = arith.constant 0 : i32
    %c0_i32_0 = arith.constant 0 : i32
    %c0_i32_1 = arith.constant 0 : i32
    return %c0_i32, %c0_i32_0 : i32, i32
  }
  func.func @transform_3(%arg0: i32) -> (i32, i32) {
    %c0_i32 = arith.constant 0 : i32
    %c0_i32_0 = arith.constant 0 : i32
    %c0_i32_1 = arith.constant 0 : i32
    return %c0_i32, %c0_i32_0 : i32, i32
  }
  func.func @transform_4(%arg0: i32) -> (i32, i32) {
    %c0_i32 = arith.constant 0 : i32
    %c0_i32_0 = arith.constant 0 : i32
    %c0_i32_1 = arith.constant 0 : i32
    return %c0_i32, %c0_i32_0 : i32, i32
  }
  func.func @transform_5(%arg0: i32) -> (i32, i32) {
    %c0_i32 = arith.constant 0 : i32
    %c0_i32_0 = arith.constant 0 : i32
    %c0_i32_1 = arith.constant 0 : i32
    return %c0_i32, %c0_i32_0 : i32, i32
  }
  func.func @transform_6(%arg0: i32) -> (i32, i32) {
    %c0_i32 = arith.constant 0 : i32
    %c0_i32_0 = arith.constant 0 : i32
    %c0_i32_1 = arith.constant 0 : i32
    return %c0_i32, %c0_i32_0 : i32, i32
  }
  func.func @transform_7(%arg0: i32) -> (i32, i32) {
    %c0_i32 = arith.constant 0 : i32
    %c0_i32_0 = arith.constant 0 : i32
    %c0_i32_1 = arith.constant 0 : i32
    return %c0_i32, %c0_i32_0 : i32, i32
  }
  func.func @transform_8(%arg0: i32) -> (i32, i32) {
    %c0_i32 = arith.constant 0 : i32
    %c0_i32_0 = arith.constant 0 : i32
    %c0_i32_1 = arith.constant 0 : i32
    return %c0_i32, %c0_i32_0 : i32, i32
  }
  func.func @transform_9(%arg0: i32) -> (i32, i32) {
    %c0_i32 = arith.constant 0 : i32
    %c0_i32_0 = arith.constant 0 : i32
    return %c0_i32, %arg0 : i32, i32
  }
}

</mosaic_0001>

<llo_original>
// kernel: tpu_custom_call.1
$region0: #{tpu_custom_call.1}
  #allocation0 [shape = 'u32[]', space=smem, size = 0x4, offset = 0x4, fixed_abs, tag = 'smem constant byte address 0x4 - core index']
  #allocation1 [shape = 'u32[144,128]{1,0:T(1,128)}', space=vmem, size = 0x12000, scoped, tag = 'internal scratch']
  %s0 = inlined_call_operand.hbm [shape: f32[8,512], index: 0, kind: input, shape index: {}]
  %s1 = inlined_call_operand.hbm [shape: f32[8,24], index: 1, kind: input, shape index: {}]
  %s2 = inlined_call_operand.hbm [shape: f32[8,24], index: 2, kind: input, shape index: {}]
  %s3 = inlined_call_operand.hbm [shape: f32[8,8], index: 3, kind: input, shape index: {}]
  %s4 = inlined_call_operand.hbm [shape: f32[8,24], index: 4, kind: input, shape index: {}]
  %s5 = inlined_call_operand.hbm [shape: f32[8,24], index: 5, kind: input, shape index: {}]
  %s6 = inlined_call_operand.vmem [shape: f32[16,24], index: 6, kind: input, shape index: {}]
  %s7 = inlined_call_operand.vmem [shape: f32[16,48], index: 7, kind: input, shape index: {}]
  %s8 = inlined_call_operand.vmem [shape: f32[16,8], index: 8, kind: input, shape index: {}]
  %s9 = inlined_call_operand.hbm [shape: f32[16,512], index: 9, kind: output, shape index: {}]
  %s10 = sld [smem:[#allocation0]]
  $region93: #{tpu_custom_call.1} parent=0
    _
  %s12 = ssub.s32 1, %s10
  %s13 = scalar_select 0, %s12, %s10
  $region1: #{tpu_custom_call.1} parent=0
    #allocation2 [shape = 'u8[16384]{0}', space=vmem, size = 0x4000, scoped, tag = 'input window, operand 0']
    #allocation3 [shape = 's32[2]{0}', space=sflag, size = 0x8, scoped, tag = 'scoped memory for tpu_custom_call.1']
    #allocation4 [shape = 's32[2]{0}', space=sflag, size = 0x8, scoped, tag = 'scoped memory for tpu_custom_call.1']
    #allocation5 [shape = 'u8[4096]{0}', space=vmem, size = 0x1000, scoped, tag = 'input window, operand 1, single buffered']
    #allocation6 [shape = 's32[1]{0}', space=sflag, size = 0x4, scoped, tag = 'scoped memory for tpu_custom_call.1']
    #allocation7 [shape = 'u8[4096]{0}', space=vmem, size = 0x1000, scoped, tag = 'input window, operand 2, single buffered']
    #allocation8 [shape = 'u8[4096]{0}', space=vmem, size = 0x1000, scoped, tag = 'input window, operand 3, single buffered']
    #allocation9 [shape = 's32[1]{0}', space=sflag, size = 0x4, scoped, tag = 'scoped memory for tpu_custom_call.1']
    #allocation10 [shape = 'u8[4096]{0}', space=vmem, size = 0x1000, scoped, tag = 'input window, operand 4, single buffered']
    #allocation11 [shape = 'u8[4096]{0}', space=vmem, size = 0x1000, scoped, tag = 'input window, operand 5, single buffered']
    #allocation12 [shape = 's32[1]{0}', space=sflag, size = 0x4, scoped, tag = 'scoped memory for tpu_custom_call.1']
    #allocation13 [shape = 'u8[32768]{0}', space=vmem, size = 0x8000, scoped, tag = 'output window, operand 0']
    %14 = vsyncpa [#allocation3], 0
    %s15 = scalar_lea.sflag [#allocation3], 1
    %16 = vsyncpa %s15, 0
    %17 = vsyncpa [#allocation6], 0
    %18 = vsyncpa [#allocation9], 0
    %19 = vsyncpa [#allocation12], 0
    %20 = vsyncpa [#allocation4], 0
    %s21 = scalar_lea.sflag [#allocation4], 1
    %22 = vsyncpa %s21, 0
    loop: start=0, step=1, limit=4
    $region2: #{tpu_custom_call.1} parent=1 // loop_pre_header
      _
    $region3: #{tpu_custom_call.1} parent=1 // loop_header
      %s24 = sphi 0, %s28
      %p25 = scmp.ge.s32.totalorder %s24, 4
      %s34 = sphi 0, %s36
      %s37 = sphi 0, %s34
      %s38 = sphi 0, %s37
      %s54 = sphi 0, %s38
      %s58 = sphi 0, %s58
      %s60 = sphi 0, %s58
      %s61 = sphi 0, %s60
      %s75 = sphi 0, %s61
      %s79 = sphi 0, %s79
      %s81 = sphi 0, %s79
      %s82 = sphi 0, %s81
      %s96 = sphi 0, %s82
      %s100 = sphi 0, %s100
      %s102 = sphi 0, %s100
      %s103 = sphi 0, %s102
      %s117 = sphi 0, %s103
      %s121 = sphi 0, %s121
      %s123 = sphi 0, %s121
      %s124 = sphi 0, %s123
      %s138 = sphi 0, %s124
      %s142 = sphi 0, %s142
      %s144 = sphi 0, %s142
      %s145 = sphi 0, %s144
      %s159 = sphi 0, %s145
      %s163 = sphi 0, %s163
      %s165 = sphi 0, %s163
      %s166 = sphi 0, %s165
      %s180 = sphi 0, %s166
      %s184 = sphi 0, %s184
      %s186 = sphi 0, %s184
      %s187 = sphi 0, %s186
      %s201 = sphi 0, %s187
      %s205 = sphi 0, %s205
      %s207 = sphi 0, %s205
      %s208 = sphi 0, %s207
      %s222 = sphi 0, %s208
      %s228 = sphi 0, %s230
      %s231 = sphi 0, %s228
      %s232 = sphi 0, %s231
      %s248 = sphi 0, %s232
    $region4: #{tpu_custom_call.1} parent=1 // loop_header_branch
      %27 = sbr.rel (%p25) target = $region8
    $region5: #{tpu_custom_call.1} parent=1 // loop_body
      %s29 = ssub.s32 %s24, 1
      %s30 = ssub.s32 %s24, 2
      %s31 = sadd.s32 %s24, 1
      %s32 = ssub.s32 %s24, %s31
      %p33 = scmp.eq.s32.totalorder %s32, 0
      %s35 = sadd.s32 %s34, 1
      %s36 = scalar_select %p33, %s34, %s35
      %p39 = pneg %p33
      %p40 = scmp.eq.s32.totalorder %s24, 1
      %p41 = por %p39, %p40
      %p42 = scmp.ne.s32.totalorder %s34, %s37
      %p43 = scmp.eq.s32.totalorder %s24, 0
      %p44 = por %p42, %p43
      %p45 = scmp.ne.s32.totalorder %s34, %s37
      %p46 = scmp.eq.s32.totalorder %s29, 1
      %p47 = por %p45, %p46
      %p48 = scmp.ne.s32.totalorder %s37, %s38
      %p49 = scmp.eq.s32.totalorder %s29, 0
      %p50 = por %p48, %p49
      %p51 = scmp.ne.s32.totalorder %s37, %s38
      %p52 = scmp.eq.s32.totalorder %s30, 1
      %p53 = por %p51, %p52
      %p55 = scmp.ne.s32.totalorder %s38, %s54
      %p56 = scmp.eq.s32.totalorder %s30, 0
      %p57 = por %p55, %p56
      %s59 = sadd.s32 %s58, 1
      %p62 = scmp.eq.s32.totalorder %s24, 1
      %p63 = scmp.ne.s32.totalorder %s58, %s60
      %p64 = scmp.eq.s32.totalorder %s24, 0
      %p65 = por %p63, %p64
      %p66 = scmp.ne.s32.totalorder %s58, %s60
      %p67 = scmp.eq.s32.totalorder %s29, 1
      %p68 = por %p66, %p67
      %p69 = scmp.ne.s32.totalorder %s60, %s61
      %p70 = scmp.eq.s32.totalorder %s29, 0
      %p71 = por %p69, %p70
      %p72 = scmp.ne.s32.totalorder %s60, %s61
      %p73 = scmp.eq.s32.totalorder %s30, 1
      %p74 = por %p72, %p73
      %p76 = scmp.ne.s32.totalorder %s61, %s75
      %p77 = scmp.eq.s32.totalorder %s30, 0
      %p78 = por %p76, %p77
      %s80 = sadd.s32 %s79, 1
      %p83 = scmp.eq.s32.totalorder %s24, 1
      %p84 = scmp.ne.s32.totalorder %s79, %s81
      %p85 = scmp.eq.s32.totalorder %s24, 0
      %p86 = por %p84, %p85
      %p87 = scmp.ne.s32.totalorder %s79, %s81
      %p88 = scmp.eq.s32.totalorder %s29, 1
      %p89 = por %p87, %p88
      %p90 = scmp.ne.s32.totalorder %s81, %s82
      %p91 = scmp.eq.s32.totalorder %s29, 0
      %p92 = por %p90, %p91
      %p93 = scmp.ne.s32.totalorder %s81, %s82
      %p94 = scmp.eq.s32.totalorder %s30, 1
      %p95 = por %p93, %p94
      %p97 = scmp.ne.s32.totalorder %s82, %s96
      %p98 = scmp.eq.s32.totalorder %s30, 0
      %p99 = por %p97, %p98
      %s101 = sadd.s32 %s100, 1
      %p104 = scmp.eq.s32.totalorder %s24, 1
      %p105 = scmp.ne.s32.totalorder %s100, %s102
      %p106 = scmp.eq.s32.totalorder %s24, 0
      %p107 = por %p105, %p106
      %p108 = scmp.ne.s32.totalorder %s100, %s102
      %p109 = scmp.eq.s32.totalorder %s29, 1
      %p110 = por %p108, %p109
      %p111 = scmp.ne.s32.totalorder %s102, %s103
      %p112 = scmp.eq.s32.totalorder %s29, 0
      %p113 = por %p111, %p112
      %p114 = scmp.ne.s32.totalorder %s102, %s103
      %p115 = scmp.eq.s32.totalorder %s30, 1
      %p116 = por %p114, %p115
      %p118 = scmp.ne.s32.totalorder %s103, %s117
      %p119 = scmp.eq.s32.totalorder %s30, 0
      %p120 = por %p118, %p119
      %s122 = sadd.s32 %s121, 1
      %p125 = scmp.eq.s32.totalorder %s24, 1
      %p126 = scmp.ne.s32.totalorder %s121, %s123
      %p127 = scmp.eq.s32.totalorder %s24, 0
      %p128 = por %p126, %p127
      %p129 = scmp.ne.s32.totalorder %s121, %s123
      %p130 = scmp.eq.s32.totalorder %s29, 1
      %p131 = por %p129, %p130
      %p132 = scmp.ne.s32.totalorder %s123, %s124
      %p133 = scmp.eq.s32.totalorder %s29, 0
      %p134 = por %p132, %p133
      %p135 = scmp.ne.s32.totalorder %s123, %s124
      %p136 = scmp.eq.s32.totalorder %s30, 1
      %p137 = por %p135, %p136
      %p139 = scmp.ne.s32.totalorder %s124, %s138
      %p140 = scmp.eq.s32.totalorder %s30, 0
      %p141 = por %p139, %p140
      %s143 = sadd.s32 %s142, 1
      %p146 = scmp.eq.s32.totalorder %s24, 1
      %p147 = scmp.ne.s32.totalorder %s142, %s144
      %p148 = scmp.eq.s32.totalorder %s24, 0
      %p149 = por %p147, %p148
      %p150 = scmp.ne.s32.totalorder %s142, %s144
      %p151 = scmp.eq.s32.totalorder %s29, 1
      %p152 = por %p150, %p151
      %p153 = scmp.ne.s32.totalorder %s144, %s145
      %p154 = scmp.eq.s32.totalorder %s29, 0
      %p155 = por %p153, %p154
      %p156 = scmp.ne.s32.totalorder %s144, %s145
      %p157 = scmp.eq.s32.totalorder %s30, 1
      %p158 = por %p156, %p157
      %p160 = scmp.ne.s32.totalorder %s145, %s159
      %p161 = scmp.eq.s32.totalorder %s30, 0
      %p162 = por %p160, %p161
      %s164 = sadd.s32 %s163, 1
      %p167 = scmp.eq.s32.totalorder %s24, 1
      %p168 = scmp.ne.s32.totalorder %s163, %s165
      %p169 = scmp.eq.s32.totalorder %s24, 0
      %p170 = por %p168, %p169
      %p171 = scmp.ne.s32.totalorder %s163, %s165
      %p172 = scmp.eq.s32.totalorder %s29, 1
      %p173 = por %p171, %p172
      %p174 = scmp.ne.s32.totalorder %s165, %s166
      %p175 = scmp.eq.s32.totalorder %s29, 0
      %p176 = por %p174, %p175
      %p177 = scmp.ne.s32.totalorder %s165, %s166
      %p178 = scmp.eq.s32.totalorder %s30, 1
      %p179 = por %p177, %p178
      %p181 = scmp.ne.s32.totalorder %s166, %s180
      %p182 = scmp.eq.s32.totalorder %s30, 0
      %p183 = por %p181, %p182
      %s185 = sadd.s32 %s184, 1
      %p188 = scmp.eq.s32.totalorder %s24, 1
      %p189 = scmp.ne.s32.totalorder %s184, %s186
      %p190 = scmp.eq.s32.totalorder %s24, 0
      %p191 = por %p189, %p190
      %p192 = scmp.ne.s32.totalorder %s184, %s186
      %p193 = scmp.eq.s32.totalorder %s29, 1
      %p194 = por %p192, %p193
      %p195 = scmp.ne.s32.totalorder %s186, %s187
      %p196 = scmp.eq.s32.totalorder %s29, 0
      %p197 = por %p195, %p196
      %p198 = scmp.ne.s32.totalorder %s186, %s187
      %p199 = scmp.eq.s32.totalorder %s30, 1
      %p200 = por %p198, %p199
      %p202 = scmp.ne.s32.totalorder %s187, %s201
      %p203 = scmp.eq.s32.totalorder %s30, 0
      %p204 = por %p202, %p203
      %s206 = sadd.s32 %s205, 1
      %p209 = scmp.eq.s32.totalorder %s24, 1
      %p210 = scmp.ne.s32.totalorder %s205, %s207
      %p211 = scmp.eq.s32.totalorder %s24, 0
      %p212 = por %p210, %p211
      %p213 = scmp.ne.s32.totalorder %s205, %s207
      %p214 = scmp.eq.s32.totalorder %s29, 1
      %p215 = por %p213, %p214
      %p216 = scmp.ne.s32.totalorder %s207, %s208
      %p217 = scmp.eq.s32.totalorder %s29, 0
      %p218 = por %p216, %p217
      %p219 = scmp.ne.s32.totalorder %s207, %s208
      %p220 = scmp.eq.s32.totalorder %s30, 1
      %p221 = por %p219, %p220
      %p223 = scmp.ne.s32.totalorder %s208, %s222
      %p224 = scmp.eq.s32.totalorder %s30, 0
      %p225 = por %p223, %p224
      %s226 = ssub.s32 %s24, %s31
      %p227 = scmp.eq.s32.totalorder %s226, 0
      %s229 = sadd.s32 %s228, 1
      %s230 = scalar_select %p227, %s228, %s229
      %p233 = pneg %p227
      %p234 = scmp.eq.s32.totalorder %s24, 1
      %p235 = por %p233, %p234
      %p236 = scmp.ne.s32.totalorder %s228, %s231
      %p237 = scmp.eq.s32.totalorder %s24, 0
      %p238 = por %p236, %p237
      %p239 = scmp.ne.s32.totalorder %s228, %s231
      %p240 = scmp.eq.s32.totalorder %s29, 1
      %p241 = por %p239, %p240
      %p242 = scmp.ne.s32.totalorder %s231, %s232
      %p243 = scmp.eq.s32.totalorder %s29, 0
      %p244 = por %p242, %p243
      %p245 = scmp.ne.s32.totalorder %s231, %s232
      %p246 = scmp.eq.s32.totalorder %s30, 1
      %p247 = por %p245, %p246
      %p249 = scmp.ne.s32.totalorder %s232, %s248
      %p250 = scmp.eq.s32.totalorder %s30, 0
      %p251 = por %p249, %p250
      %p252 = scmp.le.s32.totalorder 1, %s24
      %p253 = scmp.lt.s32.totalorder %s24, 3
      %p254 = pnand %p252, %p253
      %p255 = pneg %p254
      // Predicated region
      $region9: #{tpu_custom_call.1} parent=5 // pred_check
        _
      $region10: #{tpu_custom_call.1} parent=5 // pred_check_branch
        %257 = sbr.rel (%p254) target = $region12
      $region11: #{tpu_custom_call.1} parent=5 // pred_region
        %s258 = ssub.s32 %s24, 1
        // Predicated region
        $region13: #{tpu_custom_call.1} parent=11 // pred_check
          %p259 = pneg %p71
        $region14: #{tpu_custom_call.1} parent=11 // pred_check_branch
          %261 = sbr.rel (%p259) target = $region16
        $region15: #{tpu_custom_call.1} parent=11 // pred_region
          %s263 = ssub.s32 128, 128
          %264 = vsyncadd [#allocation6], %s263
          %s266 = sshll.u32 [#allocation5], 4
          %s267 = int_to_ptr.vmem [resolvable:$true] %s266
          %269 = dma.hbm_to_vmem [thread:$0]  %s1, 128, %s267, [#allocation6]
        $region16: #{tpu_custom_call.1} parent=11 // pred_fallthru
          _
        // Predicated region
        $region17: #{tpu_custom_call.1} parent=11 // pred_check
          %p270 = pneg %p92
        $region18: #{tpu_custom_call.1} parent=11 // pred_check_branch
          %272 = sbr.rel (%p270) target = $region20
        $region19: #{tpu_custom_call.1} parent=11 // pred_region
          %s274 = ssub.s32 128, 128
          %275 = vsyncadd [#allocation6], %s274
          %s277 = sshll.u32 [#allocation7], 4
          %s278 = int_to_ptr.vmem [resolvable:$true] %s277
          %280 = dma.hbm_to_vmem [thread:$0]  %s2, 128, %s278, [#allocation6]
        $region20: #{tpu_custom_call.1} parent=11 // pred_fallthru
          _
        // Predicated region
        $region21: #{tpu_custom_call.1} parent=11 // pred_check
          %p281 = pneg %p113
        $region22: #{tpu_custom_call.1} parent=11 // pred_check_branch
          %283 = sbr.rel (%p281) target = $region24
        $region23: #{tpu_custom_call.1} parent=11 // pred_region
          %s285 = ssub.s32 128, 128
          %286 = vsyncadd [#allocation9], %s285
          %s288 = sshll.u32 [#allocation8], 4
          %s289 = int_to_ptr.vmem [resolvable:$true] %s288
          %291 = dma.hbm_to_vmem [thread:$0]  %s3, 128, %s289, [#allocation9]
        $region24: #{tpu_custom_call.1} parent=11 // pred_fallthru
          _
        // Predicated region
        $region25: #{tpu_custom_call.1} parent=11 // pred_check
          %p292 = pneg %p134
        $region26: #{tpu_custom_call.1} parent=11 // pred_check_branch
          %294 = sbr.rel (%p292) target = $region28
        $region27: #{tpu_custom_call.1} parent=11 // pred_region
          %s296 = ssub.s32 128, 128
          %297 = vsyncadd [#allocation9], %s296
          %s299 = sshll.u32 [#allocation10], 4
          %s300 = int_to_ptr.vmem [resolvable:$true] %s299
          %302 = dma.hbm_to_vmem [thread:$0]  %s4, 128, %s300, [#allocation9]
        $region28: #{tpu_custom_call.1} parent=11 // pred_fallthru
          _
        // Predicated region
        $region29: #{tpu_custom_call.1} parent=11 // pred_check
          %p303 = pneg %p155
        $region30: #{tpu_custom_call.1} parent=11 // pred_check_branch
          %305 = sbr.rel (%p303) target = $region32
        $region31: #{tpu_custom_call.1} parent=11 // pred_region
          %s307 = ssub.s32 128, 128
          %308 = vsyncadd [#allocation12], %s307
          %s310 = sshll.u32 [#allocation11], 4
          %s311 = int_to_ptr.vmem [resolvable:$true] %s310
          %313 = dma.hbm_to_vmem [thread:$0]  %s5, 128, %s311, [#allocation12]
        $region32: #{tpu_custom_call.1} parent=11 // pred_fallthru
          _
        // Predicated region
        $region33: #{tpu_custom_call.1} parent=11 // pred_check
          %p314 = pneg %p176
        $region34: #{tpu_custom_call.1} parent=11 // pred_check_branch
          %316 = sbr.rel (%p314) target = $region36
        $region35: #{tpu_custom_call.1} parent=11 // pred_region
          _
        $region36: #{tpu_custom_call.1} parent=11 // pred_fallthru
          _
        // Predicated region
        $region37: #{tpu_custom_call.1} parent=11 // pred_check
          %p317 = pneg %p197
        $region38: #{tpu_custom_call.1} parent=11 // pred_check_branch
          %319 = sbr.rel (%p317) target = $region40
        $region39: #{tpu_custom_call.1} parent=11 // pred_region
          _
        $region40: #{tpu_custom_call.1} parent=11 // pred_fallthru
          _
        // Predicated region
        $region41: #{tpu_custom_call.1} parent=11 // pred_check
          %p320 = pneg %p218
        $region42: #{tpu_custom_call.1} parent=11 // pred_check_branch
          %322 = sbr.rel (%p320) target = $region44
        $region43: #{tpu_custom_call.1} parent=11 // pred_region
          _
        $region44: #{tpu_custom_call.1} parent=11 // pred_fallthru
          _
      $region12: #{tpu_custom_call.1} parent=5 // pred_fallthru
        _
      %p323 = scmp.lt.s32.totalorder %s24, 2
      // Predicated region
      $region45: #{tpu_custom_call.1} parent=5 // pred_check
        %p324 = pneg %p323
      $region46: #{tpu_custom_call.1} parent=5 // pred_check_branch
        %326 = sbr.rel (%p324) target = $region48
      $region47: #{tpu_custom_call.1} parent=5 // pred_region
        // Predicated region
        $region49: #{tpu_custom_call.1} parent=47 // pred_check
          %p327 = pneg %p44
        $region50: #{tpu_custom_call.1} parent=47 // pred_check_branch
          %329 = sbr.rel (%p327) target = $region52
        $region51: #{tpu_custom_call.1} parent=47 // pred_region
          %s330 = sand.u32 %s34, 1
          %s331 = scalar_lea.sflag [#allocation3], %s330
          %s332 = sand.u32 %s34, 1
          %s333 = smul.addr %s332, 16
          %s334 = scalar_lea.vmem [#allocation2], %s333
          %s335 = smul.u32 2, %s24
          %s337 = ssub.s32 256, 256
          %338 = vsyncadd %s331, %s337
          %s339 = smul.addr %s335, 128
          %s340 = scalar_lea.hbm %s0, %s339
          %s342 = sshll.u32 %s334, 4
          %s343 = int_to_ptr.vmem [resolvable:$true] %s342
          %345 = dma.hbm_to_vmem [thread:$0]  %s340, 256, %s343, %s331
        $region52: #{tpu_custom_call.1} parent=47 // pred_fallthru
          _
      $region48: #{tpu_custom_call.1} parent=5 // pred_fallthru
        _
      %p346 = scmp.le.s32.totalorder 1, %s24
      %p347 = scmp.lt.s32.totalorder %s24, 3
      %p348 = pnand %p346, %p347
      %p349 = pneg %p348
      // Predicated region
      $region53: #{tpu_custom_call.1} parent=5 // pred_check
        _
      $region54: #{tpu_custom_call.1} parent=5 // pred_check_branch
        %351 = sbr.rel (%p348) target = $region56
      $region55: #{tpu_custom_call.1} parent=5 // pred_region
        %s352 = ssub.s32 %s24, 1
        %s353 = sand.u32 %s37, 1
        %s354 = scalar_lea.sflag [#allocation3], %s353
        %s355 = sand.u32 %s37, 1
        %s356 = smul.addr %s355, 16
        %s357 = scalar_lea.vmem [#allocation2], %s356
        // Predicated region
        $region57: #{tpu_custom_call.1} parent=55 // pred_check
          %p358 = pneg %p50
        $region58: #{tpu_custom_call.1} parent=55 // pred_check_branch
          %360 = sbr.rel (%p358) target = $region60
        $region59: #{tpu_custom_call.1} parent=55 // pred_region
          %361 = dma.done %s354, 256
        $region60: #{tpu_custom_call.1} parent=55 // pred_fallthru
          _
        // Predicated region
        $region61: #{tpu_custom_call.1} parent=55 // pred_check
          %p362 = pneg %p71
        $region62: #{tpu_custom_call.1} parent=55 // pred_check_branch
          %364 = sbr.rel (%p362) target = $region64
        $region63: #{tpu_custom_call.1} parent=55 // pred_region
          %365 = dma.done [#allocation6], 128
        $region64: #{tpu_custom_call.1} parent=55 // pred_fallthru
          _
        // Predicated region
        $region65: #{tpu_custom_call.1} parent=55 // pred_check
          %p366 = pneg %p92
        $region66: #{tpu_custom_call.1} parent=55 // pred_check_branch
          %368 = sbr.rel (%p366) target = $region68
        $region67: #{tpu_custom_call.1} parent=55 // pred_region
          %369 = dma.done [#allocation6], 128
        $region68: #{tpu_custom_call.1} parent=55 // pred_fallthru
          _
        // Predicated region
        $region69: #{tpu_custom_call.1} parent=55 // pred_check
          %p370 = pneg %p113
        $region70: #{tpu_custom_call.1} parent=55 // pred_check_branch
          %372 = sbr.rel (%p370) target = $region72
        $region71: #{tpu_custom_call.1} parent=55 // pred_region
          %373 = dma.done [#allocation9], 128
        $region72: #{tpu_custom_call.1} parent=55 // pred_fallthru
          _
        // Predicated region
        $region73: #{tpu_custom_call.1} parent=55 // pred_check
          %p374 = pneg %p134
        $region74: #{tpu_custom_call.1} parent=55 // pred_check_branch
          %376 = sbr.rel (%p374) target = $region76
        $region75: #{tpu_custom_call.1} parent=55 // pred_region
          %377 = dma.done [#allocation9], 128
        $region76: #{tpu_custom_call.1} parent=55 // pred_fallthru
          _
        // Predicated region
        $region77: #{tpu_custom_call.1} parent=55 // pred_check
          %p378 = pneg %p155
        $region78: #{tpu_custom_call.1} parent=55 // pred_check_branch
          %380 = sbr.rel (%p378) target = $region80
        $region79: #{tpu_custom_call.1} parent=55 // pred_region
          %381 = dma.done [#allocation12], 128
        $region80: #{tpu_custom_call.1} parent=55 // pred_fallthru
          _
        %s382 = sand.u32 %s37, 1
        %s383 = scalar_lea.sflag [#allocation3], %s382
        %s384 = sand.u32 %s37, 1
        %s385 = smul.addr %s384, 16
        %s386 = scalar_lea.vmem [#allocation2], %s385
        %p387 = pneg %p50
        %p388 = pneg %p47
        %p389 = pneg %p71
        %p390 = pneg %p68
        %p391 = pneg %p92
        %p392 = pneg %p89
        %p393 = pneg %p113
        %p394 = pneg %p110
        %p395 = pneg %p134
        %p396 = pneg %p131
        %p397 = pneg %p155
        %p398 = pneg %p152
        %p399 = pneg %p176
        %p400 = pneg %p173
        %p401 = pneg %p197
        %p402 = pneg %p194
        %p403 = pneg %p218
        %p404 = pneg %p215
        %p405 = pneg %p244
        %p406 = pneg %p241
        %s407 = sand.u32 %s231, 1
        %s408 = scalar_lea.sflag [#allocation4], %s407
        %s409 = sand.u32 %s231, 1
        %s410 = smul.addr %s409, 32
        %s411 = scalar_lea.vmem [#allocation13], %s410
        %s412 = smul.u32 2, %s29
        %s413 = smul.u32 2, %s29
        %v414 = vlaneseq
        %v415 = vand.u32 %v414, 127
        %vm416 = vcmp.ge.s32.totalorder %v415, 1
        %vm417 = vcmp.ge.s32.totalorder %v415, 2
        %vm418 = vcmp.ge.s32.totalorder %v415, 4
        %vm419 = vcmp.ge.s32.totalorder %v415, 8
        %v420 = vld [vmem:[%s357] sm:$0xff]
        %v421 = vld [vmem:[%s357 + $0x8] sm:$0xff]
        %422 = vrot.lane.b32.xlu0 %v420, 2
        %v423 = vpop.permute.xlu0 %422
        %424 = vrot.lane.b32.xlu0 %v421, 2
        %v425 = vpop.permute.xlu0 %424
        %vm426 = vcmp.lt.s32.totalorder %v415, 2
        %v427 = vsel %vm426, %v423, %v425
        %v428 = vsel %vm426, %v425, %v423
        %v429 = vsel %vm417, 1, 0
        %v430 = vlaneseq
        %v431 = vshrl.u32 %v430, 7
        %v432 = vsub.s32 0, %v431
        %v433 = vrot.slane %v429, %v432
        %vm434 = vcmp.eq.s32.totalorder %v433, 1
        %v435 = vsel %vm434, %v428, 0.0
        %v436 = vsel %vm434, %v427, 0.0
        %437 = vrot.lane.b32.xlu0 %v420, 1
        %v438 = vpop.permute.xlu0 %437
        %439 = vrot.lane.b32.xlu0 %v421, 1
        %v440 = vpop.permute.xlu0 %439
        %vm441 = vcmp.lt.s32.totalorder %v415, 1
        %v442 = vsel %vm441, %v438, %v440
        %v443 = vsel %vm441, %v440, %v438
        %v444 = vsel %vm416, 1, 0
        %v445 = vlaneseq
        %v446 = vshrl.u32 %v445, 7
        %v447 = vsub.s32 0, %v446
        %v448 = vrot.slane %v444, %v447
        %vm449 = vcmp.eq.s32.totalorder %v448, 1
        %v450 = vsel %vm449, %v443, 0.0
        %v451 = vsel %vm449, %v442, 0.0
        %v452 = vld [vmem:[#allocation5] sm:$0xff]
        %vm453 = vcmask 195584
        %v455 = vsel %vm453, %v452, 0
        %457 = vmatprep.subr.mxu0 %v436
        %458 = vmatpush1.msra.mxu0 %v435
        %459 = vmatprep.subr.mxu0 %v451
        %460 = vmatpush1.msra.mxu0 %v450
        %461 = vmatprep.subr.mxu0 %v421
        %462 = vmatpush1.msra.mxu0 %v420
        %463 = vmatprep.subr.mxu0 0.0
        %464 = vmatpush1.msra.mxu0 0.0
        %465 = vmatprep.subr.mxu0 0.0
        %466 = vmatpush1.msra.mxu0 0.0
        %467 = vmatprep.subr.mxu0 0.0
        %468 = vmatpush1.msra.mxu0 0.0
        %469 = vmatprep.subr.mxu0 0.0
        %470 = vmatpush1.msra.mxu0 0.0
        %471 = vmatprep.subr.mxu0 0.0
        %472 = vmatpush1.msra.mxu0 0.0
        %473 = vmatprep.subr.mxu0 0.0
        %474 = vmatpush1.msra.mxu0 0.0
        %475 = vmatprep.subr.mxu0 0.0
        %476 = vmatpush1.msra.mxu0 0.0
        %477 = vmatprep.subr.mxu0 0.0
        %478 = vmatpush1.msra.mxu0 0.0
        %479 = vmatprep.subr.mxu0 0.0
        %480 = vmatpush1.msra.mxu0 0.0
        %481 = vmatprep.subr.mxu0 0.0
        %482 = vmatpush1.msra.mxu0 0.0
        %483 = vmatprep.subr.mxu0 0.0
        %484 = vmatpush1.msra.mxu0 0.0
        %485 = vmatprep.subr.mxu0 0.0
        %486 = vmatpush1.msra.mxu0 0.0
        %487 = vmatprep.subr.mxu0 0.0
        %488 = vmatpush1.msra.mxu0 0.0
        %489 = vmatprep.subr.mxu0 0.0
        %490 = vmatpush1.msra.mxu0 0.0
        %491 = vmatprep.subr.mxu0 0.0
        %492 = vmatpush1.msra.mxu0 0.0
        %493 = vmatprep.subr.mxu0 0.0
        %494 = vmatpush1.msra.mxu0 0.0
        %495 = vmatprep.subr.mxu0 0.0
        %496 = vmatpush1.msra.mxu0 0.0
        %497 = vmatprep.subr.mxu0 0.0
        %498 = vmatpush1.msra.mxu0 0.0
        %499 = vmatprep.subr.mxu0 0.0
        %500 = vmatpush1.msra.mxu0 0.0
        %501 = vmatprep.subr.mxu0 0.0
        %502 = vmatpush1.msra.mxu0 0.0
        %503 = vmatprep.subr.mxu0 0.0
        %504 = vmatpush1.msra.mxu0 0.0
        %505 = vmatprep.subr.mxu0 0.0
        %506 = vmatpush1.msra.mxu0 0.0
        %507 = vmatprep.subr.mxu0 0.0
        %508 = vmatpush1.msra.mxu0 0.0
        %509 = vmatprep.subr.mxu0 0.0
        %510 = vmatpush1.msra.mxu0 0.0
        %511 = vmatprep.subr.mxu0 0.0
        %512 = vmatpush1.msra.mxu0 0.0
        %513 = vmatprep.subr.mxu0 0.0
        %514 = vmatpush1.msra.mxu0 0.0
        %515 = vmatprep.subr.mxu0 0.0
        %516 = vmatpush1.msra.mxu0 0.0
        %517 = vmatprep.subr.mxu0 0.0
        %518 = vmatpush1.msra.mxu0 0.0
        %519 = vmatprep.subr.mxu0 0.0
        %520 = vmatpush1.msra.mxu0 0.0
        %521 = vmatprep.mubr.f32.mxu0 0.0
        %522 = vmatmul.mubr.f32.gmra.mrb[0].mxu0 %v455
        %v523 = vpop.f32.mrb[0].mxu0
        %v524 = vadd.f32 0.0, %v523
        %v525 = vpop.f32.mrb[0].mxu0
        %v526 = vadd.f32 0.0, %v525
        %527 = vdwg.mxu0
        %v528 = vmax.f32 %v524, 0.0
        %v529 = vmax.f32 %v526, 0.0
        %530 = vrot.lane.b32.xlu0 %v528, 2
        %v531 = vpop.permute.xlu0 %530
        %532 = vrot.lane.b32.xlu0 %v529, 2
        %v533 = vpop.permute.xlu0 %532
        %v534 = vsel %vm426, %v531, %v533
        %v535 = vsel %vm426, %v533, %v531
        %v536 = vsel %vm434, %v535, 0.0
        %v537 = vsel %vm434, %v534, 0.0
        %538 = vrot.lane.b32.xlu0 %v528, 1
        %v539 = vpop.permute.xlu0 %538
        %540 = vrot.lane.b32.xlu0 %v529, 1
        %v541 = vpop.permute.xlu0 %540
        %v542 = vsel %vm441, %v539, %v541
        %v543 = vsel %vm441, %v541, %v539
        %v544 = vsel %vm449, %v543, 0.0
        %v545 = vsel %vm449, %v542, 0.0
        %v546 = vld [vmem:[#allocation7] sm:$0xff]
        %v548 = vsel %vm453, %v546, 0
        %550 = vmatprep.subr.mxu0 %v537
        %551 = vmatpush1.msra.mxu0 %v536
        %552 = vmatprep.subr.mxu0 %v545
        %553 = vmatpush1.msra.mxu0 %v544
        %554 = vmatprep.subr.mxu0 %v529
        %555 = vmatpush1.msra.mxu0 %v528
        %556 = vmatprep.subr.mxu0 0.0
        %557 = vmatpush1.msra.mxu0 0.0
        %558 = vmatprep.subr.mxu0 0.0
        %559 = vmatpush1.msra.mxu0 0.0
        %560 = vmatprep.subr.mxu0 0.0
        %561 = vmatpush1.msra.mxu0 0.0
        %562 = vmatprep.subr.mxu0 0.0
        %563 = vmatpush1.msra.mxu0 0.0
        %564 = vmatprep.subr.mxu0 0.0
        %565 = vmatpush1.msra.mxu0 0.0
        %566 = vmatprep.subr.mxu0 0.0
        %567 = vmatpush1.msra.mxu0 0.0
        %568 = vmatprep.subr.mxu0 0.0
        %569 = vmatpush1.msra.mxu0 0.0
        %570 = vmatprep.subr.mxu0 0.0
        %571 = vmatpush1.msra.mxu0 0.0
        %572 = vmatprep.subr.mxu0 0.0
        %573 = vmatpush1.msra.mxu0 0.0
        %574 = vmatprep.subr.mxu0 0.0
        %575 = vmatpush1.msra.mxu0 0.0
        %576 = vmatprep.subr.mxu0 0.0
        %577 = vmatpush1.msra.mxu0 0.0
        %578 = vmatprep.subr.mxu0 0.0
        %579 = vmatpush1.msra.mxu0 0.0
        %580 = vmatprep.subr.mxu0 0.0
        %581 = vmatpush1.msra.mxu0 0.0
        %582 = vmatprep.subr.mxu0 0.0
        %583 = vmatpush1.msra.mxu0 0.0
        %584 = vmatprep.subr.mxu0 0.0
        %585 = vmatpush1.msra.mxu0 0.0
        %586 = vmatprep.subr.mxu0 0.0
        %587 = vmatpush1.msra.mxu0 0.0
        %588 = vmatprep.subr.mxu0 0.0
        %589 = vmatpush1.msra.mxu0 0.0
        %590 = vmatprep.subr.mxu0 0.0
        %591 = vmatpush1.msra.mxu0 0.0
        %592 = vmatprep.subr.mxu0 0.0
        %593 = vmatpush1.msra.mxu0 0.0
        %594 = vmatprep.subr.mxu0 0.0
        %595 = vmatpush1.msra.mxu0 0.0
        %596 = vmatprep.subr.mxu0 0.0
        %597 = vmatpush1.msra.mxu0 0.0
        %598 = vmatprep.subr.mxu0 0.0
        %599 = vmatpush1.msra.mxu0 0.0
        %600 = vmatprep.subr.mxu0 0.0
        %601 = vmatpush1.msra.mxu0 0.0
        %602 = vmatprep.subr.mxu0 0.0
        %603 = vmatpush1.msra.mxu0 0.0
        %604 = vmatprep.subr.mxu0 0.0
        %605 = vmatpush1.msra.mxu0 0.0
        %606 = vmatprep.subr.mxu0 0.0
        %607 = vmatpush1.msra.mxu0 0.0
        %608 = vmatprep.subr.mxu0 0.0
        %609 = vmatpush1.msra.mxu0 0.0
        %610 = vmatprep.subr.mxu0 0.0
        %611 = vmatpush1.msra.mxu0 0.0
        %612 = vmatprep.subr.mxu0 0.0
        %613 = vmatpush1.msra.mxu0 0.0
        %614 = vmatprep.mubr.f32.mxu0 0.0
        %615 = vmatmul.mubr.f32.gmra.mrb[0].mxu0 %v548
        %v616 = vpop.f32.mrb[0].mxu0
        %v617 = vadd.f32 0.0, %v616
        %v618 = vpop.f32.mrb[0].mxu0
        %v619 = vadd.f32 0.0, %v618
        %620 = vdwg.mxu0
        %v621 = vmax.f32 %v617, 0.0
        %v622 = vmax.f32 %v619, 0.0
        %v623 = vld [vmem:[#allocation8] sm:$0xff]
        %vm624 = vcmask 64512
        %v626 = vsel %vm624, %v623, 0
        %628 = vmatprep.subr.mxu0 %v421
        %629 = vmatpush1.msra.mxu0 %v420
        %630 = vmatprep.subr.mxu0 0.0
        %631 = vmatpush1.msra.mxu0 0.0
        %632 = vmatprep.subr.mxu0 0.0
        %633 = vmatpush1.msra.mxu0 0.0
        %634 = vmatprep.subr.mxu0 0.0
        %635 = vmatpush1.msra.mxu0 0.0
        %636 = vmatprep.subr.mxu0 0.0
        %637 = vmatpush1.msra.mxu0 0.0
        %638 = vmatprep.subr.mxu0 0.0
        %639 = vmatpush1.msra.mxu0 0.0
        %640 = vmatprep.subr.mxu0 0.0
        %641 = vmatpush1.msra.mxu0 0.0
        %642 = vmatprep.subr.mxu0 0.0
        %643 = vmatpush1.msra.mxu0 0.0
        %644 = vmatprep.subr.mxu0 0.0
        %645 = vmatpush1.msra.mxu0 0.0
        %646 = vmatprep.subr.mxu0 0.0
        %647 = vmatpush1.msra.mxu0 0.0
        %648 = vmatprep.subr.mxu0 0.0
        %649 = vmatpush1.msra.mxu0 0.0
        %650 = vmatprep.subr.mxu0 0.0
        %651 = vmatpush1.msra.mxu0 0.0
        %652 = vmatprep.subr.mxu0 0.0
        %653 = vmatpush1.msra.mxu0 0.0
        %654 = vmatprep.subr.mxu0 0.0
        %655 = vmatpush1.msra.mxu0 0.0
        %656 = vmatprep.subr.mxu0 0.0
        %657 = vmatpush1.msra.mxu0 0.0
        %658 = vmatprep.subr.mxu0 0.0
        %659 = vmatpush1.msra.mxu0 0.0
        %660 = vmatprep.subr.mxu0 0.0
        %661 = vmatpush1.msra.mxu0 0.0
        %662 = vmatprep.subr.mxu0 0.0
        %663 = vmatpush1.msra.mxu0 0.0
        %664 = vmatprep.subr.mxu0 0.0
        %665 = vmatpush1.msra.mxu0 0.0
        %666 = vmatprep.subr.mxu0 0.0
        %667 = vmatpush1.msra.mxu0 0.0
        %668 = vmatprep.subr.mxu0 0.0
        %669 = vmatpush1.msra.mxu0 0.0
        %670 = vmatprep.subr.mxu0 0.0
        %671 = vmatpush1.msra.mxu0 0.0
        %672 = vmatprep.subr.mxu0 0.0
        %673 = vmatpush1.msra.mxu0 0.0
        %674 = vmatprep.subr.mxu0 0.0
        %675 = vmatpush1.msra.mxu0 0.0
        %676 = vmatprep.subr.mxu0 0.0
        %677 = vmatpush1.msra.mxu0 0.0
        %678 = vmatprep.subr.mxu0 0.0
        %679 = vmatpush1.msra.mxu0 0.0
        %680 = vmatprep.subr.mxu0 0.0
        %681 = vmatpush1.msra.mxu0 0.0
        %682 = vmatprep.subr.mxu0 0.0
        %683 = vmatpush1.msra.mxu0 0.0
        %684 = vmatprep.subr.mxu0 0.0
        %685 = vmatpush1.msra.mxu0 0.0
        %686 = vmatprep.subr.mxu0 0.0
        %687 = vmatpush1.msra.mxu0 0.0
        %688 = vmatprep.subr.mxu0 0.0
        %689 = vmatpush1.msra.mxu0 0.0
        %690 = vmatprep.subr.mxu0 0.0
        %691 = vmatpush1.msra.mxu0 0.0
        %692 = vmatprep.mubr.f32.mxu0 0.0
        %693 = vmatmul.mubr.f32.gmra.mrb[0].mxu0 %v626
        %v694 = vpop.f32.mrb[0].mxu0
        %v695 = vadd.f32 0.0, %v694
        %v696 = vpop.f32.mrb[0].mxu0
        %v697 = vadd.f32 0.0, %v696
        %698 = vdwg.mxu0
        %v699 = vadd.f32 %v621, %v695
        %v700 = vadd.f32 %v622, %v697
        %v701 = vmax.f32 %v699, 0.0
        %v702 = vmax.f32 %v700, 0.0
        %703 = vrot.lane.b32.xlu0 %v701, 4
        %v704 = vpop.permute.xlu0 %703
        %705 = vrot.lane.b32.xlu0 %v702, 4
        %v706 = vpop.permute.xlu0 %705
        %vm707 = vcmp.lt.s32.totalorder %v415, 4
        %v708 = vsel %vm707, %v704, %v706
        %v709 = vsel %vm707, %v706, %v704
        %v710 = vsel %vm418, 1, 0
        %v711 = vlaneseq
        %v712 = vshrl.u32 %v711, 7
        %v713 = vsub.s32 0, %v712
        %v714 = vrot.slane %v710, %v713
        %vm715 = vcmp.eq.s32.totalorder %v714, 1
        %v716 = vsel %vm715, %v709, 0.0
        %v717 = vsel %vm715, %v708, 0.0
        %718 = vrot.lane.b32.xlu0 %v701, 2
        %v719 = vpop.permute.xlu0 %718
        %720 = vrot.lane.b32.xlu0 %v702, 2
        %v721 = vpop.permute.xlu0 %720
        %v722 = vsel %vm426, %v719, %v721
        %v723 = vsel %vm426, %v721, %v719
        %v724 = vsel %vm434, %v723, 0.0
        %v725 = vsel %vm434, %v722, 0.0
        %v726 = vld [vmem:[#allocation10] sm:$0xff]
        %v728 = vsel %vm453, %v726, 0
        %730 = vmatprep.subr.mxu0 %v717
        %731 = vmatpush1.msra.mxu0 %v716
        %732 = vmatprep.subr.mxu0 %v725
        %733 = vmatpush1.msra.mxu0 %v724
        %734 = vmatprep.subr.mxu0 %v702
        %735 = vmatpush1.msra.mxu0 %v701
        %736 = vmatprep.subr.mxu0 0.0
        %737 = vmatpush1.msra.mxu0 0.0
        %738 = vmatprep.subr.mxu0 0.0
        %739 = vmatpush1.msra.mxu0 0.0
        %740 = vmatprep.subr.mxu0 0.0
        %741 = vmatpush1.msra.mxu0 0.0
        %742 = vmatprep.subr.mxu0 0.0
        %743 = vmatpush1.msra.mxu0 0.0
        %744 = vmatprep.subr.mxu0 0.0
        %745 = vmatpush1.msra.mxu0 0.0
        %746 = vmatprep.subr.mxu0 0.0
        %747 = vmatpush1.msra.mxu0 0.0
        %748 = vmatprep.subr.mxu0 0.0
        %749 = vmatpush1.msra.mxu0 0.0
        %750 = vmatprep.subr.mxu0 0.0
        %751 = vmatpush1.msra.mxu0 0.0
        %752 = vmatprep.subr.mxu0 0.0
        %753 = vmatpush1.msra.mxu0 0.0
        %754 = vmatprep.subr.mxu0 0.0
        %755 = vmatpush1.msra.mxu0 0.0
        %756 = vmatprep.subr.mxu0 0.0
        %757 = vmatpush1.msra.mxu0 0.0
        %758 = vmatprep.subr.mxu0 0.0
        %759 = vmatpush1.msra.mxu0 0.0
        %760 = vmatprep.subr.mxu0 0.0
        %761 = vmatpush1.msra.mxu0 0.0
        %762 = vmatprep.subr.mxu0 0.0
        %763 = vmatpush1.msra.mxu0 0.0
        %764 = vmatprep.subr.mxu0 0.0
        %765 = vmatpush1.msra.mxu0 0.0
        %766 = vmatprep.subr.mxu0 0.0
        %767 = vmatpush1.msra.mxu0 0.0
        %768 = vmatprep.subr.mxu0 0.0
        %769 = vmatpush1.msra.mxu0 0.0
        %770 = vmatprep.subr.mxu0 0.0
        %771 = vmatpush1.msra.mxu0 0.0
        %772 = vmatprep.subr.mxu0 0.0
        %773 = vmatpush1.msra.mxu0 0.0
        %774 = vmatprep.subr.mxu0 0.0
        %775 = vmatpush1.msra.mxu0 0.0
        %776 = vmatprep.subr.mxu0 0.0
        %777 = vmatpush1.msra.mxu0 0.0
        %778 = vmatprep.subr.mxu0 0.0
        %779 = vmatpush1.msra.mxu0 0.0
        %780 = vmatprep.subr.mxu0 0.0
        %781 = vmatpush1.msra.mxu0 0.0
        %782 = vmatprep.subr.mxu0 0.0
        %783 = vmatpush1.msra.mxu0 0.0
        %784 = vmatprep.subr.mxu0 0.0
        %785 = vmatpush1.msra.mxu0 0.0
        %786 = vmatprep.subr.mxu0 0.0
        %787 = vmatpush1.msra.mxu0 0.0
        %788 = vmatprep.subr.mxu0 0.0
        %789 = vmatpush1.msra.mxu0 0.0
        %790 = vmatprep.subr.mxu0 0.0
        %791 = vmatpush1.msra.mxu0 0.0
        %792 = vmatprep.subr.mxu0 0.0
        %793 = vmatpush1.msra.mxu0 0.0
        %794 = vmatprep.mubr.f32.mxu0 0.0
        %795 = vmatmul.mubr.f32.gmra.mrb[0].mxu0 %v728
        %v796 = vpop.f32.mrb[0].mxu0
        %v797 = vadd.f32 0.0, %v796
        %v798 = vpop.f32.mrb[0].mxu0
        %v799 = vadd.f32 0.0, %v798
        %800 = vdwg.mxu0
        %v801 = vmax.f32 %v797, 0.0
        %v802 = vmax.f32 %v799, 0.0
        %803 = vrot.lane.b32.xlu0 %v801, 4
        %v804 = vpop.permute.xlu0 %803
        %805 = vrot.lane.b32.xlu0 %v802, 4
        %v806 = vpop.permute.xlu0 %805
        %v807 = vsel %vm707, %v804, %v806
        %v808 = vsel %vm707, %v806, %v804
        %v809 = vsel %vm715, %v808, 0.0
        %v810 = vsel %vm715, %v807, 0.0
        %811 = vrot.lane.b32.xlu0 %v801, 2
        %v812 = vpop.permute.xlu0 %811
        %813 = vrot.lane.b32.xlu0 %v802, 2
        %v814 = vpop.permute.xlu0 %813
        %v815 = vsel %vm426, %v812, %v814
        %v816 = vsel %vm426, %v814, %v812
        %v817 = vsel %vm434, %v816, 0.0
        %v818 = vsel %vm434, %v815, 0.0
        %v819 = vld [vmem:[#allocation11] sm:$0xff]
        %v821 = vsel %vm453, %v819, 0
        %823 = vmatprep.subr.mxu0 %v810
        %824 = vmatpush1.msra.mxu0 %v809
        %825 = vmatprep.subr.mxu0 %v818
        %826 = vmatpush1.msra.mxu0 %v817
        %827 = vmatprep.subr.mxu0 %v802
        %828 = vmatpush1.msra.mxu0 %v801
        %829 = vmatprep.subr.mxu0 0.0
        %830 = vmatpush1.msra.mxu0 0.0
        %831 = vmatprep.subr.mxu0 0.0
        %832 = vmatpush1.msra.mxu0 0.0
        %833 = vmatprep.subr.mxu0 0.0
        %834 = vmatpush1.msra.mxu0 0.0
        %835 = vmatprep.subr.mxu0 0.0
        %836 = vmatpush1.msra.mxu0 0.0
        %837 = vmatprep.subr.mxu0 0.0
        %838 = vmatpush1.msra.mxu0 0.0
        %839 = vmatprep.subr.mxu0 0.0
        %840 = vmatpush1.msra.mxu0 0.0
        %841 = vmatprep.subr.mxu0 0.0
        %842 = vmatpush1.msra.mxu0 0.0
        %843 = vmatprep.subr.mxu0 0.0
        %844 = vmatpush1.msra.mxu0 0.0
        %845 = vmatprep.subr.mxu0 0.0
        %846 = vmatpush1.msra.mxu0 0.0
        %847 = vmatprep.subr.mxu0 0.0
        %848 = vmatpush1.msra.mxu0 0.0
        %849 = vmatprep.subr.mxu0 0.0
        %850 = vmatpush1.msra.mxu0 0.0
        %851 = vmatprep.subr.mxu0 0.0
        %852 = vmatpush1.msra.mxu0 0.0
        %853 = vmatprep.subr.mxu0 0.0
        %854 = vmatpush1.msra.mxu0 0.0
        %855 = vmatprep.subr.mxu0 0.0
        %856 = vmatpush1.msra.mxu0 0.0
        %857 = vmatprep.subr.mxu0 0.0
        %858 = vmatpush1.msra.mxu0 0.0
        %859 = vmatprep.subr.mxu0 0.0
        %860 = vmatpush1.msra.mxu0 0.0
        %861 = vmatprep.subr.mxu0 0.0
        %862 = vmatpush1.msra.mxu0 0.0
        %863 = vmatprep.subr.mxu0 0.0
        %864 = vmatpush1.msra.mxu0 0.0
        %865 = vmatprep.subr.mxu0 0.0
        %866 = vmatpush1.msra.mxu0 0.0
        %867 = vmatprep.subr.mxu0 0.0
        %868 = vmatpush1.msra.mxu0 0.0
        %869 = vmatprep.subr.mxu0 0.0
        %870 = vmatpush1.msra.mxu0 0.0
        %871 = vmatprep.subr.mxu0 0.0
        %872 = vmatpush1.msra.mxu0 0.0
        %873 = vmatprep.subr.mxu0 0.0
        %874 = vmatpush1.msra.mxu0 0.0
        %875 = vmatprep.subr.mxu0 0.0
        %876 = vmatpush1.msra.mxu0 0.0
        %877 = vmatprep.subr.mxu0 0.0
        %878 = vmatpush1.msra.mxu0 0.0
        %879 = vmatprep.subr.mxu0 0.0
        %880 = vmatpush1.msra.mxu0 0.0
        %881 = vmatprep.subr.mxu0 0.0
        %882 = vmatpush1.msra.mxu0 0.0
        %883 = vmatprep.subr.mxu0 0.0
        %884 = vmatpush1.msra.mxu0 0.0
        %885 = vmatprep.subr.mxu0 0.0
        %886 = vmatpush1.msra.mxu0 0.0
        %887 = vmatprep.mubr.f32.mxu0 0.0
        %888 = vmatmul.mubr.f32.gmra.mrb[0].mxu0 %v821
        %v889 = vpop.f32.mrb[0].mxu0
        %v890 = vadd.f32 0.0, %v889
        %v891 = vpop.f32.mrb[0].mxu0
        %v892 = vadd.f32 0.0, %v891
        %893 = vdwg.mxu0
        %v894 = vmax.f32 %v890, 0.0
        %v895 = vmax.f32 %v892, 0.0
        %v896 = vadd.f32 %v894, %v701
        %v897 = vadd.f32 %v895, %v702
        %v898 = vmax.f32 %v896, 0.0
        %v899 = vmax.f32 %v897, 0.0
        %900 = vrot.lane.b32.xlu0 %v898, 8
        %v901 = vpop.permute.xlu0 %900
        %902 = vrot.lane.b32.xlu0 %v899, 8
        %v903 = vpop.permute.xlu0 %902
        %vm904 = vcmp.lt.s32.totalorder %v415, 8
        %v905 = vsel %vm904, %v901, %v903
        %v906 = vsel %vm904, %v903, %v901
        %v907 = vsel %vm419, 1, 0
        %v908 = vlaneseq
        %v909 = vshrl.u32 %v908, 7
        %v910 = vsub.s32 0, %v909
        %v911 = vrot.slane %v907, %v910
        %vm912 = vcmp.eq.s32.totalorder %v911, 1
        %v913 = vsel %vm912, %v906, 0.0
        %v914 = vsel %vm912, %v905, 0.0
        %915 = vrot.lane.b32.xlu0 %v898, 4
        %v916 = vpop.permute.xlu0 %915
        %917 = vrot.lane.b32.xlu0 %v899, 4
        %v918 = vpop.permute.xlu0 %917
        %v919 = vsel %vm707, %v916, %v918
        %v920 = vsel %vm707, %v918, %v916
        %v921 = vsel %vm715, %v920, 0.0
        %v922 = vsel %vm715, %v919, 0.0
        %v923 = vld [vmem:[%s6] sm:$0xff]
        %v924 = vld [vmem:[%s6 + $0x8] sm:$0xff]
        %v926 = vsel %vm453, %v923, 0
        %v929 = vsel %vm453, %v924, 0
        %931 = vmatprep.subr.mxu0 %v914
        %932 = vmatpush1.msra.mxu0 %v913
        %933 = vmatprep.subr.mxu0 %v922
        %934 = vmatpush1.msra.mxu0 %v921
        %935 = vmatprep.subr.mxu0 %v899
        %936 = vmatpush1.msra.mxu0 %v898
        %937 = vmatprep.subr.mxu0 0.0
        %938 = vmatpush1.msra.mxu0 0.0
        %939 = vmatprep.subr.mxu0 0.0
        %940 = vmatpush1.msra.mxu0 0.0
        %941 = vmatprep.subr.mxu0 0.0
        %942 = vmatpush1.msra.mxu0 0.0
        %943 = vmatprep.subr.mxu0 0.0
        %944 = vmatpush1.msra.mxu0 0.0
        %945 = vmatprep.subr.mxu0 0.0
        %946 = vmatpush1.msra.mxu0 0.0
        %947 = vmatprep.subr.mxu0 0.0
        %948 = vmatpush1.msra.mxu0 0.0
        %949 = vmatprep.subr.mxu0 0.0
        %950 = vmatpush1.msra.mxu0 0.0
        %951 = vmatprep.subr.mxu0 0.0
        %952 = vmatpush1.msra.mxu0 0.0
        %953 = vmatprep.subr.mxu0 0.0
        %954 = vmatpush1.msra.mxu0 0.0
        %955 = vmatprep.subr.mxu0 0.0
        %956 = vmatpush1.msra.mxu0 0.0
        %957 = vmatprep.subr.mxu0 0.0
        %958 = vmatpush1.msra.mxu0 0.0
        %959 = vmatprep.subr.mxu0 0.0
        %960 = vmatpush1.msra.mxu0 0.0
        %961 = vmatprep.subr.mxu0 0.0
        %962 = vmatpush1.msra.mxu0 0.0
        %963 = vmatprep.subr.mxu0 0.0
        %964 = vmatpush1.msra.mxu0 0.0
        %965 = vmatprep.subr.mxu0 0.0
        %966 = vmatpush1.msra.mxu0 0.0
        %967 = vmatprep.subr.mxu0 0.0
        %968 = vmatpush1.msra.mxu0 0.0
        %969 = vmatprep.subr.mxu0 0.0
        %970 = vmatpush1.msra.mxu0 0.0
        %971 = vmatprep.subr.mxu0 0.0
        %972 = vmatpush1.msra.mxu0 0.0
        %973 = vmatprep.subr.mxu0 0.0
        %974 = vmatpush1.msra.mxu0 0.0
        %975 = vmatprep.subr.mxu0 0.0
        %976 = vmatpush1.msra.mxu0 0.0
        %977 = vmatprep.subr.mxu0 0.0
        %978 = vmatpush1.msra.mxu0 0.0
        %979 = vmatprep.subr.mxu0 0.0
        %980 = vmatpush1.msra.mxu0 0.0
        %981 = vmatprep.subr.mxu0 0.0
        %982 = vmatpush1.msra.mxu0 0.0
        %983 = vmatprep.subr.mxu0 0.0
        %984 = vmatpush1.msra.mxu0 0.0
        %985 = vmatprep.subr.mxu0 0.0
        %986 = vmatpush1.msra.mxu0 0.0
        %987 = vmatprep.subr.mxu0 0.0
        %988 = vmatpush1.msra.mxu0 0.0
        %989 = vmatprep.subr.mxu0 0.0
        %990 = vmatpush1.msra.mxu0 0.0
        %991 = vmatprep.subr.mxu0 0.0
        %992 = vmatpush1.msra.mxu0 0.0
        %993 = vmatprep.subr.mxu0 0.0
        %994 = vmatpush1.msra.mxu0 0.0
        %995 = vmatprep.mubr.f32.mxu0 0.0
        %996 = vmatmul.mubr.f32.gmra.mrb[0].mxu0 %v926
        %v997 = vpop.f32.mrb[0].mxu0
        %v998 = vadd.f32 0.0, %v997
        %v999 = vpop.f32.mrb[0].mxu0
        %v1000 = vadd.f32 0.0, %v999
        %1001 = vmatprep.mubr.f32.mxu0 0.0
        %1002 = vmatmul.mubr.f32.gmra.mrb[0].mxu0 %v929
        %v1003 = vpop.f32.mrb[0].mxu0
        %v1004 = vadd.f32 0.0, %v1003
        %v1005 = vpop.f32.mrb[0].mxu0
        %v1006 = vadd.f32 0.0, %v1005
        %1007 = vdwg.mxu0
        %v1008 = vmax.f32 %v998, 0.0
        %v1009 = vmax.f32 %v1000, 0.0
        %v1010 = vmax.f32 %v1004, 0.0
        %v1011 = vmax.f32 %v1006, 0.0
        %1012 = vrot.lane.b32.xlu0 %v1008, 8
        %v1013 = vpop.permute.xlu0 %1012
        %1014 = vrot.lane.b32.xlu0 %v1010, 8
        %v1015 = vpop.permute.xlu0 %1014
        %1016 = vrot.lane.b32.xlu0 %v1009, 8
        %v1017 = vpop.permute.xlu0 %1016
        %1018 = vrot.lane.b32.xlu0 %v1011, 8
        %v1019 = vpop.permute.xlu0 %1018
        %v1020 = vsel %vm904, %v1013, %v1017
        %v1021 = vsel %vm904, %v1015, %v1019
        %v1022 = vsel %vm904, %v1017, %v1013
        %v1023 = vsel %vm904, %v1019, %v1015
        %v1024 = vsel %vm912, %v1022, 0.0
        %v1025 = vsel %vm912, %v1020, 0.0
        %v1026 = vsel %vm912, %v1023, 0.0
        %v1027 = vsel %vm912, %v1021, 0.0
        %1028 = vrot.lane.b32.xlu0 %v1008, 4
        %v1029 = vpop.permute.xlu0 %1028
        %1030 = vrot.lane.b32.xlu0 %v1010, 4
        %v1031 = vpop.permute.xlu0 %1030
        %1032 = vrot.lane.b32.xlu0 %v1009, 4
        %v1033 = vpop.permute.xlu0 %1032
        %1034 = vrot.lane.b32.xlu0 %v1011, 4
        %v1035 = vpop.permute.xlu0 %1034
        %v1036 = vsel %vm707, %v1029, %v1033
        %v1037 = vsel %vm707, %v1031, %v1035
        %v1038 = vsel %vm707, %v1033, %v1029
        %v1039 = vsel %vm707, %v1035, %v1031
        %v1040 = vsel %vm715, %v1038, 0.0
        %v1041 = vsel %vm715, %v1036, 0.0
        %v1042 = vsel %vm715, %v1039, 0.0
        %v1043 = vsel %vm715, %v1037, 0.0
        %v1044 = vld [vmem:[%s7] sm:$0xff]
        %v1045 = vld [vmem:[%s7 + $0x8] sm:$0xff]
        %vm1046 = vcmask 392192
        %v1048 = vsel %vm1046, %v1044, 0
        %v1051 = vsel %vm1046, %v1045, 0
        %1053 = vmatprep.subr.mxu0 %v1025
        %1054 = vmatpush1.msra.mxu0 %v1024
        %1055 = vmatprep.subr.mxu0 %v1027
        %1056 = vmatpush1.msra.mxu0 %v1026
        %1057 = vmatprep.subr.mxu0 %v1041
        %1058 = vmatpush1.msra.mxu0 %v1040
        %1059 = vmatprep.subr.mxu0 %v1043
        %1060 = vmatpush1.msra.mxu0 %v1042
        %1061 = vmatprep.subr.mxu0 %v1009
        %1062 = vmatpush1.msra.mxu0 %v1008
        %1063 = vmatprep.subr.mxu0 %v1011
        %1064 = vmatpush1.msra.mxu0 %v1010
        %1065 = vmatprep.subr.mxu0 0.0
        %1066 = vmatpush1.msra.mxu0 0.0
        %1067 = vmatprep.subr.mxu0 0.0
        %1068 = vmatpush1.msra.mxu0 0.0
        %1069 = vmatprep.subr.mxu0 0.0
        %1070 = vmatpush1.msra.mxu0 0.0
        %1071 = vmatprep.subr.mxu0 0.0
        %1072 = vmatpush1.msra.mxu0 0.0
        %1073 = vmatprep.subr.mxu0 0.0
        %1074 = vmatpush1.msra.mxu0 0.0
        %1075 = vmatprep.subr.mxu0 0.0
        %1076 = vmatpush1.msra.mxu0 0.0
        %1077 = vmatprep.subr.mxu0 0.0
        %1078 = vmatpush1.msra.mxu0 0.0
        %1079 = vmatprep.subr.mxu0 0.0
        %1080 = vmatpush1.msra.mxu0 0.0
        %1081 = vmatprep.subr.mxu0 0.0
        %1082 = vmatpush1.msra.mxu0 0.0
        %1083 = vmatprep.subr.mxu0 0.0
        %1084 = vmatpush1.msra.mxu0 0.0
        %1085 = vmatprep.subr.mxu0 0.0
        %1086 = vmatpush1.msra.mxu0 0.0
        %1087 = vmatprep.subr.mxu0 0.0
        %1088 = vmatpush1.msra.mxu0 0.0
        %1089 = vmatprep.subr.mxu0 0.0
        %1090 = vmatpush1.msra.mxu0 0.0
        %1091 = vmatprep.subr.mxu0 0.0
        %1092 = vmatpush1.msra.mxu0 0.0
        %1093 = vmatprep.subr.mxu0 0.0
        %1094 = vmatpush1.msra.mxu0 0.0
        %1095 = vmatprep.subr.mxu0 0.0
        %1096 = vmatpush1.msra.mxu0 0.0
        %1097 = vmatprep.subr.mxu0 0.0
        %1098 = vmatpush1.msra.mxu0 0.0
        %1099 = vmatprep.subr.mxu0 0.0
        %1100 = vmatpush1.msra.mxu0 0.0
        %1101 = vmatprep.subr.mxu0 0.0
        %1102 = vmatpush1.msra.mxu0 0.0
        %1103 = vmatprep.subr.mxu0 0.0
        %1104 = vmatpush1.msra.mxu0 0.0
        %1105 = vmatprep.subr.mxu0 0.0
        %1106 = vmatpush1.msra.mxu0 0.0
        %1107 = vmatprep.subr.mxu0 0.0
        %1108 = vmatpush1.msra.mxu0 0.0
        %1109 = vmatprep.subr.mxu0 0.0
        %1110 = vmatpush1.msra.mxu0 0.0
        %1111 = vmatprep.subr.mxu0 0.0
        %1112 = vmatpush1.msra.mxu0 0.0
        %1113 = vmatprep.subr.mxu0 0.0
        %1114 = vmatpush1.msra.mxu0 0.0
        %1115 = vmatprep.subr.mxu0 0.0
        %1116 = vmatpush1.msra.mxu0 0.0
        %1117 = vmatprep.mubr.f32.mxu0 0.0
        %1118 = vmatmul.mubr.f32.gmra.mrb[0].mxu0 %v1048
        %v1119 = vpop.f32.mrb[0].mxu0
        %v1120 = vadd.f32 0.0, %v1119
        %v1121 = vpop.f32.mrb[0].mxu0
        %v1122 = vadd.f32 0.0, %v1121
        %1123 = vmatprep.mubr.f32.mxu0 0.0
        %1124 = vmatmul.mubr.f32.gmra.mrb[0].mxu0 %v1051
        %v1125 = vpop.f32.mrb[0].mxu0
        %v1126 = vadd.f32 0.0, %v1125
        %v1127 = vpop.f32.mrb[0].mxu0
        %v1128 = vadd.f32 0.0, %v1127
        %1129 = vdwg.mxu0
        %v1130 = vmax.f32 %v1120, 0.0
        %v1131 = vmax.f32 %v1122, 0.0
        %v1132 = vmax.f32 %v1126, 0.0
        %v1133 = vmax.f32 %v1128, 0.0
        %v1134 = vld [vmem:[%s8] sm:$0xff]
        %v1135 = vld [vmem:[%s8 + $0x8] sm:$0xff]
        %v1137 = vsel %vm624, %v1134, 0
        %v1140 = vsel %vm624, %v1135, 0
        %1142 = vmatprep.subr.mxu0 %v899
        %1143 = vmatpush1.msra.mxu0 %v898
        %1144 = vmatprep.subr.mxu0 0.0
        %1145 = vmatpush1.msra.mxu0 0.0
        %1146 = vmatprep.subr.mxu0 0.0
        %1147 = vmatpush1.msra.mxu0 0.0
        %1148 = vmatprep.subr.mxu0 0.0
        %1149 = vmatpush1.msra.mxu0 0.0
        %1150 = vmatprep.subr.mxu0 0.0
        %1151 = vmatpush1.msra.mxu0 0.0
        %1152 = vmatprep.subr.mxu0 0.0
        %1153 = vmatpush1.msra.mxu0 0.0
        %1154 = vmatprep.subr.mxu0 0.0
        %1155 = vmatpush1.msra.mxu0 0.0
        %1156 = vmatprep.subr.mxu0 0.0
        %1157 = vmatpush1.msra.mxu0 0.0
        %1158 = vmatprep.subr.mxu0 0.0
        %1159 = vmatpush1.msra.mxu0 0.0
        %1160 = vmatprep.subr.mxu0 0.0
        %1161 = vmatpush1.msra.mxu0 0.0
        %1162 = vmatprep.subr.mxu0 0.0
        %1163 = vmatpush1.msra.mxu0 0.0
        %1164 = vmatprep.subr.mxu0 0.0
        %1165 = vmatpush1.msra.mxu0 0.0
        %1166 = vmatprep.subr.mxu0 0.0
        %1167 = vmatpush1.msra.mxu0 0.0
        %1168 = vmatprep.subr.mxu0 0.0
        %1169 = vmatpush1.msra.mxu0 0.0
        %1170 = vmatprep.subr.mxu0 0.0
        %1171 = vmatpush1.msra.mxu0 0.0
        %1172 = vmatprep.subr.mxu0 0.0
        %1173 = vmatpush1.msra.mxu0 0.0
        %1174 = vmatprep.subr.mxu0 0.0
        %1175 = vmatpush1.msra.mxu0 0.0
        %1176 = vmatprep.subr.mxu0 0.0
        %1177 = vmatpush1.msra.mxu0 0.0
        %1178 = vmatprep.subr.mxu0 0.0
        %1179 = vmatpush1.msra.mxu0 0.0
        %1180 = vmatprep.subr.mxu0 0.0
        %1181 = vmatpush1.msra.mxu0 0.0
        %1182 = vmatprep.subr.mxu0 0.0
        %1183 = vmatpush1.msra.mxu0 0.0
        %1184 = vmatprep.subr.mxu0 0.0
        %1185 = vmatpush1.msra.mxu0 0.0
        %1186 = vmatprep.subr.mxu0 0.0
        %1187 = vmatpush1.msra.mxu0 0.0
        %1188 = vmatprep.subr.mxu0 0.0
        %1189 = vmatpush1.msra.mxu0 0.0
        %1190 = vmatprep.subr.mxu0 0.0
        %1191 = vmatpush1.msra.mxu0 0.0
        %1192 = vmatprep.subr.mxu0 0.0
        %1193 = vmatpush1.msra.mxu0 0.0
        %1194 = vmatprep.subr.mxu0 0.0
        %1195 = vmatpush1.msra.mxu0 0.0
        %1196 = vmatprep.subr.mxu0 0.0
        %1197 = vmatpush1.msra.mxu0 0.0
        %1198 = vmatprep.subr.mxu0 0.0
        %1199 = vmatpush1.msra.mxu0 0.0
        %1200 = vmatprep.subr.mxu0 0.0
        %1201 = vmatpush1.msra.mxu0 0.0
        %1202 = vmatprep.subr.mxu0 0.0
        %1203 = vmatpush1.msra.mxu0 0.0
        %1204 = vmatprep.subr.mxu0 0.0
        %1205 = vmatpush1.msra.mxu0 0.0
        %1206 = vmatprep.mubr.f32.mxu0 0.0
        %1207 = vmatmul.mubr.f32.gmra.mrb[0].mxu0 %v1137
        %v1208 = vpop.f32.mrb[0].mxu0
        %v1209 = vadd.f32 0.0, %v1208
        %v1210 = vpop.f32.mrb[0].mxu0
        %v1211 = vadd.f32 0.0, %v1210
        %1212 = vmatprep.mubr.f32.mxu0 0.0
        %1213 = vmatmul.mubr.f32.gmra.mrb[0].mxu0 %v1140
        %v1214 = vpop.f32.mrb[0].mxu0
        %v1215 = vadd.f32 0.0, %v1214
        %v1216 = vpop.f32.mrb[0].mxu0
        %v1217 = vadd.f32 0.0, %v1216
        %1218 = vdwg.mxu0
        %v1219 = vadd.f32 %v1130, %v1209
        %v1220 = vadd.f32 %v1131, %v1211
        %v1221 = vadd.f32 %v1132, %v1215
        %v1222 = vadd.f32 %v1133, %v1217
        %v1223 = vmax.f32 %v1219, 0.0
        %v1224 = vmax.f32 %v1220, 0.0
        %v1225 = vmax.f32 %v1221, 0.0
        %v1226 = vmax.f32 %v1222, 0.0
        %1227 = vst [vmem:[%s411] sm:$0xff] %v1223
        %1228 = vst [vmem:[%s411 + $0x8] sm:$0xff] %v1224
        %1229 = vst [vmem:[%s411 + $0x10] sm:$0xff] %v1225
        %1230 = vst [vmem:[%s411 + $0x18] sm:$0xff] %v1226
        %s1231 = sand.u32 %s231, 1
        %s1232 = scalar_lea.sflag [#allocation4], %s1231
        %s1233 = sand.u32 %s231, 1
        %s1234 = smul.addr %s1233, 32
        %s1235 = scalar_lea.vmem [#allocation13], %s1234
        // Predicated region
        $region81: #{tpu_custom_call.1} parent=55 // pred_check
          %p1236 = pneg %p241
        $region82: #{tpu_custom_call.1} parent=55 // pred_check_branch
          %1238 = sbr.rel (%p1236) target = $region84
        $region83: #{tpu_custom_call.1} parent=55 // pred_region
          %s1239 = smul.u32 2, %s29
          %s1241 = ssub.s32 512, 512
          %1242 = vsyncadd %s1232, %s1241
          %s1243 = smul.addr %s1239, 128
          %s1244 = scalar_lea.hbm %s9, %s1243
          %s1245 = sshll.u32 %s1235, 4
          %s1246 = int_to_ptr.vmem [resolvable:$true] %s1245
          %1251 = dma.vmem_to_hbm [thread:$0]  %s1246, 512, %s1244, %s1232, 256, 512, 16
        $region84: #{tpu_custom_call.1} parent=55 // pred_fallthru
          _
      $region56: #{tpu_custom_call.1} parent=5 // pred_fallthru
        _
      %p1252 = scmp.le.s32.totalorder 2, %s24
      // Predicated region
      $region85: #{tpu_custom_call.1} parent=5 // pred_check
        %p1253 = pneg %p1252
      $region86: #{tpu_custom_call.1} parent=5 // pred_check_branch
        %1255 = sbr.rel (%p1253) target = $region88
      $region87: #{tpu_custom_call.1} parent=5 // pred_region
        %s1256 = ssub.s32 %s24, 2
        // Predicated region
        $region89: #{tpu_custom_call.1} parent=87 // pred_check
          %p1257 = pneg %p247
        $region90: #{tpu_custom_call.1} parent=87 // pred_check_branch
          %1259 = sbr.rel (%p1257) target = $region92
        $region91: #{tpu_custom_call.1} parent=87 // pred_region
          %s1260 = sand.u32 %s232, 1
          %s1261 = scalar_lea.sflag [#allocation4], %s1260
          %s1262 = sand.u32 %s232, 1
          %s1263 = smul.addr %s1262, 32
          %s1264 = scalar_lea.vmem [#allocation13], %s1263
          %1265 = dma.done %s1261, 512
        $region92: #{tpu_custom_call.1} parent=87 // pred_fallthru
          _
      $region88: #{tpu_custom_call.1} parent=5 // pred_fallthru
        _
    $region6: #{tpu_custom_call.1} parent=1 // loop_footer
      %s28 = sadd.s32 1, %s24
    $region7: #{tpu_custom_call.1} parent=1 // loop_footer_branch
      %23 = sbr.rel target = $region3
    $region8: #{tpu_custom_call.1} parent=1 // loop_exit
      _
    %1266 = vsyncpa [#allocation3], 1
    %s1267 = scalar_lea.sflag [#allocation3], 1
    %1268 = vsyncpa %s1267, 1
    %1269 = vsyncpa [#allocation6], 1
    %1270 = vsyncpa [#allocation9], 1
    %1271 = vsyncpa [#allocation12], 1
    %1272 = vsyncpa [#allocation4], 1
    %s1273 = scalar_lea.sflag [#allocation4], 1
    %1274 = vsyncpa %s1273, 1

// kernel: tpu_custom_call.1
$region0: #{tpu_custom_call.1}
  #allocation0 [shape = 'u32[]', space=smem, size = 0x4, offset = 0x4, fixed_abs, tag = 'smem constant byte address 0x4 - core index']
  #allocation1 [shape = 'u32[144,128]{1,0:T(1,128)}', space=vmem, size = 0x12000, scoped, tag = 'internal scratch']
  %s0 = inlined_call_operand.hbm [shape: f32[8,512], index: 0, kind: input, shape index: {}]
  %s1 = inlined_call_operand.hbm [shape: f32[8,24], index: 1, kind: input, shape index: {}]
  %s2 = inlined_call_operand.hbm [shape: f32[8,24], index: 2, kind: input, shape index: {}]
  %s3 = inlined_call_operand.hbm [shape: f32[8,8], index: 3, kind: input, shape index: {}]
  %s4 = inlined_call_operand.hbm [shape: f32[8,24], index: 4, kind: input, shape index: {}]
  %s5 = inlined_call_operand.hbm [shape: f32[8,24], index: 5, kind: input, shape index: {}]
  %s6 = inlined_call_operand.vmem [shape: f32[16,24], index: 6, kind: input, shape index: {}]
  %s7 = inlined_call_operand.vmem [shape: f32[16,48], index: 7, kind: input, shape index: {}]
  %s8 = inlined_call_operand.vmem [shape: f32[16,8], index: 8, kind: input, shape index: {}]
  %s9 = inlined_call_operand.hbm [shape: f32[16,512], index: 9, kind: output, shape index: {}]
  %s10 = sld [smem:[#allocation0]]
  $region93: #{tpu_custom_call.1} parent=0
    _
  %s12 = ssub.s32 1, %s10
  %s13 = scalar_select 0, %s12, %s10
  $region1: #{tpu_custom_call.1} parent=0
    #allocation2 [shape = 'u8[16384]{0}', space=vmem, size = 0x4000, scoped, tag = 'input window, operand 0']
    #allocation3 [shape = 's32[2]{0}', space=sflag, size = 0x8, scoped, tag = 'scoped memory for tpu_custom_call.1']
    #allocation4 [shape = 's32[2]{0}', space=sflag, size = 0x8, scoped, tag = 'scoped memory for tpu_custom_call.1']
    #allocation5 [shape = 'u8[4096]{0}', space=vmem, size = 0x1000, scoped, tag = 'input window, operand 1, single buffered']
    #allocation6 [shape = 's32[1]{0}', space=sflag, size = 0x4, scoped, tag = 'scoped memory for tpu_custom_call.1']
    #allocation7 [shape = 'u8[4096]{0}', space=vmem, size = 0x1000, scoped, tag = 'input window, operand 2, single buffered']
    #allocation8 [shape = 'u8[4096]{0}', space=vmem, size = 0x1000, scoped, tag = 'input window, operand 3, single buffered']
    #allocation9 [shape = 's32[1]{0}', space=sflag, size = 0x4, scoped, tag = 'scoped memory for tpu_custom_call.1']
    #allocation10 [shape = 'u8[4096]{0}', space=vmem, size = 0x1000, scoped, tag = 'input window, operand 4, single buffered']
    #allocation11 [shape = 'u8[4096]{0}', space=vmem, size = 0x1000, scoped, tag = 'input window, operand 5, single buffered']
    #allocation12 [shape = 's32[1]{0}', space=sflag, size = 0x4, scoped, tag = 'scoped memory for tpu_custom_call.1']
    #allocation13 [shape = 'u8[32768]{0}', space=vmem, size = 0x8000, scoped, tag = 'output window, operand 0']
    %14 = vsyncpa [#allocation3], 0
    %s15 = scalar_lea.sflag [#allocation3], 1
    %16 = vsyncpa %s15, 0
    %17 = vsyncpa [#allocation6], 0
    %18 = vsyncpa [#allocation9], 0
    %19 = vsyncpa [#allocation12], 0
    %20 = vsyncpa [#allocation4], 0
    %s21 = scalar_lea.sflag [#allocation4], 1
    %22 = vsyncpa %s21, 0
    loop: start=0, step=1, limit=4
    $region2: #{tpu_custom_call.1} parent=1 // loop_pre_header
      _
    $region3: #{tpu_custom_call.1} parent=1 // loop_header
      %s24 = sphi 0, %s28
      %p25 = scmp.ge.s32.totalorder %s24, 4
      %s34 = sphi 0, %s36
      %s37 = sphi 0, %s34
      %s38 = sphi 0, %s37
      %s54 = sphi 0, %s38
      %s58 = sphi 0, %s58
      %s60 = sphi 0, %s58
      %s61 = sphi 0, %s60
      %s75 = sphi 0, %s61
      %s79 = sphi 0, %s79
      %s81 = sphi 0, %s79
      %s82 = sphi 0, %s81
      %s96 = sphi 0, %s82
      %s100 = sphi 0, %s100
      %s102 = sphi 0, %s100
      %s103 = sphi 0, %s102
      %s117 = sphi 0, %s103
      %s121 = sphi 0, %s121
      %s123 = sphi 0, %s121
      %s124 = sphi 0, %s123
      %s138 = sphi 0, %s124
      %s142 = sphi 0, %s142
      %s144 = sphi 0, %s142
      %s145 = sphi 0, %s144
      %s159 = sphi 0, %s145
      %s163 = sphi 0, %s163
      %s165 = sphi 0, %s163
      %s166 = sphi 0, %s165
      %s180 = sphi 0, %s166
      %s184 = sphi 0, %s184
      %s186 = sphi 0, %s184
      %s187 = sphi 0, %s186
      %s201 = sphi 0, %s187
      %s205 = sphi 0, %s205
      %s207 = sphi 0, %s205
      %s208 = sphi 0, %s207
      %s222 = sphi 0, %s208
      %s228 = sphi 0, %s230
      %s231 = sphi 0, %s228
      %s232 = sphi 0, %s231
      %s248 = sphi 0, %s232
    $region4: #{tpu_custom_call.1} parent=1 // loop_header_branch
      %27 = sbr.rel (%p25) target = $region8
    $region5: #{tpu_custom_call.1} parent=1 // loop_body
      %s29 = ssub.s32 %s24, 1
      %s30 = ssub.s32 %s24, 2
      %s31 = sadd.s32 %s24, 1
      %s32 = ssub.s32 %s24, %s31
      %p33 = scmp.eq.s32.totalorder %s32, 0
      %s35 = sadd.s32 %s34, 1
      %s36 = scalar_select %p33, %s34, %s35
      %p39 = pneg %p33
      %p40 = scmp.eq.s32.totalorder %s24, 1
      %p41 = por %p39, %p40
      %p42 = scmp.ne.s32.totalorder %s34, %s37
      %p43 = scmp.eq.s32.totalorder %s24, 0
      %p44 = por %p42, %p43
      %p45 = scmp.ne.s32.totalorder %s34, %s37
      %p46 = scmp.eq.s32.totalorder %s29, 1
      %p47 = por %p45, %p46
      %p48 = scmp.ne.s32.totalorder %s37, %s38
      %p49 = scmp.eq.s32.totalorder %s29, 0
      %p50 = por %p48, %p49
      %p51 = scmp.ne.s32.totalorder %s37, %s38
      %p52 = scmp.eq.s32.totalorder %s30, 1
      %p53 = por %p51, %p52
      %p55 = scmp.ne.s32.totalorder %s38, %s54
      %p56 = scmp.eq.s32.totalorder %s30, 0
      %p57 = por %p55, %p56
      %s59 = sadd.s32 %s58, 1
      %p62 = scmp.eq.s32.totalorder %s24, 1
      %p63 = scmp.ne.s32.totalorder %s58, %s60
      %p64 = scmp.eq.s32.totalorder %s24, 0
      %p65 = por %p63, %p64
      %p66 = scmp.ne.s32.totalorder %s58, %s60
      %p67 = scmp.eq.s32.totalorder %s29, 1
      %p68 = por %p66, %p67
      %p69 = scmp.ne.s32.totalorder %s60, %s61
      %p70 = scmp.eq.s32.totalorder %s29, 0
      %p71 = por %p69, %p70
      %p72 = scmp.ne.s32.totalorder %s60, %s61
      %p73 = scmp.eq.s32.totalorder %s30, 1
      %p74 = por %p72, %p73
      %p76 = scmp.ne.s32.totalorder %s61, %s75
      %p77 = scmp.eq.s32.totalorder %s30, 0
      %p78 = por %p76, %p77
      %s80 = sadd.s32 %s79, 1
      %p83 = scmp.eq.s32.totalorder %s24, 1
      %p84 = scmp.ne.s32.totalorder %s79, %s81
      %p85 = scmp.eq.s32.totalorder %s24, 0
      %p86 = por %p84, %p85
      %p87 = scmp.ne.s32.totalorder %s79, %s81
      %p88 = scmp.eq.s32.totalorder %s29, 1
      %p89 = por %p87, %p88
      %p90 = scmp.ne.s32.totalorder %s81, %s82
      %p91 = scmp.eq.s32.totalorder %s29, 0
      %p92 = por %p90, %p91
      %p93 = scmp.ne.s32.totalorder %s81, %s82
      %p94 = scmp.eq.s32.totalorder %s30, 1
      %p95 = por %p93, %p94
      %p97 = scmp.ne.s32.totalorder %s82, %s96
      %p98 = scmp.eq.s32.totalorder %s30, 0
      %p99 = por %p97, %p98
      %s101 = sadd.s32 %s100, 1
      %p104 = scmp.eq.s32.totalorder %s24, 1
      %p105 = scmp.ne.s32.totalorder %s100, %s102
      %p106 = scmp.eq.s32.totalorder %s24, 0
      %p107 = por %p105, %p106
      %p108 = scmp.ne.s32.totalorder %s100, %s102
      %p109 = scmp.eq.s32.totalorder %s29, 1
      %p110 = por %p108, %p109
      %p111 = scmp.ne.s32.totalorder %s102, %s103
      %p112 = scmp.eq.s32.totalorder %s29, 0
      %p113 = por %p111, %p112
      %p114 = scmp.ne.s32.totalorder %s102, %s103
      %p115 = scmp.eq.s32.totalorder %s30, 1
      %p116 = por %p114, %p115
      %p118 = scmp.ne.s32.totalorder %s103, %s117
      %p119 = scmp.eq.s32.totalorder %s30, 0
      %p120 = por %p118, %p119
      %s122 = sadd.s32 %s121, 1
      %p125 = scmp.eq.s32.totalorder %s24, 1
      %p126 = scmp.ne.s32.totalorder %s121, %s123
      %p127 = scmp.eq.s32.totalorder %s24, 0
      %p128 = por %p126, %p127
      %p129 = scmp.ne.s32.totalorder %s121, %s123
      %p130 = scmp.eq.s32.totalorder %s29, 1
      %p131 = por %p129, %p130
      %p132 = scmp.ne.s32.totalorder %s123, %s124
      %p133 = scmp.eq.s32.totalorder %s29, 0
      %p134 = por %p132, %p133
      %p135 = scmp.ne.s32.totalorder %s123, %s124
      %p136 = scmp.eq.s32.totalorder %s30, 1
      %p137 = por %p135, %p136
      %p139 = scmp.ne.s32.totalorder %s124, %s138
      %p140 = scmp.eq.s32.totalorder %s30, 0
      %p141 = por %p139, %p140
      %s143 = sadd.s32 %s142, 1
      %p146 = scmp.eq.s32.totalorder %s24, 1
      %p147 = scmp.ne.s32.totalorder %s142, %s144
      %p148 = scmp.eq.s32.totalorder %s24, 0
      %p149 = por %p147, %p148
      %p150 = scmp.ne.s32.totalorder %s142, %s144
      %p151 = scmp.eq.s32.totalorder %s29, 1
      %p152 = por %p150, %p151
      %p153 = scmp.ne.s32.totalorder %s144, %s145
      %p154 = scmp.eq.s32.totalorder %s29, 0
      %p155 = por %p153, %p154
      %p156 = scmp.ne.s32.totalorder %s144, %s145
      %p157 = scmp.eq.s32.totalorder %s30, 1
      %p158 = por %p156, %p157
      %p160 = scmp.ne.s32.totalorder %s145, %s159
      %p161 = scmp.eq.s32.totalorder %s30, 0
      %p162 = por %p160, %p161
      %s164 = sadd.s32 %s163, 1
      %p167 = scmp.eq.s32.totalorder %s24, 1
      %p168 = scmp.ne.s32.totalorder %s163, %s165
      %p169 = scmp.eq.s32.totalorder %s24, 0
      %p170 = por %p168, %p169
      %p171 = scmp.ne.s32.totalorder %s163, %s165
      %p172 = scmp.eq.s32.totalorder %s29, 1
      %p173 = por %p171, %p172
      %p174 = scmp.ne.s32.totalorder %s165, %s166
      %p175 = scmp.eq.s32.totalorder %s29, 0
      %p176 = por %p174, %p175
      %p177 = scmp.ne.s32.totalorder %s165, %s166
      %p178 = scmp.eq.s32.totalorder %s30, 1
      %p179 = por %p177, %p178
      %p181 = scmp.ne.s32.totalorder %s166, %s180
      %p182 = scmp.eq.s32.totalorder %s30, 0
      %p183 = por %p181, %p182
      %s185 = sadd.s32 %s184, 1
      %p188 = scmp.eq.s32.totalorder %s24, 1
      %p189 = scmp.ne.s32.totalorder %s184, %s186
      %p190 = scmp.eq.s32.totalorder %s24, 0
      %p191 = por %p189, %p190
      %p192 = scmp.ne.s32.totalorder %s184, %s186
      %p193 = scmp.eq.s32.totalorder %s29, 1
      %p194 = por %p192, %p193
      %p195 = scmp.ne.s32.totalorder %s186, %s187
      %p196 = scmp.eq.s32.totalorder %s29, 0
      %p197 = por %p195, %p196
      %p198 = scmp.ne.s32.totalorder %s186, %s187
      %p199 = scmp.eq.s32.totalorder %s30, 1
      %p200 = por %p198, %p199
      %p202 = scmp.ne.s32.totalorder %s187, %s201
      %p203 = scmp.eq.s32.totalorder %s30, 0
      %p204 = por %p202, %p203
      %s206 = sadd.s32 %s205, 1
      %p209 = scmp.eq.s32.totalorder %s24, 1
      %p210 = scmp.ne.s32.totalorder %s205, %s207
      %p211 = scmp.eq.s32.totalorder %s24, 0
      %p212 = por %p210, %p211
      %p213 = scmp.ne.s32.totalorder %s205, %s207
      %p214 = scmp.eq.s32.totalorder %s29, 1
      %p215 = por %p213, %p214
      %p216 = scmp.ne.s32.totalorder %s207, %s208
      %p217 = scmp.eq.s32.totalorder %s29, 0
      %p218 = por %p216, %p217
      %p219 = scmp.ne.s32.totalorder %s207, %s208
      %p220 = scmp.eq.s32.totalorder %s30, 1
      %p221 = por %p219, %p220
      %p223 = scmp.ne.s32.totalorder %s208, %s222
      %p224 = scmp.eq.s32.totalorder %s30, 0
      %p225 = por %p223, %p224
      %s226 = ssub.s32 %s24, %s31
      %p227 = scmp.eq.s32.totalorder %s226, 0
      %s229 = sadd.s32 %s228, 1
      %s230 = scalar_select %p227, %s228, %s229
      %p233 = pneg %p227
      %p234 = scmp.eq.s32.totalorder %s24, 1
      %p235 = por %p233, %p234
      %p236 = scmp.ne.s32.totalorder %s228, %s231
      %p237 = scmp.eq.s32.totalorder %s24, 0
      %p238 = por %p236, %p237
      %p239 = scmp.ne.s32.totalorder %s228, %s231
      %p240 = scmp.eq.s32.totalorder %s29, 1
      %p241 = por %p239, %p240
      %p242 = scmp.ne.s32.totalorder %s231, %s232
      %p243 = scmp.eq.s32.totalorder %s29, 0
      %p244 = por %p242, %p243
      %p245 = scmp.ne.s32.totalorder %s231, %s232
      %p246 = scmp.eq.s32.totalorder %s30, 1
      %p247 = por %p245, %p246
      %p249 = scmp.ne.s32.totalorder %s232, %s248
      %p250 = scmp.eq.s32.totalorder %s30, 0
      %p251 = por %p249, %p250
      %p252 = scmp.le.s32.totalorder 1, %s24
      %p253 = scmp.lt.s32.totalorder %s24, 3
      %p254 = pnand %p252, %p253
      %p255 = pneg %p254
      // Predicated region
      $region9: #{tpu_custom_call.1} parent=5 // pred_check
        _
      $region10: #{tpu_custom_call.1} parent=5 // pred_check_branch
        %257 = sbr.rel (%p254) target = $region12
      $region11: #{tpu_custom_call.1} parent=5 // pred_region
        %s258 = ssub.s32 %s24, 1
        // Predicated region
        $region13: #{tpu_custom_call.1} parent=11 // pred_check
          %p259 = pneg %p71
        $region14: #{tpu_custom_call.1} parent=11 // pred_check_branch
          %261 = sbr.rel (%p259) target = $region16
        $region15: #{tpu_custom_call.1} parent=11 // pred_region
          %s263 = ssub.s32 128, 128
          %264 = vsyncadd [#allocation6], %s263
          %s266 = sshll.u32 [#allocation5], 4
          %s267 = int_to_ptr.vmem [resolvable:$true] %s266
          %269 = dma.hbm_to_vmem [thread:$0]  %s1, 128, %s267, [#allocation6]
        $region16: #{tpu_custom_call.1} parent=11 // pred_fallthru
          _
        // Predicated region
        $region17: #{tpu_custom_call.1} parent=11 // pred_check
          %p270 = pneg %p92
        $region18: #{tpu_custom_call.1} parent=11 // pred_check_branch
          %272 = sbr.rel (%p270) target = $region20
        $region19: #{tpu_custom_call.1} parent=11 // pred_region
          %s274 = ssub.s32 128, 128
          %275 = vsyncadd [#allocation6], %s274
          %s277 = sshll.u32 [#allocation7], 4
          %s278 = int_to_ptr.vmem [resolvable:$true] %s277
          %280 = dma.hbm_to_vmem [thread:$0]  %s2, 128, %s278, [#allocation6]
        $region20: #{tpu_custom_call.1} parent=11 // pred_fallthru
          _
        // Predicated region
        $region21: #{tpu_custom_call.1} parent=11 // pred_check
          %p281 = pneg %p113
        $region22: #{tpu_custom_call.1} parent=11 // pred_check_branch
          %283 = sbr.rel (%p281) target = $region24
        $region23: #{tpu_custom_call.1} parent=11 // pred_region
          %s285 = ssub.s32 128, 128
          %286 = vsyncadd [#allocation9], %s285
          %s288 = sshll.u32 [#allocation8], 4
          %s289 = int_to_ptr.vmem [resolvable:$true] %s288
          %291 = dma.hbm_to_vmem [thread:$0]  %s3, 128, %s289, [#allocation9]
        $region24: #{tpu_custom_call.1} parent=11 // pred_fallthru
          _
        // Predicated region
        $region25: #{tpu_custom_call.1} parent=11 // pred_check
          %p292 = pneg %p134
        $region26: #{tpu_custom_call.1} parent=11 // pred_check_branch
          %294 = sbr.rel (%p292) target = $region28
        $region27: #{tpu_custom_call.1} parent=11 // pred_region
          %s296 = ssub.s32 128, 128
          %297 = vsyncadd [#allocation9], %s296
          %s299 = sshll.u32 [#allocation10], 4
          %s300 = int_to_ptr.vmem [resolvable:$true] %s299
          %302 = dma.hbm_to_vmem [thread:$0]  %s4, 128, %s300, [#allocation9]
        $region28: #{tpu_custom_call.1} parent=11 // pred_fallthru
          _
        // Predicated region
        $region29: #{tpu_custom_call.1} parent=11 // pred_check
          %p303 = pneg %p155
        $region30: #{tpu_custom_call.1} parent=11 // pred_check_branch
          %305 = sbr.rel (%p303) target = $region32
        $region31: #{tpu_custom_call.1} parent=11 // pred_region
          %s307 = ssub.s32 128, 128
          %308 = vsyncadd [#allocation12], %s307
          %s310 = sshll.u32 [#allocation11], 4
          %s311 = int_to_ptr.vmem [resolvable:$true] %s310
          %313 = dma.hbm_to_vmem [thread:$0]  %s5, 128, %s311, [#allocation12]
        $region32: #{tpu_custom_call.1} parent=11 // pred_fallthru
          _
        // Predicated region
        $region33: #{tpu_custom_call.1} parent=11 // pred_check
          %p314 = pneg %p176
        $region34: #{tpu_custom_call.1} parent=11 // pred_check_branch
          %316 = sbr.rel (%p314) target = $region36
        $region35: #{tpu_custom_call.1} parent=11 // pred_region
          _
        $region36: #{tpu_custom_call.1} parent=11 // pred_fallthru
          _
        // Predicated region
        $region37: #{tpu_custom_call.1} parent=11 // pred_check
          %p317 = pneg %p197
        $region38: #{tpu_custom_call.1} parent=11 // pred_check_branch
          %319 = sbr.rel (%p317) target = $region40
        $region39: #{tpu_custom_call.1} parent=11 // pred_region
          _
        $region40: #{tpu_custom_call.1} parent=11 // pred_fallthru
          _
        // Predicated region
        $region41: #{tpu_custom_call.1} parent=11 // pred_check
          %p320 = pneg %p218
        $region42: #{tpu_custom_call.1} parent=11 // pred_check_branch
          %322 = sbr.rel (%p320) target = $region44
        $region43: #{tpu_custom_call.1} parent=11 // pred_region
          _
        $region44: #{tpu_custom_call.1} parent=11 // pred_fallthru
          _
      $region12: #{tpu_custom_call.1} parent=5 // pred_fallthru
        _
      %p323 = scmp.lt.s32.totalorder %s24, 2
      // Predicated region
      $region45: #{tpu_custom_call.1} parent=5 // pred_check
        %p324 = pneg %p323
      $region46: #{tpu_custom_call.1} parent=5 // pred_check_branch
        %326 = sbr.rel (%p324) target = $region48
      $region47: #{tpu_custom_call.1} parent=5 // pred_region
        // Predicated region
        $region49: #{tpu_custom_call.1} parent=47 // pred_check
          %p327 = pneg %p44
        $region50: #{tpu_custom_call.1} parent=47 // pred_check_branch
          %329 = sbr.rel (%p327) target = $region52
        $region51: #{tpu_custom_call.1} parent=47 // pred_region
          %s330 = sand.u32 %s34, 1
          %s331 = scalar_lea.sflag [#allocation3], %s330
          %s332 = sand.u32 %s34, 1
          %s333 = smul.addr %s332, 16
          %s334 = scalar_lea.vmem [#allocation2], %s333
          %s335 = smul.u32 2, %s24
          %s337 = ssub.s32 256, 256
          %338 = vsyncadd %s331, %s337
          %s339 = smul.addr %s335, 128
          %s340 = scalar_lea.hbm %s0, %s339
          %s342 = sshll.u32 %s334, 4
          %s343 = int_to_ptr.vmem [resolvable:$true] %s342
          %345 = dma.hbm_to_vmem [thread:$0]  %s340, 256, %s343, %s331
        $region52: #{tpu_custom_call.1} parent=47 // pred_fallthru
          _
      $region48: #{tpu_custom_call.1} parent=5 // pred_fallthru
        _
      %p346 = scmp.le.s32.totalorder 1, %s24
      %p347 = scmp.lt.s32.totalorder %s24, 3
      %p348 = pnand %p346, %p347
      %p349 = pneg %p348
      // Predicated region
      $region53: #{tpu_custom_call.1} parent=5 // pred_check
        _
      $region54: #{tpu_custom_call.1} parent=5 // pred_check_branch
        %351 = sbr.rel (%p348) target = $region56
      $region55: #{tpu_custom_call.1} parent=5 // pred_region
        %s352 = ssub.s32 %s24, 1
        %s353 = sand.u32 %s37, 1
        %s354 = scalar_lea.sflag [#allocation3], %s353
        %s355 = sand.u32 %s37, 1
        %s356 = smul.addr %s355, 16
        %s357 = scalar_lea.vmem [#allocation2], %s356
        // Predicated region
        $region57: #{tpu_custom_call.1} parent=55 // pred_check
          %p358 = pneg %p50
        $region58: #{tpu_custom_call.1} parent=55 // pred_check_branch
          %360 = sbr.rel (%p358) target = $region60
        $region59: #{tpu_custom_call.1} parent=55 // pred_region
          %361 = dma.done %s354, 256
        $region60: #{tpu_custom_call.1} parent=55 // pred_fallthru
          _
        // Predicated region
        $region61: #{tpu_custom_call.1} parent=55 // pred_check
          %p362 = pneg %p71
        $region62: #{tpu_custom_call.1} parent=55 // pred_check_branch
          %364 = sbr.rel (%p362) target = $region64
        $region63: #{tpu_custom_call.1} parent=55 // pred_region
          %365 = dma.done [#allocation6], 128
        $region64: #{tpu_custom_call.1} parent=55 // pred_fallthru
          _
        // Predicated region
        $region65: #{tpu_custom_call.1} parent=55 // pred_check
          %p366 = pneg %p92
        $region66: #{tpu_custom_call.1} parent=55 // pred_check_branch
          %368 = sbr.rel (%p366) target = $region68
        $region67: #{tpu_custom_call.1} parent=55 // pred_region
          %369 = dma.done [#allocation6], 128
        $region68: #{tpu_custom_call.1} parent=55 // pred_fallthru
          _
        // Predicated region
        $region69: #{tpu_custom_call.1} parent=55 // pred_check
          %p370 = pneg %p113
        $region70: #{tpu_custom_call.1} parent=55 // pred_check_branch
          %372 = sbr.rel (%p370) target = $region72
        $region71: #{tpu_custom_call.1} parent=55 // pred_region
          %373 = dma.done [#allocation9], 128
        $region72: #{tpu_custom_call.1} parent=55 // pred_fallthru
          _
        // Predicated region
        $region73: #{tpu_custom_call.1} parent=55 // pred_check
          %p374 = pneg %p134
        $region74: #{tpu_custom_call.1} parent=55 // pred_check_branch
          %376 = sbr.rel (%p374) target = $region76
        $region75: #{tpu_custom_call.1} parent=55 // pred_region
          %377 = dma.done [#allocation9], 128
        $region76: #{tpu_custom_call.1} parent=55 // pred_fallthru
          _
        // Predicated region
        $region77: #{tpu_custom_call.1} parent=55 // pred_check
          %p378 = pneg %p155
        $region78: #{tpu_custom_call.1} parent=55 // pred_check_branch
          %380 = sbr.rel (%p378) target = $region80
        $region79: #{tpu_custom_call.1} parent=55 // pred_region
          %381 = dma.done [#allocation12], 128
        $region80: #{tpu_custom_call.1} parent=55 // pred_fallthru
          _
        %s382 = sand.u32 %s37, 1
        %s383 = scalar_lea.sflag [#allocation3], %s382
        %s384 = sand.u32 %s37, 1
        %s385 = smul.addr %s384, 16
        %s386 = scalar_lea.vmem [#allocation2], %s385
        %p387 = pneg %p50
        %p388 = pneg %p47
        %p389 = pneg %p71
        %p390 = pneg %p68
        %p391 = pneg %p92
        %p392 = pneg %p89
        %p393 = pneg %p113
        %p394 = pneg %p110
        %p395 = pneg %p134
        %p396 = pneg %p131
        %p397 = pneg %p155
        %p398 = pneg %p152
        %p399 = pneg %p176
        %p400 = pneg %p173
        %p401 = pneg %p197
        %p402 = pneg %p194
        %p403 = pneg %p218
        %p404 = pneg %p215
        %p405 = pneg %p244
        %p406 = pneg %p241
        %s407 = sand.u32 %s231, 1
        %s408 = scalar_lea.sflag [#allocation4], %s407
        %s409 = sand.u32 %s231, 1
        %s410 = smul.addr %s409, 32
        %s411 = scalar_lea.vmem [#allocation13], %s410
        %s412 = smul.u32 2, %s29
        %s413 = smul.u32 2, %s29
        %v414 = vlaneseq
        %v415 = vand.u32 %v414, 127
        %vm416 = vcmp.ge.s32.totalorder %v415, 1
        %vm417 = vcmp.ge.s32.totalorder %v415, 2
        %vm418 = vcmp.ge.s32.totalorder %v415, 4
        %vm419 = vcmp.ge.s32.totalorder %v415, 8
        %v420 = vld [vmem:[%s357] sm:$0xff]
        %v421 = vld [vmem:[%s357 + $0x8] sm:$0xff]
        %422 = vrot.lane.b32.xlu0 %v420, 2
        %v423 = vpop.permute.xlu0 %422
        %424 = vrot.lane.b32.xlu0 %v421, 2
        %v425 = vpop.permute.xlu0 %424
        %vm426 = vcmp.lt.s32.totalorder %v415, 2
        %v427 = vsel %vm426, %v423, %v425
        %v428 = vsel %vm426, %v425, %v423
        %v429 = vsel %vm417, 1, 0
        %v430 = vlaneseq
        %v431 = vshrl.u32 %v430, 7
        %v432 = vsub.s32 0, %v431
        %v433 = vrot.slane %v429, %v432
        %vm434 = vcmp.eq.s32.totalorder %v433, 1
        %v435 = vsel %vm434, %v428, 0.0
        %v436 = vsel %vm434, %v427, 0.0
        %437 = vrot.lane.b32.xlu0 %v420, 1
        %v438 = vpop.permute.xlu0 %437
        %439 = vrot.lane.b32.xlu0 %v421, 1
        %v440 = vpop.permute.xlu0 %439
        %vm441 = vcmp.lt.s32.totalorder %v415, 1
        %v442 = vsel %vm441, %v438, %v440
        %v443 = vsel %vm441, %v440, %v438
        %v444 = vsel %vm416, 1, 0
        %v445 = vlaneseq
        %v446 = vshrl.u32 %v445, 7
        %v447 = vsub.s32 0, %v446
        %v448 = vrot.slane %v444, %v447
        %vm449 = vcmp.eq.s32.totalorder %v448, 1
        %v450 = vsel %vm449, %v443, 0.0
        %v451 = vsel %vm449, %v442, 0.0
        %v452 = vld [vmem:[#allocation5] sm:$0xff]
        %vm453 = vcmask 195584
        %v455 = vsel %vm453, %v452, 0
        %457 = vmatprep.subr.mxu0 %v436
        %458 = vmatpush1.msra.mxu0 %v435
        %459 = vmatprep.subr.mxu0 %v451
        %460 = vmatpush1.msra.mxu0 %v450
        %461 = vmatprep.subr.mxu0 %v421
        %462 = vmatpush1.msra.mxu0 %v420
        %463 = vmatprep.subr.mxu0 0.0
        %464 = vmatpush1.msra.mxu0 0.0
        %465 = vmatprep.subr.mxu0 0.0
        %466 = vmatpush1.msra.mxu0 0.0
        %467 = vmatprep.subr.mxu0 0.0
        %468 = vmatpush1.msra.mxu0 0.0
        %469 = vmatprep.subr.mxu0 0.0
        %470 = vmatpush1.msra.mxu0 0.0
        %471 = vmatprep.subr.mxu0 0.0
        %472 = vmatpush1.msra.mxu0 0.0
        %473 = vmatprep.subr.mxu0 0.0
        %474 = vmatpush1.msra.mxu0 0.0
        %475 = vmatprep.subr.mxu0 0.0
        %476 = vmatpush1.msra.mxu0 0.0
        %477 = vmatprep.subr.mxu0 0.0
        %478 = vmatpush1.msra.mxu0 0.0
        %479 = vmatprep.subr.mxu0 0.0
        %480 = vmatpush1.msra.mxu0 0.0
        %481 = vmatprep.subr.mxu0 0.0
        %482 = vmatpush1.msra.mxu0 0.0
        %483 = vmatprep.subr.mxu0 0.0
        %484 = vmatpush1.msra.mxu0 0.0
        %485 = vmatprep.subr.mxu0 0.0
        %486 = vmatpush1.msra.mxu0 0.0
        %487 = vmatprep.subr.mxu0 0.0
        %488 = vmatpush1.msra.mxu0 0.0
        %489 = vmatprep.subr.mxu0 0.0
        %490 = vmatpush1.msra.mxu0 0.0
        %491 = vmatprep.subr.mxu0 0.0
        %492 = vmatpush1.msra.mxu0 0.0
        %493 = vmatprep.subr.mxu0 0.0
        %494 = vmatpush1.msra.mxu0 0.0
        %495 = vmatprep.subr.mxu0 0.0
        %496 = vmatpush1.msra.mxu0 0.0
        %497 = vmatprep.subr.mxu0 0.0
        %498 = vmatpush1.msra.mxu0 0.0
        %499 = vmatprep.subr.mxu0 0.0
        %500 = vmatpush1.msra.mxu0 0.0
        %501 = vmatprep.subr.mxu0 0.0
        %502 = vmatpush1.msra.mxu0 0.0
        %503 = vmatprep.subr.mxu0 0.0
        %504 = vmatpush1.msra.mxu0 0.0
        %505 = vmatprep.subr.mxu0 0.0
        %506 = vmatpush1.msra.mxu0 0.0
        %507 = vmatprep.subr.mxu0 0.0
        %508 = vmatpush1.msra.mxu0 0.0
        %509 = vmatprep.subr.mxu0 0.0
        %510 = vmatpush1.msra.mxu0 0.0
        %511 = vmatprep.subr.mxu0 0.0
        %512 = vmatpush1.msra.mxu0 0.0
        %513 = vmatprep.subr.mxu0 0.0
        %514 = vmatpush1.msra.mxu0 0.0
        %515 = vmatprep.subr.mxu0 0.0
        %516 = vmatpush1.msra.mxu0 0.0
        %517 = vmatprep.subr.mxu0 0.0
        %518 = vmatpush1.msra.mxu0 0.0
        %519 = vmatprep.subr.mxu0 0.0
        %520 = vmatpush1.msra.mxu0 0.0
        %521 = vmatprep.mubr.f32.mxu0 0.0
        %522 = vmatmul.mubr.f32.gmra.mrb[0].mxu0 %v455
        %v523 = vpop.f32.mrb[0].mxu0
        %v524 = vadd.f32 0.0, %v523
        %v525 = vpop.f32.mrb[0].mxu0
        %v526 = vadd.f32 0.0, %v525
        %527 = vdwg.mxu0
        %v528 = vmax.f32 %v524, 0.0
        %v529 = vmax.f32 %v526, 0.0
        %530 = vrot.lane.b32.xlu0 %v528, 2
        %v531 = vpop.permute.xlu0 %530
        %532 = vrot.lane.b32.xlu0 %v529, 2
        %v533 = vpop.permute.xlu0 %532
        %v534 = vsel %vm426, %v531, %v533
        %v535 = vsel %vm426, %v533, %v531
        %v536 = vsel %vm434, %v535, 0.0
        %v537 = vsel %vm434, %v534, 0.0
        %538 = vrot.lane.b32.xlu0 %v528, 1
        %v539 = vpop.permute.xlu0 %538
        %540 = vrot.lane.b32.xlu0 %v529, 1
        %v541 = vpop.permute.xlu0 %540
        %v542 = vsel %vm441, %v539, %v541
        %v543 = vsel %vm441, %v541, %v539
        %v544 = vsel %vm449, %v543, 0.0
        %v545 = vsel %vm449, %v542, 0.0
        %v546 = vld [vmem:[#allocation7] sm:$0xff]
        %v548 = vsel %vm453, %v546, 0
        %550 = vmatprep.subr.mxu0 %v537
        %551 = vmatpush1.msra.mxu0 %v536
        %552 = vmatprep.subr.mxu0 %v545
        %553 = vmatpush1.msra.mxu0 %v544
        %554 = vmatprep.subr.mxu0 %v529
        %555 = vmatpush1.msra.mxu0 %v528
        %556 = vmatprep.subr.mxu0 0.0
        %557 = vmatpush1.msra.mxu0 0.0
        %558 = vmatprep.subr.mxu0 0.0
        %559 = vmatpush1.msra.mxu0 0.0
        %560 = vmatprep.subr.mxu0 0.0
        %561 = vmatpush1.msra.mxu0 0.0
        %562 = vmatprep.subr.mxu0 0.0
        %563 = vmatpush1.msra.mxu0 0.0
        %564 = vmatprep.subr.mxu0 0.0
        %565 = vmatpush1.msra.mxu0 0.0
        %566 = vmatprep.subr.mxu0 0.0
        %567 = vmatpush1.msra.mxu0 0.0
        %568 = vmatprep.subr.mxu0 0.0
        %569 = vmatpush1.msra.mxu0 0.0
        %570 = vmatprep.subr.mxu0 0.0
        %571 = vmatpush1.msra.mxu0 0.0
        %572 = vmatprep.subr.mxu0 0.0
        %573 = vmatpush1.msra.mxu0 0.0
        %574 = vmatprep.subr.mxu0 0.0
        %575 = vmatpush1.msra.mxu0 0.0
        %576 = vmatprep.subr.mxu0 0.0
        %577 = vmatpush1.msra.mxu0 0.0
        %578 = vmatprep.subr.mxu0 0.0
        %579 = vmatpush1.msra.mxu0 0.0
        %580 = vmatprep.subr.mxu0 0.0
        %581 = vmatpush1.msra.mxu0 0.0
        %582 = vmatprep.subr.mxu0 0.0
        %583 = vmatpush1.msra.mxu0 0.0
        %584 = vmatprep.subr.mxu0 0.0
        %585 = vmatpush1.msra.mxu0 0.0
        %586 = vmatprep.subr.mxu0 0.0
        %587 = vmatpush1.msra.mxu0 0.0
        %588 = vmatprep.subr.mxu0 0.0
        %589 = vmatpush1.msra.mxu0 0.0
        %590 = vmatprep.subr.mxu0 0.0
        %591 = vmatpush1.msra.mxu0 0.0
        %592 = vmatprep.subr.mxu0 0.0
        %593 = vmatpush1.msra.mxu0 0.0
        %594 = vmatprep.subr.mxu0 0.0
        %595 = vmatpush1.msra.mxu0 0.0
        %596 = vmatprep.subr.mxu0 0.0
        %597 = vmatpush1.msra.mxu0 0.0
        %598 = vmatprep.subr.mxu0 0.0
        %599 = vmatpush1.msra.mxu0 0.0
        %600 = vmatprep.subr.mxu0 0.0
        %601 = vmatpush1.msra.mxu0 0.0
        %602 = vmatprep.subr.mxu0 0.0
        %603 = vmatpush1.msra.mxu0 0.0
        %604 = vmatprep.subr.mxu0 0.0
        %605 = vmatpush1.msra.mxu0 0.0
        %606 = vmatprep.subr.mxu0 0.0
        %607 = vmatpush1.msra.mxu0 0.0
        %608 = vmatprep.subr.mxu0 0.0
        %609 = vmatpush1.msra.mxu0 0.0
        %610 = vmatprep.subr.mxu0 0.0
        %611 = vmatpush1.msra.mxu0 0.0
        %612 = vmatprep.subr.mxu0 0.0
        %613 = vmatpush1.msra.mxu0 0.0
        %614 = vmatprep.mubr.f32.mxu0 0.0
        %615 = vmatmul.mubr.f32.gmra.mrb[0].mxu0 %v548
        %v616 = vpop.f32.mrb[0].mxu0
        %v617 = vadd.f32 0.0, %v616
        %v618 = vpop.f32.mrb[0].mxu0
        %v619 = vadd.f32 0.0, %v618
        %620 = vdwg.mxu0
        %v621 = vmax.f32 %v617, 0.0
        %v622 = vmax.f32 %v619, 0.0
        %v623 = vld [vmem:[#allocation8] sm:$0xff]
        %vm624 = vcmask 64512
        %v626 = vsel %vm624, %v623, 0
        %628 = vmatprep.subr.mxu0 %v421
        %629 = vmatpush1.msra.mxu0 %v420
        %630 = vmatprep.subr.mxu0 0.0
        %631 = vmatpush1.msra.mxu0 0.0
        %632 = vmatprep.subr.mxu0 0.0
        %633 = vmatpush1.msra.mxu0 0.0
        %634 = vmatprep.subr.mxu0 0.0
        %635 = vmatpush1.msra.mxu0 0.0
        %636 = vmatprep.subr.mxu0 0.0
        %637 = vmatpush1.msra.mxu0 0.0
        %638 = vmatprep.subr.mxu0 0.0
        %639 = vmatpush1.msra.mxu0 0.0
        %640 = vmatprep.subr.mxu0 0.0
        %641 = vmatpush1.msra.mxu0 0.0
        %642 = vmatprep.subr.mxu0 0.0
        %643 = vmatpush1.msra.mxu0 0.0
        %644 = vmatprep.subr.mxu0 0.0
        %645 = vmatpush1.msra.mxu0 0.0
        %646 = vmatprep.subr.mxu0 0.0
        %647 = vmatpush1.msra.mxu0 0.0
        %648 = vmatprep.subr.mxu0 0.0
        %649 = vmatpush1.msra.mxu0 0.0
        %650 = vmatprep.subr.mxu0 0.0
        %651 = vmatpush1.msra.mxu0 0.0
        %652 = vmatprep.subr.mxu0 0.0
        %653 = vmatpush1.msra.mxu0 0.0
        %654 = vmatprep.subr.mxu0 0.0
        %655 = vmatpush1.msra.mxu0 0.0
        %656 = vmatprep.subr.mxu0 0.0
        %657 = vmatpush1.msra.mxu0 0.0
        %658 = vmatprep.subr.mxu0 0.0
        %659 = vmatpush1.msra.mxu0 0.0
        %660 = vmatprep.subr.mxu0 0.0
        %661 = vmatpush1.msra.mxu0 0.0
        %662 = vmatprep.subr.mxu0 0.0
        %663 = vmatpush1.msra.mxu0 0.0
        %664 = vmatprep.subr.mxu0 0.0
        %665 = vmatpush1.msra.mxu0 0.0
        %666 = vmatprep.subr.mxu0 0.0
        %667 = vmatpush1.msra.mxu0 0.0
        %668 = vmatprep.subr.mxu0 0.0
        %669 = vmatpush1.msra.mxu0 0.0
        %670 = vmatprep.subr.mxu0 0.0
        %671 = vmatpush1.msra.mxu0 0.0
        %672 = vmatprep.subr.mxu0 0.0
        %673 = vmatpush1.msra.mxu0 0.0
        %674 = vmatprep.subr.mxu0 0.0
        %675 = vmatpush1.msra.mxu0 0.0
        %676 = vmatprep.subr.mxu0 0.0
        %677 = vmatpush1.msra.mxu0 0.0
        %678 = vmatprep.subr.mxu0 0.0
        %679 = vmatpush1.msra.mxu0 0.0
        %680 = vmatprep.subr.mxu0 0.0
        %681 = vmatpush1.msra.mxu0 0.0
        %682 = vmatprep.subr.mxu0 0.0
        %683 = vmatpush1.msra.mxu0 0.0
        %684 = vmatprep.subr.mxu0 0.0
        %685 = vmatpush1.msra.mxu0 0.0
        %686 = vmatprep.subr.mxu0 0.0
        %687 = vmatpush1.msra.mxu0 0.0
        %688 = vmatprep.subr.mxu0 0.0
        %689 = vmatpush1.msra.mxu0 0.0
        %690 = vmatprep.subr.mxu0 0.0
        %691 = vmatpush1.msra.mxu0 0.0
        %692 = vmatprep.mubr.f32.mxu0 0.0
        %693 = vmatmul.mubr.f32.gmra.mrb[0].mxu0 %v626
        %v694 = vpop.f32.mrb[0].mxu0
        %v695 = vadd.f32 0.0, %v694
        %v696 = vpop.f32.mrb[0].mxu0
        %v697 = vadd.f32 0.0, %v696
        %698 = vdwg.mxu0
        %v699 = vadd.f32 %v621, %v695
        %v700 = vadd.f32 %v622, %v697
        %v701 = vmax.f32 %v699, 0.0
        %v702 = vmax.f32 %v700, 0.0
        %703 = vrot.lane.b32.xlu0 %v701, 4
        %v704 = vpop.permute.xlu0 %703
        %705 = vrot.lane.b32.xlu0 %v702, 4
        %v706 = vpop.permute.xlu0 %705
        %vm707 = vcmp.lt.s32.totalorder %v415, 4
        %v708 = vsel %vm707, %v704, %v706
        %v709 = vsel %vm707, %v706, %v704
        %v710 = vsel %vm418, 1, 0
        %v711 = vlaneseq
        %v712 = vshrl.u32 %v711, 7
        %v713 = vsub.s32 0, %v712
        %v714 = vrot.slane %v710, %v713
        %vm715 = vcmp.eq.s32.totalorder %v714, 1
        %v716 = vsel %vm715, %v709, 0.0
        %v717 = vsel %vm715, %v708, 0.0
        %718 = vrot.lane.b32.xlu0 %v701, 2
        %v719 = vpop.permute.xlu0 %718
        %720 = vrot.lane.b32.xlu0 %v702, 2
        %v721 = vpop.permute.xlu0 %720
        %v722 = vsel %vm426, %v719, %v721
        %v723 = vsel %vm426, %v721, %v719
        %v724 = vsel %vm434, %v723, 0.0
        %v725 = vsel %vm434, %v722, 0.0
        %v726 = vld [vmem:[#allocation10] sm:$0xff]
        %v728 = vsel %vm453, %v726, 0
        %730 = vmatprep.subr.mxu0 %v717
        %731 = vmatpush1.msra.mxu0 %v716
        %732 = vmatprep.subr.mxu0 %v725
        %733 = vmatpush1.msra.mxu0 %v724
        %734 = vmatprep.subr.mxu0 %v702
        %735 = vmatpush1.msra.mxu0 %v701
        %736 = vmatprep.subr.mxu0 0.0
        %737 = vmatpush1.msra.mxu0 0.0
        %738 = vmatprep.subr.mxu0 0.0
        %739 = vmatpush1.msra.mxu0 0.0
        %740 = vmatprep.subr.mxu0 0.0
        %741 = vmatpush1.msra.mxu0 0.0
        %742 = vmatprep.subr.mxu0 0.0
        %743 = vmatpush1.msra.mxu0 0.0
        %744 = vmatprep.subr.mxu0 0.0
        %745 = vmatpush1.msra.mxu0 0.0
        %746 = vmatprep.subr.mxu0 0.0
        %747 = vmatpush1.msra.mxu0 0.0
        %748 = vmatprep.subr.mxu0 0.0
        %749 = vmatpush1.msra.mxu0 0.0
        %750 = vmatprep.subr.mxu0 0.0
        %751 = vmatpush1.msra.mxu0 0.0
        %752 = vmatprep.subr.mxu0 0.0
        %753 = vmatpush1.msra.mxu0 0.0
        %754 = vmatprep.subr.mxu0 0.0
        %755 = vmatpush1.msra.mxu0 0.0
        %756 = vmatprep.subr.mxu0 0.0
        %757 = vmatpush1.msra.mxu0 0.0
        %758 = vmatprep.subr.mxu0 0.0
        %759 = vmatpush1.msra.mxu0 0.0
        %760 = vmatprep.subr.mxu0 0.0
        %761 = vmatpush1.msra.mxu0 0.0
        %762 = vmatprep.subr.mxu0 0.0
        %763 = vmatpush1.msra.mxu0 0.0
        %764 = vmatprep.subr.mxu0 0.0
        %765 = vmatpush1.msra.mxu0 0.0
        %766 = vmatprep.subr.mxu0 0.0
        %767 = vmatpush1.msra.mxu0 0.0
        %768 = vmatprep.subr.mxu0 0.0
        %769 = vmatpush1.msra.mxu0 0.0
        %770 = vmatprep.subr.mxu0 0.0
        %771 = vmatpush1.msra.mxu0 0.0
        %772 = vmatprep.subr.mxu0 0.0
        %773 = vmatpush1.msra.mxu0 0.0
        %774 = vmatprep.subr.mxu0 0.0
        %775 = vmatpush1.msra.mxu0 0.0
        %776 = vmatprep.subr.mxu0 0.0
        %777 = vmatpush1.msra.mxu0 0.0
        %778 = vmatprep.subr.mxu0 0.0
        %779 = vmatpush1.msra.mxu0 0.0
        %780 = vmatprep.subr.mxu0 0.0
        %781 = vmatpush1.msra.mxu0 0.0
        %782 = vmatprep.subr.mxu0 0.0
        %783 = vmatpush1.msra.mxu0 0.0
        %784 = vmatprep.subr.mxu0 0.0
        %785 = vmatpush1.msra.mxu0 0.0
        %786 = vmatprep.subr.mxu0 0.0
        %787 = vmatpush1.msra.mxu0 0.0
        %788 = vmatprep.subr.mxu0 0.0
        %789 = vmatpush1.msra.mxu0 0.0
        %790 = vmatprep.subr.mxu0 0.0
        %791 = vmatpush1.msra.mxu0 0.0
        %792 = vmatprep.subr.mxu0 0.0
        %793 = vmatpush1.msra.mxu0 0.0
        %794 = vmatprep.mubr.f32.mxu0 0.0
        %795 = vmatmul.mubr.f32.gmra.mrb[0].mxu0 %v728
        %v796 = vpop.f32.mrb[0].mxu0
        %v797 = vadd.f32 0.0, %v796
        %v798 = vpop.f32.mrb[0].mxu0
        %v799 = vadd.f32 0.0, %v798
        %800 = vdwg.mxu0
        %v801 = vmax.f32 %v797, 0.0
        %v802 = vmax.f32 %v799, 0.0
        %803 = vrot.lane.b32.xlu0 %v801, 4
        %v804 = vpop.permute.xlu0 %803
        %805 = vrot.lane.b32.xlu0 %v802, 4
        %v806 = vpop.permute.xlu0 %805
        %v807 = vsel %vm707, %v804, %v806
        %v808 = vsel %vm707, %v806, %v804
        %v809 = vsel %vm715, %v808, 0.0
        %v810 = vsel %vm715, %v807, 0.0
        %811 = vrot.lane.b32.xlu0 %v801, 2
        %v812 = vpop.permute.xlu0 %811
        %813 = vrot.lane.b32.xlu0 %v802, 2
        %v814 = vpop.permute.xlu0 %813
        %v815 = vsel %vm426, %v812, %v814
        %v816 = vsel %vm426, %v814, %v812
        %v817 = vsel %vm434, %v816, 0.0
        %v818 = vsel %vm434, %v815, 0.0
        %v819 = vld [vmem:[#allocation11] sm:$0xff]
        %v821 = vsel %vm453, %v819, 0
        %823 = vmatprep.subr.mxu0 %v810
        %824 = vmatpush1.msra.mxu0 %v809
        %825 = vmatprep.subr.mxu0 %v818
        %826 = vmatpush1.msra.mxu0 %v817
        %827 = vmatprep.subr.mxu0 %v802
        %828 = vmatpush1.msra.mxu0 %v801
        %829 = vmatprep.subr.mxu0 0.0
        %830 = vmatpush1.msra.mxu0 0.0
        %831 = vmatprep.subr.mxu0 0.0
        %832 = vmatpush1.msra.mxu0 0.0
        %833 = vmatprep.subr.mxu0 0.0
        %834 = vmatpush1.msra.mxu0 0.0
        %835 = vmatprep.subr.mxu0 0.0
        %836 = vmatpush1.msra.mxu0 0.0
        %837 = vmatprep.subr.mxu0 0.0
        %838 = vmatpush1.msra.mxu0 0.0
        %839 = vmatprep.subr.mxu0 0.0
        %840 = vmatpush1.msra.mxu0 0.0
        %841 = vmatprep.subr.mxu0 0.0
        %842 = vmatpush1.msra.mxu0 0.0
        %843 = vmatprep.subr.mxu0 0.0
        %844 = vmatpush1.msra.mxu0 0.0
        %845 = vmatprep.subr.mxu0 0.0
        %846 = vmatpush1.msra.mxu0 0.0
        %847 = vmatprep.subr.mxu0 0.0
        %848 = vmatpush1.msra.mxu0 0.0
        %849 = vmatprep.subr.mxu0 0.0
        %850 = vmatpush1.msra.mxu0 0.0
        %851 = vmatprep.subr.mxu0 0.0
        %852 = vmatpush1.msra.mxu0 0.0
        %853 = vmatprep.subr.mxu0 0.0
        %854 = vmatpush1.msra.mxu0 0.0
        %855 = vmatprep.subr.mxu0 0.0
        %856 = vmatpush1.msra.mxu0 0.0
        %857 = vmatprep.subr.mxu0 0.0
        %858 = vmatpush1.msra.mxu0 0.0
        %859 = vmatprep.subr.mxu0 0.0
        %860 = vmatpush1.msra.mxu0 0.0
        %861 = vmatprep.subr.mxu0 0.0
        %862 = vmatpush1.msra.mxu0 0.0
        %863 = vmatprep.subr.mxu0 0.0
        %864 = vmatpush1.msra.mxu0 0.0
        %865 = vmatprep.subr.mxu0 0.0
        %866 = vmatpush1.msra.mxu0 0.0
        %867 = vmatprep.subr.mxu0 0.0
        %868 = vmatpush1.msra.mxu0 0.0
        %869 = vmatprep.subr.mxu0 0.0
        %870 = vmatpush1.msra.mxu0 0.0
        %871 = vmatprep.subr.mxu0 0.0
        %872 = vmatpush1.msra.mxu0 0.0
        %873 = vmatprep.subr.mxu0 0.0
        %874 = vmatpush1.msra.mxu0 0.0
        %875 = vmatprep.subr.mxu0 0.0
        %876 = vmatpush1.msra.mxu0 0.0
        %877 = vmatprep.subr.mxu0 0.0
        %878 = vmatpush1.msra.mxu0 0.0
        %879 = vmatprep.subr.mxu0 0.0
        %880 = vmatpush1.msra.mxu0 0.0
        %881 = vmatprep.subr.mxu0 0.0
        %882 = vmatpush1.msra.mxu0 0.0
        %883 = vmatprep.subr.mxu0 0.0
        %884 = vmatpush1.msra.mxu0 0.0
        %885 = vmatprep.subr.mxu0 0.0
        %886 = vmatpush1.msra.mxu0 0.0
        %887 = vmatprep.mubr.f32.mxu0 0.0
        %888 = vmatmul.mubr.f32.gmra.mrb[0].mxu0 %v821
        %v889 = vpop.f32.mrb[0].mxu0
        %v890 = vadd.f32 0.0, %v889
        %v891 = vpop.f32.mrb[0].mxu0
        %v892 = vadd.f32 0.0, %v891
        %893 = vdwg.mxu0
        %v894 = vmax.f32 %v890, 0.0
        %v895 = vmax.f32 %v892, 0.0
        %v896 = vadd.f32 %v894, %v701
        %v897 = vadd.f32 %v895, %v702
        %v898 = vmax.f32 %v896, 0.0
        %v899 = vmax.f32 %v897, 0.0
        %900 = vrot.lane.b32.xlu0 %v898, 8
        %v901 = vpop.permute.xlu0 %900
        %902 = vrot.lane.b32.xlu0 %v899, 8
        %v903 = vpop.permute.xlu0 %902
        %vm904 = vcmp.lt.s32.totalorder %v415, 8
        %v905 = vsel %vm904, %v901, %v903
        %v906 = vsel %vm904, %v903, %v901
        %v907 = vsel %vm419, 1, 0
        %v908 = vlaneseq
        %v909 = vshrl.u32 %v908, 7
        %v910 = vsub.s32 0, %v909
        %v911 = vrot.slane %v907, %v910
        %vm912 = vcmp.eq.s32.totalorder %v911, 1
        %v913 = vsel %vm912, %v906, 0.0
        %v914 = vsel %vm912, %v905, 0.0
        %915 = vrot.lane.b32.xlu0 %v898, 4
        %v916 = vpop.permute.xlu0 %915
        %917 = vrot.lane.b32.xlu0 %v899, 4
        %v918 = vpop.permute.xlu0 %917
        %v919 = vsel %vm707, %v916, %v918
        %v920 = vsel %vm707, %v918, %v916
        %v921 = vsel %vm715, %v920, 0.0
        %v922 = vsel %vm715, %v919, 0.0
        %v923 = vld [vmem:[%s6] sm:$0xff]
        %v924 = vld [vmem:[%s6 + $0x8] sm:$0xff]
        %v926 = vsel %vm453, %v923, 0
        %v929 = vsel %vm453, %v924, 0
        %931 = vmatprep.subr.mxu0 %v914
        %932 = vmatpush1.msra.mxu0 %v913
        %933 = vmatprep.subr.mxu0 %v922
        %934 = vmatpush1.msra.mxu0 %v921
        %935 = vmatprep.subr.mxu0 %v899
        %936 = vmatpush1.msra.mxu0 %v898
        %937 = vmatprep.subr.mxu0 0.0
        %938 = vmatpush1.msra.mxu0 0.0
        %939 = vmatprep.subr.mxu0 0.0
        %940 = vmatpush1.msra.mxu0 0.0
        %941 = vmatprep.subr.mxu0 0.0
        %942 = vmatpush1.msra.mxu0 0.0
        %943 = vmatprep.subr.mxu0 0.0
        %944 = vmatpush1.msra.mxu0 0.0
        %945 = vmatprep.subr.mxu0 0.0
        %946 = vmatpush1.msra.mxu0 0.0
        %947 = vmatprep.subr.mxu0 0.0
        %948 = vmatpush1.msra.mxu0 0.0
        %949 = vmatprep.subr.mxu0 0.0
        %950 = vmatpush1.msra.mxu0 0.0
        %951 = vmatprep.subr.mxu0 0.0
        %952 = vmatpush1.msra.mxu0 0.0
        %953 = vmatprep.subr.mxu0 0.0
        %954 = vmatpush1.msra.mxu0 0.0
        %955 = vmatprep.subr.mxu0 0.0
        %956 = vmatpush1.msra.mxu0 0.0
        %957 = vmatprep.subr.mxu0 0.0
        %958 = vmatpush1.msra.mxu0 0.0
        %959 = vmatprep.subr.mxu0 0.0
        %960 = vmatpush1.msra.mxu0 0.0
        %961 = vmatprep.subr.mxu0 0.0
        %962 = vmatpush1.msra.mxu0 0.0
        %963 = vmatprep.subr.mxu0 0.0
        %964 = vmatpush1.msra.mxu0 0.0
        %965 = vmatprep.subr.mxu0 0.0
        %966 = vmatpush1.msra.mxu0 0.0
        %967 = vmatprep.subr.mxu0 0.0
        %968 = vmatpush1.msra.mxu0 0.0
        %969 = vmatprep.subr.mxu0 0.0
        %970 = vmatpush1.msra.mxu0 0.0
        %971 = vmatprep.subr.mxu0 0.0
        %972 = vmatpush1.msra.mxu0 0.0
        %973 = vmatprep.subr.mxu0 0.0
        %974 = vmatpush1.msra.mxu0 0.0
        %975 = vmatprep.subr.mxu0 0.0
        %976 = vmatpush1.msra.mxu0 0.0
        %977 = vmatprep.subr.mxu0 0.0
        %978 = vmatpush1.msra.mxu0 0.0
        %979 = vmatprep.subr.mxu0 0.0
        %980 = vmatpush1.msra.mxu0 0.0
        %981 = vmatprep.subr.mxu0 0.0
        %982 = vmatpush1.msra.mxu0 0.0
        %983 = vmatprep.subr.mxu0 0.0
        %984 = vmatpush1.msra.mxu0 0.0
        %985 = vmatprep.subr.mxu0 0.0
        %986 = vmatpush1.msra.mxu0 0.0
        %987 = vmatprep.subr.mxu0 0.0
        %988 = vmatpush1.msra.mxu0 0.0
        %989 = vmatprep.subr.mxu0 0.0
        %990 = vmatpush1.msra.mxu0 0.0
        %991 = vmatprep.subr.mxu0 0.0
        %992 = vmatpush1.msra.mxu0 0.0
        %993 = vmatprep.subr.mxu0 0.0
        %994 = vmatpush1.msra.mxu0 0.0
        %995 = vmatprep.mubr.f32.mxu0 0.0
        %996 = vmatmul.mubr.f32.gmra.mrb[0].mxu0 %v926
        %v997 = vpop.f32.mrb[0].mxu0
        %v998 = vadd.f32 0.0, %v997
        %v999 = vpop.f32.mrb[0].mxu0
        %v1000 = vadd.f32 0.0, %v999
        %1001 = vmatprep.mubr.f32.mxu0 0.0
        %1002 = vmatmul.mubr.f32.gmra.mrb[0].mxu0 %v929
        %v1003 = vpop.f32.mrb[0].mxu0
        %v1004 = vadd.f32 0.0, %v1003
        %v1005 = vpop.f32.mrb[0].mxu0
        %v1006 = vadd.f32 0.0, %v1005
        %1007 = vdwg.mxu0
        %v1008 = vmax.f32 %v998, 0.0
        %v1009 = vmax.f32 %v1000, 0.0
        %v1010 = vmax.f32 %v1004, 0.0
        %v1011 = vmax.f32 %v1006, 0.0
        %1012 = vrot.lane.b32.xlu0 %v1008, 8
        %v1013 = vpop.permute.xlu0 %1012
        %1014 = vrot.lane.b32.xlu0 %v1010, 8
        %v1015 = vpop.permute.xlu0 %1014
        %1016 = vrot.lane.b32.xlu0 %v1009, 8
        %v1017 = vpop.permute.xlu0 %1016
        %1018 = vrot.lane.b32.xlu0 %v1011, 8
        %v1019 = vpop.permute.xlu0 %1018
        %v1020 = vsel %vm904, %v1013, %v1017
        %v1021 = vsel %vm904, %v1015, %v1019
        %v1022 = vsel %vm904, %v1017, %v1013
        %v1023 = vsel %vm904, %v1019, %v1015
        %v1024 = vsel %vm912, %v1022, 0.0
        %v1025 = vsel %vm912, %v1020, 0.0
        %v1026 = vsel %vm912, %v1023, 0.0
        %v1027 = vsel %vm912, %v1021, 0.0
        %1028 = vrot.lane.b32.xlu0 %v1008, 4
        %v1029 = vpop.permute.xlu0 %1028
        %1030 = vrot.lane.b32.xlu0 %v1010, 4
        %v1031 = vpop.permute.xlu0 %1030
        %1032 = vrot.lane.b32.xlu0 %v1009, 4
        %v1033 = vpop.permute.xlu0 %1032
        %1034 = vrot.lane.b32.xlu0 %v1011, 4
        %v1035 = vpop.permute.xlu0 %1034
        %v1036 = vsel %vm707, %v1029, %v1033
        %v1037 = vsel %vm707, %v1031, %v1035
        %v1038 = vsel %vm707, %v1033, %v1029
        %v1039 = vsel %vm707, %v1035, %v1031
        %v1040 = vsel %vm715, %v1038, 0.0
        %v1041 = vsel %vm715, %v1036, 0.0
        %v1042 = vsel %vm715, %v1039, 0.0
        %v1043 = vsel %vm715, %v1037, 0.0
        %v1044 = vld [vmem:[%s7] sm:$0xff]
        %v1045 = vld [vmem:[%s7 + $0x8] sm:$0xff]
        %vm1046 = vcmask 392192
        %v1048 = vsel %vm1046, %v1044, 0
        %v1051 = vsel %vm1046, %v1045, 0
        %1053 = vmatprep.subr.mxu0 %v1025
        %1054 = vmatpush1.msra.mxu0 %v1024
        %1055 = vmatprep.subr.mxu0 %v1027
        %1056 = vmatpush1.msra.mxu0 %v1026
        %1057 = vmatprep.subr.mxu0 %v1041
        %1058 = vmatpush1.msra.mxu0 %v1040
        %1059 = vmatprep.subr.mxu0 %v1043
        %1060 = vmatpush1.msra.mxu0 %v1042
        %1061 = vmatprep.subr.mxu0 %v1009
        %1062 = vmatpush1.msra.mxu0 %v1008
        %1063 = vmatprep.subr.mxu0 %v1011
        %1064 = vmatpush1.msra.mxu0 %v1010
        %1065 = vmatprep.subr.mxu0 0.0
        %1066 = vmatpush1.msra.mxu0 0.0
        %1067 = vmatprep.subr.mxu0 0.0
        %1068 = vmatpush1.msra.mxu0 0.0
        %1069 = vmatprep.subr.mxu0 0.0
        %1070 = vmatpush1.msra.mxu0 0.0
        %1071 = vmatprep.subr.mxu0 0.0
        %1072 = vmatpush1.msra.mxu0 0.0
        %1073 = vmatprep.subr.mxu0 0.0
        %1074 = vmatpush1.msra.mxu0 0.0
        %1075 = vmatprep.subr.mxu0 0.0
        %1076 = vmatpush1.msra.mxu0 0.0
        %1077 = vmatprep.subr.mxu0 0.0
        %1078 = vmatpush1.msra.mxu0 0.0
        %1079 = vmatprep.subr.mxu0 0.0
        %1080 = vmatpush1.msra.mxu0 0.0
        %1081 = vmatprep.subr.mxu0 0.0
        %1082 = vmatpush1.msra.mxu0 0.0
        %1083 = vmatprep.subr.mxu0 0.0
        %1084 = vmatpush1.msra.mxu0 0.0
        %1085 = vmatprep.subr.mxu0 0.0
        %1086 = vmatpush1.msra.mxu0 0.0
        %1087 = vmatprep.subr.mxu0 0.0
        %1088 = vmatpush1.msra.mxu0 0.0
        %1089 = vmatprep.subr.mxu0 0.0
        %1090 = vmatpush1.msra.mxu0 0.0
        %1091 = vmatprep.subr.mxu0 0.0
        %1092 = vmatpush1.msra.mxu0 0.0
        %1093 = vmatprep.subr.mxu0 0.0
        %1094 = vmatpush1.msra.mxu0 0.0
        %1095 = vmatprep.subr.mxu0 0.0
        %1096 = vmatpush1.msra.mxu0 0.0
        %1097 = vmatprep.subr.mxu0 0.0
        %1098 = vmatpush1.msra.mxu0 0.0
        %1099 = vmatprep.subr.mxu0 0.0
        %1100 = vmatpush1.msra.mxu0 0.0
        %1101 = vmatprep.subr.mxu0 0.0
        %1102 = vmatpush1.msra.mxu0 0.0
        %1103 = vmatprep.subr.mxu0 0.0
        %1104 = vmatpush1.msra.mxu0 0.0
        %1105 = vmatprep.subr.mxu0 0.0
        %1106 = vmatpush1.msra.mxu0 0.0
        %1107 = vmatprep.subr.mxu0 0.0
        %1108 = vmatpush1.msra.mxu0 0.0
        %1109 = vmatprep.subr.mxu0 0.0
        %1110 = vmatpush1.msra.mxu0 0.0
        %1111 = vmatprep.subr.mxu0 0.0
        %1112 = vmatpush1.msra.mxu0 0.0
        %1113 = vmatprep.subr.mxu0 0.0
        %1114 = vmatpush1.msra.mxu0 0.0
        %1115 = vmatprep.subr.mxu0 0.0
        %1116 = vmatpush1.msra.mxu0 0.0
        %1117 = vmatprep.mubr.f32.mxu0 0.0
        %1118 = vmatmul.mubr.f32.gmra.mrb[0].mxu0 %v1048
        %v1119 = vpop.f32.mrb[0].mxu0
        %v1120 = vadd.f32 0.0, %v1119
        %v1121 = vpop.f32.mrb[0].mxu0
        %v1122 = vadd.f32 0.0, %v1121
        %1123 = vmatprep.mubr.f32.mxu0 0.0
        %1124 = vmatmul.mubr.f32.gmra.mrb[0].mxu0 %v1051
        %v1125 = vpop.f32.mrb[0].mxu0
        %v1126 = vadd.f32 0.0, %v1125
        %v1127 = vpop.f32.mrb[0].mxu0
        %v1128 = vadd.f32 0.0, %v1127
        %1129 = vdwg.mxu0
        %v1130 = vmax.f32 %v1120, 0.0
        %v1131 = vmax.f32 %v1122, 0.0
        %v1132 = vmax.f32 %v1126, 0.0
        %v1133 = vmax.f32 %v1128, 0.0
        %v1134 = vld [vmem:[%s8] sm:$0xff]
        %v1135 = vld [vmem:[%s8 + $0x8] sm:$0xff]
        %v1137 = vsel %vm624, %v1134, 0
        %v1140 = vsel %vm624, %v1135, 0
        %1142 = vmatprep.subr.mxu0 %v899
        %1143 = vmatpush1.msra.mxu0 %v898
        %1144 = vmatprep.subr.mxu0 0.0
        %1145 = vmatpush1.msra.mxu0 0.0
        %1146 = vmatprep.subr.mxu0 0.0
        %1147 = vmatpush1.msra.mxu0 0.0
        %1148 = vmatprep.subr.mxu0 0.0
        %1149 = vmatpush1.msra.mxu0 0.0
        %1150 = vmatprep.subr.mxu0 0.0
        %1151 = vmatpush1.msra.mxu0 0.0
        %1152 = vmatprep.subr.mxu0 0.0
        %1153 = vmatpush1.msra.mxu0 0.0
        %1154 = vmatprep.subr.mxu0 0.0
        %1155 = vmatpush1.msra.mxu0 0.0
        %1156 = vmatprep.subr.mxu0 0.0
        %1157 = vmatpush1.msra.mxu0 0.0
        %1158 = vmatprep.subr.mxu0 0.0
        %1159 = vmatpush1.msra.mxu0 0.0
        %1160 = vmatprep.subr.mxu0 0.0
        %1161 = vmatpush1.msra.mxu0 0.0
        %1162 = vmatprep.subr.mxu0 0.0
        %1163 = vmatpush1.msra.mxu0 0.0
        %1164 = vmatprep.subr.mxu0 0.0
        %1165 = vmatpush1.msra.mxu0 0.0
        %1166 = vmatprep.subr.mxu0 0.0
        %1167 = vmatpush1.msra.mxu0 0.0
        %1168 = vmatprep.subr.mxu0 0.0
        %1169 = vmatpush1.msra.mxu0 0.0
        %1170 = vmatprep.subr.mxu0 0.0
        %1171 = vmatpush1.msra.mxu0 0.0
        %1172 = vmatprep.subr.mxu0 0.0
        %1173 = vmatpush1.msra.mxu0 0.0
        %1174 = vmatprep.subr.mxu0 0.0
        %1175 = vmatpush1.msra.mxu0 0.0
        %1176 = vmatprep.subr.mxu0 0.0
        %1177 = vmatpush1.msra.mxu0 0.0
        %1178 = vmatprep.subr.mxu0 0.0
        %1179 = vmatpush1.msra.mxu0 0.0
        %1180 = vmatprep.subr.mxu0 0.0
        %1181 = vmatpush1.msra.mxu0 0.0
        %1182 = vmatprep.subr.mxu0 0.0
        %1183 = vmatpush1.msra.mxu0 0.0
        %1184 = vmatprep.subr.mxu0 0.0
        %1185 = vmatpush1.msra.mxu0 0.0
        %1186 = vmatprep.subr.mxu0 0.0
        %1187 = vmatpush1.msra.mxu0 0.0
        %1188 = vmatprep.subr.mxu0 0.0
        %1189 = vmatpush1.msra.mxu0 0.0
        %1190 = vmatprep.subr.mxu0 0.0
        %1191 = vmatpush1.msra.mxu0 0.0
        %1192 = vmatprep.subr.mxu0 0.0
        %1193 = vmatpush1.msra.mxu0 0.0
        %1194 = vmatprep.subr.mxu0 0.0
        %1195 = vmatpush1.msra.mxu0 0.0
        %1196 = vmatprep.subr.mxu0 0.0
        %1197 = vmatpush1.msra.mxu0 0.0
        %1198 = vmatprep.subr.mxu0 0.0
        %1199 = vmatpush1.msra.mxu0 0.0
        %1200 = vmatprep.subr.mxu0 0.0
        %1201 = vmatpush1.msra.mxu0 0.0
        %1202 = vmatprep.subr.mxu0 0.0
        %1203 = vmatpush1.msra.mxu0 0.0
        %1204 = vmatprep.subr.mxu0 0.0
        %1205 = vmatpush1.msra.mxu0 0.0
        %1206 = vmatprep.mubr.f32.mxu0 0.0
        %1207 = vmatmul.mubr.f32.gmra.mrb[0].mxu0 %v1137
        %v1208 = vpop.f32.mrb[0].mxu0
        %v1209 = vadd.f32 0.0, %v1208
        %v1210 = vpop.f32.mrb[0].mxu0
        %v1211 = vadd.f32 0.0, %v1210
        %1212 = vmatprep.mubr.f32.mxu0 0.0
        %1213 = vmatmul.mubr.f32.gmra.mrb[0].mxu0 %v1140
        %v1214 = vpop.f32.mrb[0].mxu0
        %v1215 = vadd.f32 0.0, %v1214
        %v1216 = vpop.f32.mrb[0].mxu0
        %v1217 = vadd.f32 0.0, %v1216
        %1218 = vdwg.mxu0
        %v1219 = vadd.f32 %v1130, %v1209
        %v1220 = vadd.f32 %v1131, %v1211
        %v1221 = vadd.f32 %v1132, %v1215
        %v1222 = vadd.f32 %v1133, %v1217
        %v1223 = vmax.f32 %v1219, 0.0
        %v1224 = vmax.f32 %v1220, 0.0
        %v1225 = vmax.f32 %v1221, 0.0
        %v1226 = vmax.f32 %v1222, 0.0
        %1227 = vst [vmem:[%s411] sm:$0xff] %v1223
        %1228 = vst [vmem:[%s411 + $0x8] sm:$0xff] %v1224
        %1229 = vst [vmem:[%s411 + $0x10] sm:$0xff] %v1225
        %1230 = vst [vmem:[%s411 + $0x18] sm:$0xff] %v1226
        %s1231 = sand.u32 %s231, 1
        %s1232 = scalar_lea.sflag [#allocation4], %s1231
        %s1233 = sand.u32 %s231, 1
        %s1234 = smul.addr %s1233, 32
        %s1235 = scalar_lea.vmem [#allocation13], %s1234
        // Predicated region
        $region81: #{tpu_custom_call.1} parent=55 // pred_check
          %p1236 = pneg %p241
        $region82: #{tpu_custom_call.1} parent=55 // pred_check_branch
          %1238 = sbr.rel (%p1236) target = $region84
        $region83: #{tpu_custom_call.1} parent=55 // pred_region
          %s1239 = smul.u32 2, %s29
          %s1241 = ssub.s32 512, 512
          %1242 = vsyncadd %s1232, %s1241
          %s1243 = smul.addr %s1239, 128
          %s1244 = scalar_lea.hbm %s9, %s1243
          %s1245 = sshll.u32 %s1235, 4
          %s1246 = int_to_ptr.vmem [resolvable:$true] %s1245
          %1251 = dma.vmem_to_hbm [thread:$0]  %s1246, 512, %s1244, %s1232, 256, 512, 16
        $region84: #{tpu_custom_call.1} parent=55 // pred_fallthru
          _
      $region56: #{tpu_custom_call.1} parent=5 // pred_fallthru
        _
      %p1252 = scmp.le.s32.totalorder 2, %s24
      // Predicated region
      $region85: #{tpu_custom_call.1} parent=5 // pred_check
        %p1253 = pneg %p1252
      $region86: #{tpu_custom_call.1} parent=5 // pred_check_branch
        %1255 = sbr.rel (%p1253) target = $region88
      $region87: #{tpu_custom_call.1} parent=5 // pred_region
        %s1256 = ssub.s32 %s24, 2
        // Predicated region
        $region89: #{tpu_custom_call.1} parent=87 // pred_check
          %p1257 = pneg %p247
        $region90: #{tpu_custom_call.1} parent=87 // pred_check_branch
          %1259 = sbr.rel (%p1257) target = $region92
        $region91: #{tpu_custom_call.1} parent=87 // pred_region
          %s1260 = sand.u32 %s232, 1
          %s1261 = scalar_lea.sflag [#allocation4], %s1260
          %s1262 = sand.u32 %s232, 1
          %s1263 = smul.addr %s1262, 32
          %s1264 = scalar_lea.vmem [#allocation13], %s1263
          %1265 = dma.done %s1261, 512
        $region92: #{tpu_custom_call.1} parent=87 // pred_fallthru
          _
      $region88: #{tpu_custom_call.1} parent=5 // pred_fallthru
        _
    $region6: #{tpu_custom_call.1} parent=1 // loop_footer
      %s28 = sadd.s32 1, %s24
    $region7: #{tpu_custom_call.1} parent=1 // loop_footer_branch
      %23 = sbr.rel target = $region3
    $region8: #{tpu_custom_call.1} parent=1 // loop_exit
      _
    %1266 = vsyncpa [#allocation3], 1
    %s1267 = scalar_lea.sflag [#allocation3], 1
    %1268 = vsyncpa %s1267, 1
    %1269 = vsyncpa [#allocation6], 1
    %1270 = vsyncpa [#allocation9], 1
    %1271 = vsyncpa [#allocation12], 1
    %1272 = vsyncpa [#allocation4], 1
    %s1273 = scalar_lea.sflag [#allocation4], 1
    %1274 = vsyncpa %s1273, 1

</llo_original>
